<compile_context>
chip_gen: v7x
topology: tpu7x:2x2x1
jax: 0.10.0
libtpu: 0.0.40
codegen_flags: <defaults>
</compile_context>

<pallas_src>
import jax
import jax.numpy as jnp
from jax.experimental import pallas as pl
from jax.experimental.pallas import tpu as pltpu

LIDAR_DIM = 180
OTHER_DIM = 6
OBS_DIM = LIDAR_DIM + OTHER_DIM

C1, K1, S1 = 8, 5, 2
C2, K2, S2 = 16, 3, 2
L1 = (LIDAR_DIM - K1) // S1 + 1   # 88
L2 = (L1 - K2) // S2 + 1          # 43
N_FLAT = C2 * L2                  # 688
FEATURES_DIM = 64
PI_HIDDEN = 32
ACTION_DIM = 2


def _cdiv(a, b):
    return -(-a // b)


def _round_up(x, m):
    return _cdiv(x, m) * m


CONV1_OUT = C1 * L1                        # 704
CONV2_OUT = C2 * L2                        # 688
CONV1_PAD = _round_up(CONV1_OUT, 128)      # 768
CONV2_PAD = _round_up(CONV2_OUT, 128)      # 768

MAX_BATCH_TILE = 1024   # resident weights + activations + obs buffers << v7x 64 MiB VMEM at tb=1024


# ----------------------------------------------------------------------------
# One-time parameter preparation (hoisted out of the forward path).
# ----------------------------------------------------------------------------
def conv_to_matmul(w, b, lin, stride):
    """Conv1d (valid padding, given stride) as a dense Toeplitz-structured matmul.

    w: (Cout, Cin, K), b: (Cout,) -> Wmat: (Cin*lin, Cout*Lout), bvec: (Cout*Lout,).
    Output column ordering is channel-major (c*Lout + l) == torch Flatten of an NCL tensor."""
    cout_n, cin_n, k_n = w.shape
    lout = (lin - k_n) // stride + 1
    l = jnp.arange(lout)
    k = jnp.arange(k_n)
    cin = jnp.arange(cin_n)
    cout = jnp.arange(cout_n)
    rows = cin[:, None, None] * lin + l[None, :, None] * stride + k[None, None, :]  # (Cin,Lout,K)
    cols = cout[:, None] * lout + l[None, :]                                        # (Cout,Lout)
    row_idx = jnp.broadcast_to(rows[None], (cout_n, cin_n, lout, k_n)).reshape(-1)
    col_idx = jnp.broadcast_to(cols[:, None, :, None], (cout_n, cin_n, lout, k_n)).reshape(-1)
    vals = jnp.broadcast_to(w[:, :, None, :], (cout_n, cin_n, lout, k_n)).reshape(-1)
    wmat = jnp.zeros((cin_n * lin, cout_n * lout), jnp.float32).at[row_idx, col_idx].set(vals)
    bvec = jnp.repeat(b, lout)
    return wmat, bvec


def prepare_params(params):
    """Call ONCE per parameter set: builds kernel-ready, zero-extended, lane-padded operands."""
    w1m, b1v = conv_to_matmul(params["w_conv1"], params["b_conv1"], LIDAR_DIM, S1)  # (180, 704)
    w2m, b2v = conv_to_matmul(params["w_conv2"], params["b_conv2"], L1, S2)         # (704, 688)

    # Zero-extend conv1 over the full observation (rows 180..185 = 0) and pad lanes to 768.
    w1e = jnp.zeros((OBS_DIM, CONV1_PAD), jnp.float32).at[:LIDAR_DIM, :CONV1_OUT].set(w1m)
    b1e = jnp.zeros((1, CONV1_PAD), jnp.float32).at[0, :CONV1_OUT].set(b1v)
    # conv2 padded to (768, 768); the extra rows/cols are zero so padded h1/h2 lanes stay 0.
    w2e = jnp.zeros((CONV1_PAD, CONV2_PAD), jnp.float32).at[:CONV1_OUT, :CONV2_OUT].set(w2m)
    b2e = jnp.zeros((1, CONV2_PAD), jnp.float32).at[0, :CONV2_OUT].set(b2v)

    # Linear on concat([cnn_out, other]) == split-weight matmul sum:
    #   feat = h2 @ wl_lid + obs @ wl_oth + b  (wl_oth has rows 0..179 zeroed).
    wl = jnp.asarray(params["w_lin"], jnp.float32)                                  # (694, 64)
    wl_lid = jnp.zeros((CONV2_PAD, FEATURES_DIM), jnp.float32).at[:N_FLAT].set(wl[:N_FLAT])
    wl_oth = jnp.zeros((OBS_DIM, FEATURES_DIM), jnp.float32).at[LIDAR_DIM:].set(wl[N_FLAT:])

    row = lambda v: jnp.asarray(v, jnp.float32).reshape(1, -1)
    bf = lambda a: jnp.asarray(a, jnp.float32).astype(jnp.bfloat16)
    return {
        # All matmul operands in bf16 (f32 MXU accumulation in the kernel); biases stay f32.
        "w1": bf(w1e), "b1": b1e,
        "w2": bf(w2e), "b2": b2e,
        "wl_lid": bf(wl_lid), "wl_oth": bf(wl_oth), "bl": row(params["b_lin"]),
        "wp1": bf(params["w_pi1"]), "bp1": row(params["b_pi1"]),
        "wp2": bf(params["w_pi2"]), "bp2": row(params["b_pi2"]),
        "wmu": bf(params["w_mu"]), "bmu": row(params["b_mu"]),
    }


# ----------------------------------------------------------------------------
# Pallas kernel: all matmuls + ReLU + tanh of the forward pass for one batch tile.
# ----------------------------------------------------------------------------
def combined_actor_kernel(obs_ref,
                          w1_ref, b1_ref, w2_ref, b2_ref,
                          wl_lid_ref, wl_oth_ref, bl_ref,
                          wp1_ref, bp1_ref, wp2_ref, bp2_ref,
                          wmu_ref, bmu_ref,
                          out_ref):
    f32 = jnp.float32
    bf16 = jnp.bfloat16
    obs = obs_ref[...].astype(bf16)                            # (TB, 186)

    # cnn: conv1 + ReLU, conv2 + ReLU (zero-extended, lane-padded Toeplitz matmuls).
    h1 = jnp.dot(obs, w1_ref[...], preferred_element_type=f32) + b1_ref[...]
    h1 = jnp.maximum(h1, 0.0).astype(bf16)                     # (TB, 768), lanes 704.. are 0
    h2 = jnp.dot(h1, w2_ref[...], preferred_element_type=f32) + b2_ref[...]
    h2 = jnp.maximum(h2, 0.0).astype(bf16)                     # (TB, 768), lanes 688.. are 0

    # linear on concat([cnn_out, other]) — split-weight matmul sum (no in-kernel concat/slice).
    feat = (jnp.dot(h2, wl_lid_ref[...], preferred_element_type=f32)
            + jnp.dot(obs, wl_oth_ref[...], preferred_element_type=f32)
            + bl_ref[...])
    feat = jnp.maximum(feat, 0.0).astype(bf16)                 # (TB, 64)

    # latent_pi (Tanh MLP) + mu head + final tanh.  tanh stays f32 (v5e EUP has no bf16).
    p1 = jnp.tanh(jnp.dot(feat, wp1_ref[...], preferred_element_type=f32) + bp1_ref[...])
    p2 = jnp.tanh(jnp.dot(p1.astype(bf16), wp2_ref[...], preferred_element_type=f32) + bp2_ref[...])
    act = jnp.tanh(jnp.dot(p2.astype(bf16), wmu_ref[...], preferred_element_type=f32) + bmu_ref[...])
    out_ref[...] = act                                         # (TB, ACTION_DIM) f32


# ----------------------------------------------------------------------------
# Wrapper: balanced batch grid, VMEM-resident weights, batch padding.
# ----------------------------------------------------------------------------
def _choose_tile(batch, max_tile):
    b8 = _round_up(batch, 8)
    n_tiles = _cdiv(b8, max_tile)
    if b8 >= 16:               # give v7x's two TensorCores at least one tile each
        n_tiles = max(n_tiles, 2)
    tb = _round_up(_cdiv(b8, n_tiles), 8)
    b_pad = _round_up(b8, tb)
    return tb, b_pad


def combined_actor_forward(observations, prepped, *, max_batch_tile=MAX_BATCH_TILE):
    # TODO(synk): torch's .to(device)/.cpu()/no_grad are host/device plumbing with no kernel equivalent.
    if observations.ndim == 1:
        observations = observations[None, :]
    obs = observations.astype(jnp.float32)
    batch = obs.shape[0]

    tb, b_pad = _choose_tile(batch, max_batch_tile)
    if b_pad != batch:
        obs = jnp.pad(obs, ((0, b_pad - batch), (0, 0)))

    p = prepped
    weights = (p["w1"], p["b1"], p["w2"], p["b2"],
               p["wl_lid"], p["wl_oth"], p["bl"],
               p["wp1"], p["bp1"], p["wp2"], p["bp2"],
               p["wmu"], p["bmu"])

    # Whole-array VMEM residency: weights are DMA'd once and are NOT double-buffered per step.
    resident = pl.BlockSpec(memory_space=pltpu.MemorySpace.VMEM)

    actions = pl.pallas_call(
        combined_actor_kernel,
        out_shape=jax.ShapeDtypeStruct((b_pad, ACTION_DIM), jnp.float32),
        grid=(b_pad // tb,),
        in_specs=[pl.BlockSpec((tb, OBS_DIM), lambda i: (i, 0))]
                 + [resident] * len(weights),
        out_specs=pl.BlockSpec((tb, ACTION_DIM), lambda i: (i, 0)),
        compiler_params=pltpu.CompilerParams(
            dimension_semantics=("parallel",),
            vmem_limit_bytes=32 * 1024 * 1024),
    )(obs, *weights)

    return jnp.squeeze(actions[:batch])


# ----------------------------------------------------------------------------
# Pure-JAX reference (explicit conv, f32) for correctness checking.
# ----------------------------------------------------------------------------
def _conv1d_ref(x, w, b, stride):
    bsz, cin, lin = x.shape
    cout, _, k = w.shape
    lout = (lin - k) // stride + 1
    idx = jnp.arange(lout)[:, None] * stride + jnp.arange(k)[None, :]
    patches = x[:, :, idx]                                   # (B, Cin, Lout, K)
    return jnp.einsum("bclk,ock->bol", patches, w) + b[None, :, None]


def reference_forward(observations, params):
    if observations.ndim == 1:
        observations = observations[None, :]
    obs = observations.astype(jnp.float32)
    lidar = obs[:, :LIDAR_DIM][:, None, :]
    h1 = jnp.maximum(_conv1d_ref(lidar, params["w_conv1"], params["b_conv1"], S1), 0.0)
    h2 = jnp.maximum(_conv1d_ref(h1, params["w_conv2"], params["b_conv2"], S2), 0.0)
    flat = h2.reshape(h2.shape[0], -1)                       # channel-major, matches torch Flatten
    comb = jnp.concatenate([flat, obs[:, LIDAR_DIM:]], axis=1)
    feat = jnp.maximum(comb @ params["w_lin"] + params["b_lin"], 0.0)
    p1 = jnp.tanh(feat @ params["w_pi1"] + params["b_pi1"])
    p2 = jnp.tanh(p1 @ params["w_pi2"] + params["b_pi2"])
    act = jnp.tanh(p2 @ params["w_mu"] + params["b_mu"])
    return jnp.squeeze(act)


def init_params(key):
    ks = jax.random.split(key, 12)
    n = lambda k, shape, scale: (scale * jax.random.normal(k, shape)).astype(jnp.float32)
    return {
        "w_conv1": n(ks[0], (C1, 1, K1), 0.3),
        "b_conv1": n(ks[1], (C1,), 0.1),
        "w_conv2": n(ks[2], (C2, C1, K2), 0.15),
        "b_conv2": n(ks[3], (C2,), 0.1),
        "w_lin":   n(ks[4], (N_FLAT + OTHER_DIM, FEATURES_DIM), 0.05),
        "b_lin":   n(ks[5], (FEATURES_DIM,), 0.05),
        "w_pi1":   n(ks[6], (FEATURES_DIM, PI_HIDDEN), 0.15),
        "b_pi1":   n(ks[7], (PI_HIDDEN,), 0.05),
        "w_pi2":   n(ks[8], (PI_HIDDEN, PI_HIDDEN), 0.2),
        "b_pi2":   n(ks[9], (PI_HIDDEN,), 0.05),
        "w_mu":    n(ks[10], (PI_HIDDEN, ACTION_DIM), 0.3),
        "b_mu":    n(ks[11], (ACTION_DIM,), 0.05),
    }


if __name__ == "__main__":
    key = jax.random.PRNGKey(0)
    pkey, okey1, okey2 = jax.random.split(key, 3)
    params = init_params(pkey)
    prepped = prepare_params(params)          # one-time weight prep (hoisted out of forward)

    fwd = jax.jit(combined_actor_forward, static_argnames=("max_batch_tile",))

    # Small batch (latency path, grid=(1,)).
    obs_small = jax.random.normal(okey1, (2, OBS_DIM), dtype=jnp.float32)
    out_small = jax.block_until_ready(fwd(obs_small, prepped))
    with jax.default_matmul_precision("highest"):
        ref_small = jax.block_until_ready(reference_forward(obs_small, params))
    assert out_small.shape == ref_small.shape, (out_small.shape, ref_small.shape)
    # bf16 matmul operands in the kernel vs. a pure-f32 reference -> looser tolerance.
    assert jnp.allclose(out_small, ref_small, rtol=5e-2, atol=5e-2), (out_small, ref_small)

    # Larger batch with a small forced tile to exercise the batch grid (4 tiles) and row padding.
    obs_big = jax.random.normal(okey2, (50, OBS_DIM), dtype=jnp.float32)
    out_big = jax.block_until_ready(fwd(obs_big, prepped, max_batch_tile=16))
    with jax.default_matmul_precision("highest"):
        ref_big = jax.block_until_ready(reference_forward(obs_big, params))
    assert out_big.shape == ref_big.shape, (out_big.shape, ref_big.shape)
    assert jnp.allclose(out_big, ref_big, rtol=5e-2, atol=5e-2), float(
        jnp.max(jnp.abs(out_big - ref_big)))

    print("KERNEL_OK")
</pallas_src>

<mosaic_0001>
module attributes {stable_mosaic.version = 11 : i64} {
  func.func @combined_actor_kernel(%arg0: i32, %arg1: memref<8x186xf32, #tpu.memory_space<vmem>>, %arg2: memref<186x768xbf16, #tpu.memory_space<vmem>>, %arg3: memref<1x768xf32, #tpu.memory_space<vmem>>, %arg4: memref<768x768xbf16, #tpu.memory_space<vmem>>, %arg5: memref<1x768xf32, #tpu.memory_space<vmem>>, %arg6: memref<768x64xbf16, #tpu.memory_space<vmem>>, %arg7: memref<186x64xbf16, #tpu.memory_space<vmem>>, %arg8: memref<1x64xf32, #tpu.memory_space<vmem>>, %arg9: memref<64x32xbf16, #tpu.memory_space<vmem>>, %arg10: memref<1x32xf32, #tpu.memory_space<vmem>>, %arg11: memref<32x32xbf16, #tpu.memory_space<vmem>>, %arg12: memref<1x32xf32, #tpu.memory_space<vmem>>, %arg13: memref<32x2xbf16, #tpu.memory_space<vmem>>, %arg14: memref<1x2xf32, #tpu.memory_space<vmem>>, %arg15: memref<8x2xf32, #tpu.memory_space<vmem>>) attributes {dimension_semantics = [#tpu.dimension_semantics<parallel>], iteration_bounds = array<i64: 1>, scalar_prefetch = 0 : i64, scratch_operands = 0 : i64, tpu.core_type = #tpu.core_type<tc>, window_params = [{transform_indices = @transform_0, window_bounds = array<i64: 8, 186>}, {pipeline_mode = #tpu.pipeline_mode<synchronous>, transform_indices = @transform_1, window_bounds = array<i64: 186, 768>}, {pipeline_mode = #tpu.pipeline_mode<synchronous>, transform_indices = @transform_2, window_bounds = array<i64: 1, 768>}, {pipeline_mode = #tpu.pipeline_mode<synchronous>, transform_indices = @transform_3, window_bounds = array<i64: 768, 768>}, {pipeline_mode = #tpu.pipeline_mode<synchronous>, transform_indices = @transform_4, window_bounds = array<i64: 1, 768>}, {pipeline_mode = #tpu.pipeline_mode<synchronous>, transform_indices = @transform_5, window_bounds = array<i64: 768, 64>}, {pipeline_mode = #tpu.pipeline_mode<synchronous>, transform_indices = @transform_6, window_bounds = array<i64: 186, 64>}, {pipeline_mode = #tpu.pipeline_mode<synchronous>, transform_indices = @transform_7, window_bounds = array<i64: 1, 64>}, {pipeline_mode = #tpu.pipeline_mode<synchronous>, transform_indices = @transform_8, window_bounds = array<i64: 64, 32>}, {pipeline_mode = #tpu.pipeline_mode<synchronous>, transform_indices = @transform_9, window_bounds = array<i64: 1, 32>}, {pipeline_mode = #tpu.pipeline_mode<synchronous>, transform_indices = @transform_10, window_bounds = array<i64: 32, 32>}, {pipeline_mode = #tpu.pipeline_mode<synchronous>, transform_indices = @transform_11, window_bounds = array<i64: 1, 32>}, {pipeline_mode = #tpu.pipeline_mode<synchronous>, transform_indices = @transform_12, window_bounds = array<i64: 32, 2>}, {pipeline_mode = #tpu.pipeline_mode<synchronous>, transform_indices = @transform_13, window_bounds = array<i64: 1, 2>}, {transform_indices = @transform_14, window_bounds = array<i64: 8, 2>}]} {
    %c0 = arith.constant 0 : index
    %c0_0 = arith.constant 0 : index
    %0 = vector.load %arg1[%c0, %c0_0] : memref<8x186xf32, #tpu.memory_space<vmem>>, vector<8x186xf32>
    %1 = arith.truncf %0 : vector<8x186xf32> to vector<8x186xbf16>
    %c0_1 = arith.constant 0 : index
    %c0_2 = arith.constant 0 : index
    %2 = vector.load %arg2[%c0_1, %c0_2] : memref<186x768xbf16, #tpu.memory_space<vmem>>, vector<186x768xbf16>
    %cst = arith.constant dense<0.000000e+00> : vector<8x768xf32>
    %3 = tpu.matmul %1, %2, %cst {dimension_numbers = #tpu.dot_dimension_numbers<[1], [0], [0], [1], [0, 0, 1, 1], [], []>} : vector<8x186xbf16>, vector<186x768xbf16>, vector<8x768xf32> -> vector<8x768xf32>
    %c0_3 = arith.constant 0 : index
    %c0_4 = arith.constant 0 : index
    %4 = vector.load %arg3[%c0_3, %c0_4] : memref<1x768xf32, #tpu.memory_space<vmem>>, vector<1x768xf32>
    %5 = vector.broadcast %4 : vector<1x768xf32> to vector<8x768xf32>
    %6 = arith.addf %3, %5 : vector<8x768xf32>
    %cst_5 = arith.constant 0.000000e+00 : f32
    %7 = vector.broadcast %cst_5 : f32 to vector<8x768xf32>
    %8 = arith.maximumf %6, %7 : vector<8x768xf32>
    %9 = arith.truncf %8 : vector<8x768xf32> to vector<8x768xbf16>
    %c0_6 = arith.constant 0 : index
    %c0_7 = arith.constant 0 : index
    %10 = vector.load %arg4[%c0_6, %c0_7] : memref<768x768xbf16, #tpu.memory_space<vmem>>, vector<768x768xbf16>
    %cst_8 = arith.constant dense<0.000000e+00> : vector<8x768xf32>
    %11 = tpu.matmul %9, %10, %cst_8 {dimension_numbers = #tpu.dot_dimension_numbers<[1], [0], [0], [1], [0, 0, 1, 1], [], []>} : vector<8x768xbf16>, vector<768x768xbf16>, vector<8x768xf32> -> vector<8x768xf32>
    %c0_9 = arith.constant 0 : index
    %c0_10 = arith.constant 0 : index
    %12 = vector.load %arg5[%c0_9, %c0_10] : memref<1x768xf32, #tpu.memory_space<vmem>>, vector<1x768xf32>
    %13 = vector.broadcast %12 : vector<1x768xf32> to vector<8x768xf32>
    %14 = arith.addf %11, %13 : vector<8x768xf32>
    %cst_11 = arith.constant 0.000000e+00 : f32
    %15 = vector.broadcast %cst_11 : f32 to vector<8x768xf32>
    %16 = arith.maximumf %14, %15 : vector<8x768xf32>
    %17 = arith.truncf %16 : vector<8x768xf32> to vector<8x768xbf16>
    %c0_12 = arith.constant 0 : index
    %c0_13 = arith.constant 0 : index
    %18 = vector.load %arg6[%c0_12, %c0_13] : memref<768x64xbf16, #tpu.memory_space<vmem>>, vector<768x64xbf16>
    %cst_14 = arith.constant dense<0.000000e+00> : vector<8x64xf32>
    %19 = tpu.matmul %17, %18, %cst_14 {dimension_numbers = #tpu.dot_dimension_numbers<[1], [0], [0], [1], [0, 0, 1, 1], [], []>} : vector<8x768xbf16>, vector<768x64xbf16>, vector<8x64xf32> -> vector<8x64xf32>
    %c0_15 = arith.constant 0 : index
    %c0_16 = arith.constant 0 : index
    %20 = vector.load %arg7[%c0_15, %c0_16] : memref<186x64xbf16, #tpu.memory_space<vmem>>, vector<186x64xbf16>
    %cst_17 = arith.constant dense<0.000000e+00> : vector<8x64xf32>
    %21 = tpu.matmul %1, %20, %cst_17 {dimension_numbers = #tpu.dot_dimension_numbers<[1], [0], [0], [1], [0, 0, 1, 1], [], []>} : vector<8x186xbf16>, vector<186x64xbf16>, vector<8x64xf32> -> vector<8x64xf32>
    %22 = arith.addf %19, %21 : vector<8x64xf32>
    %c0_18 = arith.constant 0 : index
    %c0_19 = arith.constant 0 : index
    %23 = vector.load %arg8[%c0_18, %c0_19] : memref<1x64xf32, #tpu.memory_space<vmem>>, vector<1x64xf32>
    %24 = vector.broadcast %23 : vector<1x64xf32> to vector<8x64xf32>
    %25 = arith.addf %22, %24 : vector<8x64xf32>
    %cst_20 = arith.constant 0.000000e+00 : f32
    %26 = vector.broadcast %cst_20 : f32 to vector<8x64xf32>
    %27 = arith.maximumf %25, %26 : vector<8x64xf32>
    %28 = arith.truncf %27 : vector<8x64xf32> to vector<8x64xbf16>
    %c0_21 = arith.constant 0 : index
    %c0_22 = arith.constant 0 : index
    %29 = vector.load %arg9[%c0_21, %c0_22] : memref<64x32xbf16, #tpu.memory_space<vmem>>, vector<64x32xbf16>
    %cst_23 = arith.constant dense<0.000000e+00> : vector<8x32xf32>
    %30 = tpu.matmul %28, %29, %cst_23 {dimension_numbers = #tpu.dot_dimension_numbers<[1], [0], [0], [1], [0, 0, 1, 1], [], []>} : vector<8x64xbf16>, vector<64x32xbf16>, vector<8x32xf32> -> vector<8x32xf32>
    %c0_24 = arith.constant 0 : index
    %c0_25 = arith.constant 0 : index
    %31 = vector.load %arg10[%c0_24, %c0_25] : memref<1x32xf32, #tpu.memory_space<vmem>>, vector<1x32xf32>
    %32 = vector.broadcast %31 : vector<1x32xf32> to vector<8x32xf32>
    %33 = arith.addf %30, %32 : vector<8x32xf32>
    %34 = math.tanh %33 : vector<8x32xf32>
    %35 = arith.truncf %34 : vector<8x32xf32> to vector<8x32xbf16>
    %c0_26 = arith.constant 0 : index
    %c0_27 = arith.constant 0 : index
    %36 = vector.load %arg11[%c0_26, %c0_27] : memref<32x32xbf16, #tpu.memory_space<vmem>>, vector<32x32xbf16>
    %cst_28 = arith.constant dense<0.000000e+00> : vector<8x32xf32>
    %37 = tpu.matmul %35, %36, %cst_28 {dimension_numbers = #tpu.dot_dimension_numbers<[1], [0], [0], [1], [0, 0, 1, 1], [], []>} : vector<8x32xbf16>, vector<32x32xbf16>, vector<8x32xf32> -> vector<8x32xf32>
    %c0_29 = arith.constant 0 : index
    %c0_30 = arith.constant 0 : index
    %38 = vector.load %arg12[%c0_29, %c0_30] : memref<1x32xf32, #tpu.memory_space<vmem>>, vector<1x32xf32>
    %39 = vector.broadcast %38 : vector<1x32xf32> to vector<8x32xf32>
    %40 = arith.addf %37, %39 : vector<8x32xf32>
    %41 = math.tanh %40 : vector<8x32xf32>
    %42 = arith.truncf %41 : vector<8x32xf32> to vector<8x32xbf16>
    %c0_31 = arith.constant 0 : index
    %c0_32 = arith.constant 0 : index
    %43 = vector.load %arg13[%c0_31, %c0_32] : memref<32x2xbf16, #tpu.memory_space<vmem>>, vector<32x2xbf16>
    %cst_33 = arith.constant dense<0.000000e+00> : vector<8x2xf32>
    %44 = tpu.matmul %42, %43, %cst_33 {dimension_numbers = #tpu.dot_dimension_numbers<[1], [0], [0], [1], [0, 0, 1, 1], [], []>} : vector<8x32xbf16>, vector<32x2xbf16>, vector<8x2xf32> -> vector<8x2xf32>
    %c0_34 = arith.constant 0 : index
    %c0_35 = arith.constant 0 : index
    %45 = vector.load %arg14[%c0_34, %c0_35] : memref<1x2xf32, #tpu.memory_space<vmem>>, vector<1x2xf32>
    %46 = vector.broadcast %45 : vector<1x2xf32> to vector<8x2xf32>
    %47 = arith.addf %44, %46 : vector<8x2xf32>
    %48 = math.tanh %47 : vector<8x2xf32>
    %c0_36 = arith.constant 0 : index
    %c0_37 = arith.constant 0 : index
    %49 = vector.load %arg15[%c0_36, %c0_37] : memref<8x2xf32, #tpu.memory_space<vmem>>, vector<8x2xf32>
    tpu.vector_store %arg15[%c0_36, %c0_37], %48 {strides = array<i32>} : memref<8x2xf32, #tpu.memory_space<vmem>>, vector<8x2xf32>,
    return
  }
  func.func @transform_0(%arg0: i32) -> (i32, i32) {
    %c0_i32 = arith.constant 0 : i32
    %c0_i32_0 = arith.constant 0 : i32
    return %arg0, %c0_i32 : i32, i32
  }
  func.func @transform_1(%arg0: i32) -> (i32, i32) {
    %c0_i32 = arith.constant 0 : i32
    %c0_i32_0 = arith.constant 0 : i32
    %c0_i32_1 = arith.constant 0 : i32
    return %c0_i32, %c0_i32_0 : i32, i32
  }
  func.func @transform_2(%arg0: i32) -> (i32, i32) {
    %c0_i32 = arith.constant 0 : i32
    %c0_i32_0 = arith.constant 0 : i32
    %c0_i32_1 = arith.constant 0 : i32
    return %c0_i32, %c0_i32_0 : i32, i32
  }
  func.func @transform_3(%arg0: i32) -> (i32, i32) {
    %c0_i32 = arith.constant 0 : i32
    %c0_i32_0 = arith.constant 0 : i32
    %c0_i32_1 = arith.constant 0 : i32
    return %c0_i32, %c0_i32_0 : i32, i32
  }
  func.func @transform_4(%arg0: i32) -> (i32, i32) {
    %c0_i32 = arith.constant 0 : i32
    %c0_i32_0 = arith.constant 0 : i32
    %c0_i32_1 = arith.constant 0 : i32
    return %c0_i32, %c0_i32_0 : i32, i32
  }
  func.func @transform_5(%arg0: i32) -> (i32, i32) {
    %c0_i32 = arith.constant 0 : i32
    %c0_i32_0 = arith.constant 0 : i32
    %c0_i32_1 = arith.constant 0 : i32
    return %c0_i32, %c0_i32_0 : i32, i32
  }
  func.func @transform_6(%arg0: i32) -> (i32, i32) {
    %c0_i32 = arith.constant 0 : i32
    %c0_i32_0 = arith.constant 0 : i32
    %c0_i32_1 = arith.constant 0 : i32
    return %c0_i32, %c0_i32_0 : i32, i32
  }
  func.func @transform_7(%arg0: i32) -> (i32, i32) {
    %c0_i32 = arith.constant 0 : i32
    %c0_i32_0 = arith.constant 0 : i32
    %c0_i32_1 = arith.constant 0 : i32
    return %c0_i32, %c0_i32_0 : i32, i32
  }
  func.func @transform_8(%arg0: i32) -> (i32, i32) {
    %c0_i32 = arith.constant 0 : i32
    %c0_i32_0 = arith.constant 0 : i32
    %c0_i32_1 = arith.constant 0 : i32
    return %c0_i32, %c0_i32_0 : i32, i32
  }
  func.func @transform_9(%arg0: i32) -> (i32, i32) {
    %c0_i32 = arith.constant 0 : i32
    %c0_i32_0 = arith.constant 0 : i32
    %c0_i32_1 = arith.constant 0 : i32
    return %c0_i32, %c0_i32_0 : i32, i32
  }
  func.func @transform_10(%arg0: i32) -> (i32, i32) {
    %c0_i32 = arith.constant 0 : i32
    %c0_i32_0 = arith.constant 0 : i32
    %c0_i32_1 = arith.constant 0 : i32
    return %c0_i32, %c0_i32_0 : i32, i32
  }
  func.func @transform_11(%arg0: i32) -> (i32, i32) {
    %c0_i32 = arith.constant 0 : i32
    %c0_i32_0 = arith.constant 0 : i32
    %c0_i32_1 = arith.constant 0 : i32
    return %c0_i32, %c0_i32_0 : i32, i32
  }
  func.func @transform_12(%arg0: i32) -> (i32, i32) {
    %c0_i32 = arith.constant 0 : i32
    %c0_i32_0 = arith.constant 0 : i32
    %c0_i32_1 = arith.constant 0 : i32
    return %c0_i32, %c0_i32_0 : i32, i32
  }
  func.func @transform_13(%arg0: i32) -> (i32, i32) {
    %c0_i32 = arith.constant 0 : i32
    %c0_i32_0 = arith.constant 0 : i32
    %c0_i32_1 = arith.constant 0 : i32
    return %c0_i32, %c0_i32_0 : i32, i32
  }
  func.func @transform_14(%arg0: i32) -> (i32, i32) {
    %c0_i32 = arith.constant 0 : i32
    %c0_i32_0 = arith.constant 0 : i32
    return %arg0, %c0_i32 : i32, i32
  }
}

</mosaic_0001>

<llo_original>
// kernel: combined_actor_forward.1
$region0: #{combined_actor_forward.1}
  #allocation0 [shape = 'u32[]', space=smem, size = 0x4, offset = 0x4, fixed_abs, tag = 'smem constant byte address 0x4 - core index']
  #allocation1 [shape = 'u32[144,128]{1,0:T(1,128)}', space=vmem, size = 0x12000, scoped, tag = 'internal scratch']
  %s0 = inlined_call_operand.vmem [shape: f32[8,186], index: 0, kind: input, shape index: {}]
  %s1 = inlined_call_operand.hbm [shape: bf16[186,768], index: 1, kind: input, shape index: {}]
  %s2 = inlined_call_operand.hbm [shape: f32[1,768], index: 2, kind: input, shape index: {}]
  %s3 = inlined_call_operand.hbm [shape: bf16[768,768], index: 3, kind: input, shape index: {}]
  %s4 = inlined_call_operand.hbm [shape: f32[1,768], index: 4, kind: input, shape index: {}]
  %s5 = inlined_call_operand.vmem [shape: bf16[768,64], index: 5, kind: input, shape index: {}]
  %s6 = inlined_call_operand.vmem [shape: bf16[186,64], index: 6, kind: input, shape index: {}]
  %s7 = inlined_call_operand.hbm [shape: f32[1,64], index: 7, kind: input, shape index: {}]
  %s8 = inlined_call_operand.vmem [shape: bf16[64,32], index: 8, kind: input, shape index: {}]
  %s9 = inlined_call_operand.hbm [shape: f32[1,32], index: 9, kind: input, shape index: {}]
  %s10 = inlined_call_operand.hbm [shape: bf16[32,32], index: 10, kind: input, shape index: {}]
  %s11 = inlined_call_operand.hbm [shape: f32[1,32], index: 11, kind: input, shape index: {}]
  %s12 = inlined_call_operand.vmem [shape: bf16[32,2], index: 12, kind: input, shape index: {}]
  %s13 = inlined_call_operand.hbm [shape: f32[1,2], index: 13, kind: input, shape index: {}]
  %s14 = inlined_call_operand.vmem [shape: f32[8,2], index: 14, kind: output, shape index: {}]
  %s15 = sld [smem:[#allocation0]]
  $region102: #{combined_actor_forward.1} parent=0
    _
  %s17 = ssub.s32 1, %s15
  %s18 = scalar_select 0, %s17, %s15
  $region1: #{combined_actor_forward.1} parent=0
    #allocation2 [shape = 'u8[294912]{0}', space=vmem, size = 0x48000, scoped, tag = 'input window, operand 1, single buffered']
    #allocation3 [shape = 's32[1]{0}', space=sflag, size = 0x4, scoped, tag = 'scoped memory for combined_actor_forward.1']
    #allocation4 [shape = 'u8[3072]{0}', space=vmem, size = 0xc00, scoped, tag = 'input window, operand 2, single buffered']
    #allocation5 [shape = 's32[1]{0}', space=sflag, size = 0x4, scoped, tag = 'scoped memory for combined_actor_forward.1']
    #allocation6 [shape = 'u8[1179648]{0}', space=vmem, size = 0x120000, scoped, tag = 'input window, operand 3, single buffered']
    #allocation7 [shape = 'u8[3072]{0}', space=vmem, size = 0xc00, scoped, tag = 'input window, operand 4, single buffered']
    #allocation8 [shape = 's32[1]{0}', space=sflag, size = 0x4, scoped, tag = 'scoped memory for combined_actor_forward.1']
    #allocation9 [shape = 'u8[512]{0}', space=vmem, size = 0x400, scoped, tag = 'input window, operand 7, single buffered']
    #allocation10 [shape = 'u8[512]{0}', space=vmem, size = 0x400, scoped, tag = 'input window, operand 9, single buffered']
    #allocation11 [shape = 's32[1]{0}', space=sflag, size = 0x4, scoped, tag = 'scoped memory for combined_actor_forward.1']
    #allocation12 [shape = 'u8[8192]{0}', space=vmem, size = 0x2000, scoped, tag = 'input window, operand 10, single buffered']
    #allocation13 [shape = 'u8[512]{0}', space=vmem, size = 0x400, scoped, tag = 'input window, operand 11, single buffered']
    #allocation14 [shape = 's32[1]{0}', space=sflag, size = 0x4, scoped, tag = 'scoped memory for combined_actor_forward.1']
    #allocation15 [shape = 'u8[512]{0}', space=vmem, size = 0x400, scoped, tag = 'input window, operand 13, single buffered']
    %19 = vsyncpa [#allocation3], 0
    %20 = vsyncpa [#allocation5], 0
    %21 = vsyncpa [#allocation8], 0
    %22 = vsyncpa [#allocation11], 0
    %23 = vsyncpa [#allocation14], 0
    // Predicated region
    $region2: #{combined_actor_forward.1} parent=1 // pred_check
      _
    $region3: #{combined_actor_forward.1} parent=1 // pred_check_branch
      %25 = sbr.rel (0) target = $region5
    $region4: #{combined_actor_forward.1} parent=1 // pred_region
      _
    $region5: #{combined_actor_forward.1} parent=1 // pred_fallthru
      _
    // Predicated region
    $region6: #{combined_actor_forward.1} parent=1 // pred_check
      _
    $region7: #{combined_actor_forward.1} parent=1 // pred_check_branch
      %27 = sbr.rel (0) target = $region9
    $region8: #{combined_actor_forward.1} parent=1 // pred_region
      %s29 = ssub.s32 9216, 9216
      %30 = vsyncadd [#allocation3], %s29
      %s31 = sshll.u32 [#allocation2], 4
      %s32 = int_to_ptr.vmem [resolvable:$true] %s31
      %37 = dma.hbm_to_vmem [thread:$0]  %s1, 9216, %s32, [#allocation3], 384, 384, 24
    $region9: #{combined_actor_forward.1} parent=1 // pred_fallthru
      _
    // Predicated region
    $region10: #{combined_actor_forward.1} parent=1 // pred_check
      _
    $region11: #{combined_actor_forward.1} parent=1 // pred_check_branch
      %39 = sbr.rel (0) target = $region13
    $region12: #{combined_actor_forward.1} parent=1 // pred_region
      %s41 = ssub.s32 96, 96
      %42 = vsyncadd [#allocation5], %s41
      %s44 = sshll.u32 [#allocation4], 4
      %s45 = int_to_ptr.vmem [resolvable:$true] %s44
      %47 = dma.hbm_to_vmem [thread:$0]  %s2, 96, %s45, [#allocation5]
    $region13: #{combined_actor_forward.1} parent=1 // pred_fallthru
      _
    // Predicated region
    $region14: #{combined_actor_forward.1} parent=1 // pred_check
      _
    $region15: #{combined_actor_forward.1} parent=1 // pred_check_branch
      %49 = sbr.rel (0) target = $region17
    $region16: #{combined_actor_forward.1} parent=1 // pred_region
      %s51 = ssub.s32 36864, 36864
      %52 = vsyncadd [#allocation5], %s51
      %s53 = sshll.u32 [#allocation6], 4
      %s54 = int_to_ptr.vmem [resolvable:$true] %s53
      %59 = dma.hbm_to_vmem [thread:$0]  %s3, 36864, %s54, [#allocation5], 384, 384, 24
    $region17: #{combined_actor_forward.1} parent=1 // pred_fallthru
      _
    // Predicated region
    $region18: #{combined_actor_forward.1} parent=1 // pred_check
      _
    $region19: #{combined_actor_forward.1} parent=1 // pred_check_branch
      %61 = sbr.rel (0) target = $region21
    $region20: #{combined_actor_forward.1} parent=1 // pred_region
      %s63 = ssub.s32 96, 96
      %64 = vsyncadd [#allocation8], %s63
      %s66 = sshll.u32 [#allocation7], 4
      %s67 = int_to_ptr.vmem [resolvable:$true] %s66
      %69 = dma.hbm_to_vmem [thread:$0]  %s4, 96, %s67, [#allocation8]
    $region21: #{combined_actor_forward.1} parent=1 // pred_fallthru
      _
    // Predicated region
    $region22: #{combined_actor_forward.1} parent=1 // pred_check
      _
    $region23: #{combined_actor_forward.1} parent=1 // pred_check_branch
      %71 = sbr.rel (0) target = $region25
    $region24: #{combined_actor_forward.1} parent=1 // pred_region
      _
    $region25: #{combined_actor_forward.1} parent=1 // pred_fallthru
      _
    // Predicated region
    $region26: #{combined_actor_forward.1} parent=1 // pred_check
      _
    $region27: #{combined_actor_forward.1} parent=1 // pred_check_branch
      %73 = sbr.rel (0) target = $region29
    $region28: #{combined_actor_forward.1} parent=1 // pred_region
      _
    $region29: #{combined_actor_forward.1} parent=1 // pred_fallthru
      _
    // Predicated region
    $region30: #{combined_actor_forward.1} parent=1 // pred_check
      _
    $region31: #{combined_actor_forward.1} parent=1 // pred_check_branch
      %75 = sbr.rel (0) target = $region33
    $region32: #{combined_actor_forward.1} parent=1 // pred_region
      %s77 = ssub.s32 16, 16
      %78 = vsyncadd [#allocation8], %s77
      %s80 = sshll.u32 [#allocation9], 4
      %s81 = int_to_ptr.vmem [resolvable:$true] %s80
      %83 = dma.hbm_to_vmem [thread:$0]  %s7, 16, %s81, [#allocation8]
    $region33: #{combined_actor_forward.1} parent=1 // pred_fallthru
      _
    // Predicated region
    $region34: #{combined_actor_forward.1} parent=1 // pred_check
      _
    $region35: #{combined_actor_forward.1} parent=1 // pred_check_branch
      %85 = sbr.rel (0) target = $region37
    $region36: #{combined_actor_forward.1} parent=1 // pred_region
      _
    $region37: #{combined_actor_forward.1} parent=1 // pred_fallthru
      _
    // Predicated region
    $region38: #{combined_actor_forward.1} parent=1 // pred_check
      _
    $region39: #{combined_actor_forward.1} parent=1 // pred_check_branch
      %87 = sbr.rel (0) target = $region41
    $region40: #{combined_actor_forward.1} parent=1 // pred_region
      %s89 = ssub.s32 16, 16
      %90 = vsyncadd [#allocation11], %s89
      %s92 = sshll.u32 [#allocation10], 4
      %s93 = int_to_ptr.vmem [resolvable:$true] %s92
      %95 = dma.hbm_to_vmem [thread:$0]  %s9, 16, %s93, [#allocation11]
    $region41: #{combined_actor_forward.1} parent=1 // pred_fallthru
      _
    // Predicated region
    $region42: #{combined_actor_forward.1} parent=1 // pred_check
      _
    $region43: #{combined_actor_forward.1} parent=1 // pred_check_branch
      %97 = sbr.rel (0) target = $region45
    $region44: #{combined_actor_forward.1} parent=1 // pred_region
      %s99 = ssub.s32 256, 256
      %100 = vsyncadd [#allocation11], %s99
      %s101 = sshll.u32 [#allocation12], 4
      %s102 = int_to_ptr.vmem [resolvable:$true] %s101
      %107 = dma.hbm_to_vmem [thread:$0]  %s10, 256, %s102, [#allocation11], 64, 64, 4
    $region45: #{combined_actor_forward.1} parent=1 // pred_fallthru
      _
    // Predicated region
    $region46: #{combined_actor_forward.1} parent=1 // pred_check
      _
    $region47: #{combined_actor_forward.1} parent=1 // pred_check_branch
      %109 = sbr.rel (0) target = $region49
    $region48: #{combined_actor_forward.1} parent=1 // pred_region
      %s111 = ssub.s32 16, 16
      %112 = vsyncadd [#allocation14], %s111
      %s114 = sshll.u32 [#allocation13], 4
      %s115 = int_to_ptr.vmem [resolvable:$true] %s114
      %117 = dma.hbm_to_vmem [thread:$0]  %s11, 16, %s115, [#allocation14]
    $region49: #{combined_actor_forward.1} parent=1 // pred_fallthru
      _
    // Predicated region
    $region50: #{combined_actor_forward.1} parent=1 // pred_check
      _
    $region51: #{combined_actor_forward.1} parent=1 // pred_check_branch
      %119 = sbr.rel (0) target = $region53
    $region52: #{combined_actor_forward.1} parent=1 // pred_region
      _
    $region53: #{combined_actor_forward.1} parent=1 // pred_fallthru
      _
    // Predicated region
    $region54: #{combined_actor_forward.1} parent=1 // pred_check
      _
    $region55: #{combined_actor_forward.1} parent=1 // pred_check_branch
      %121 = sbr.rel (0) target = $region57
    $region56: #{combined_actor_forward.1} parent=1 // pred_region
      %s123 = ssub.s32 16, 16
      %124 = vsyncadd [#allocation14], %s123
      %s126 = sshll.u32 [#allocation15], 4
      %s127 = int_to_ptr.vmem [resolvable:$true] %s126
      %129 = dma.hbm_to_vmem [thread:$0]  %s13, 16, %s127, [#allocation14]
    $region57: #{combined_actor_forward.1} parent=1 // pred_fallthru
      _
    // Predicated region
    $region58: #{combined_actor_forward.1} parent=1 // pred_check
      _
    $region59: #{combined_actor_forward.1} parent=1 // pred_check_branch
      %131 = sbr.rel (0) target = $region61
    $region60: #{combined_actor_forward.1} parent=1 // pred_region
      %132 = dma.done [#allocation3], 9216
    $region61: #{combined_actor_forward.1} parent=1 // pred_fallthru
      _
    // Predicated region
    $region62: #{combined_actor_forward.1} parent=1 // pred_check
      _
    $region63: #{combined_actor_forward.1} parent=1 // pred_check_branch
      %134 = sbr.rel (0) target = $region65
    $region64: #{combined_actor_forward.1} parent=1 // pred_region
      %135 = dma.done [#allocation5], 96
    $region65: #{combined_actor_forward.1} parent=1 // pred_fallthru
      _
    // Predicated region
    $region66: #{combined_actor_forward.1} parent=1 // pred_check
      _
    $region67: #{combined_actor_forward.1} parent=1 // pred_check_branch
      %137 = sbr.rel (0) target = $region69
    $region68: #{combined_actor_forward.1} parent=1 // pred_region
      %138 = dma.done [#allocation5], 36864
    $region69: #{combined_actor_forward.1} parent=1 // pred_fallthru
      _
    // Predicated region
    $region70: #{combined_actor_forward.1} parent=1 // pred_check
      _
    $region71: #{combined_actor_forward.1} parent=1 // pred_check_branch
      %140 = sbr.rel (0) target = $region73
    $region72: #{combined_actor_forward.1} parent=1 // pred_region
      %141 = dma.done [#allocation8], 96
    $region73: #{combined_actor_forward.1} parent=1 // pred_fallthru
      _
    // Predicated region
    $region74: #{combined_actor_forward.1} parent=1 // pred_check
      _
    $region75: #{combined_actor_forward.1} parent=1 // pred_check_branch
      %143 = sbr.rel (0) target = $region77
    $region76: #{combined_actor_forward.1} parent=1 // pred_region
      %144 = dma.done [#allocation8], 16
    $region77: #{combined_actor_forward.1} parent=1 // pred_fallthru
      _
    // Predicated region
    $region78: #{combined_actor_forward.1} parent=1 // pred_check
      _
    $region79: #{combined_actor_forward.1} parent=1 // pred_check_branch
      %146 = sbr.rel (0) target = $region81
    $region80: #{combined_actor_forward.1} parent=1 // pred_region
      %147 = dma.done [#allocation11], 16
    $region81: #{combined_actor_forward.1} parent=1 // pred_fallthru
      _
    // Predicated region
    $region82: #{combined_actor_forward.1} parent=1 // pred_check
      _
    $region83: #{combined_actor_forward.1} parent=1 // pred_check_branch
      %149 = sbr.rel (0) target = $region85
    $region84: #{combined_actor_forward.1} parent=1 // pred_region
      %150 = dma.done [#allocation11], 256
    $region85: #{combined_actor_forward.1} parent=1 // pred_fallthru
      _
    // Predicated region
    $region86: #{combined_actor_forward.1} parent=1 // pred_check
      _
    $region87: #{combined_actor_forward.1} parent=1 // pred_check_branch
      %152 = sbr.rel (0) target = $region89
    $region88: #{combined_actor_forward.1} parent=1 // pred_region
      %153 = dma.done [#allocation14], 16
    $region89: #{combined_actor_forward.1} parent=1 // pred_fallthru
      _
    // Predicated region
    $region90: #{combined_actor_forward.1} parent=1 // pred_check
      _
    $region91: #{combined_actor_forward.1} parent=1 // pred_check_branch
      %155 = sbr.rel (0) target = $region93
    $region92: #{combined_actor_forward.1} parent=1 // pred_region
      %156 = dma.done [#allocation14], 16
    $region93: #{combined_actor_forward.1} parent=1 // pred_fallthru
      _
    %v158 = vld [vmem:[%s0] sm:$0xff]
    %v159 = vld [vmem:[%s0 + $0x8] sm:$0xff]
    %v160 = vpack.c.bf16 %v158, %v158
    %v161 = vpack.c.bf16 %v159, %v159
    %v162 = vld [vmem:[#allocation2] sm:$0xff]
    %v163 = vld [vmem:[#allocation2 + $0x8] sm:$0xff]
    %v164 = vld [vmem:[#allocation2 + $0x10] sm:$0xff]
    %v165 = vld [vmem:[#allocation2 + $0x18] sm:$0xff]
    %v166 = vld [vmem:[#allocation2 + $0x20] sm:$0xff]
    %v167 = vld [vmem:[#allocation2 + $0x28] sm:$0xff]
    %v168 = vld [vmem:[#allocation2 + $0x30] sm:$0xff]
    %v169 = vld [vmem:[#allocation2 + $0x38] sm:$0xff]
    %v170 = vld [vmem:[#allocation2 + $0x40] sm:$0xff]
    %v171 = vld [vmem:[#allocation2 + $0x48] sm:$0xff]
    %v172 = vld [vmem:[#allocation2 + $0x50] sm:$0xff]
    %v173 = vld [vmem:[#allocation2 + $0x58] sm:$0xff]
    %v174 = vld [vmem:[#allocation2 + $0x60] sm:$0xff]
    %v175 = vld [vmem:[#allocation2 + $0x68] sm:$0xff]
    %v176 = vld [vmem:[#allocation2 + $0x70] sm:$0xff]
    %v177 = vld [vmem:[#allocation2 + $0x78] sm:$0xff]
    %v178 = vld [vmem:[#allocation2 + $0x80] sm:$0xff]
    %v179 = vld [vmem:[#allocation2 + $0x88] sm:$0xff]
    %v180 = vld [vmem:[#allocation2 + $0x90] sm:$0xff]
    %v181 = vld [vmem:[#allocation2 + $0x98] sm:$0xff]
    %v182 = vld [vmem:[#allocation2 + $0xa0] sm:$0xff]
    %v183 = vld [vmem:[#allocation2 + $0xa8] sm:$0xff]
    %v184 = vld [vmem:[#allocation2 + $0xb0] sm:$0xff]
    %v185 = vld [vmem:[#allocation2 + $0xb8] sm:$0xff]
    %v186 = vld [vmem:[#allocation2 + $0xc0] sm:$0xff]
    %v187 = vld [vmem:[#allocation2 + $0xc8] sm:$0xff]
    %v188 = vld [vmem:[#allocation2 + $0xd0] sm:$0xff]
    %v189 = vld [vmem:[#allocation2 + $0xd8] sm:$0xff]
    %v190 = vld [vmem:[#allocation2 + $0xe0] sm:$0xff]
    %v191 = vld [vmem:[#allocation2 + $0xe8] sm:$0xff]
    %v192 = vld [vmem:[#allocation2 + $0xf0] sm:$0xff]
    %v193 = vld [vmem:[#allocation2 + $0xf8] sm:$0xff]
    %v194 = vld [vmem:[#allocation2 + $0x100] sm:$0xff]
    %v195 = vld [vmem:[#allocation2 + $0x108] sm:$0xff]
    %v196 = vld [vmem:[#allocation2 + $0x110] sm:$0xff]
    %v197 = vld [vmem:[#allocation2 + $0x118] sm:$0xff]
    %v198 = vld [vmem:[#allocation2 + $0x120] sm:$0xff]
    %v199 = vld [vmem:[#allocation2 + $0x128] sm:$0xff]
    %v200 = vld [vmem:[#allocation2 + $0x130] sm:$0xff]
    %v201 = vld [vmem:[#allocation2 + $0x138] sm:$0xff]
    %v202 = vld [vmem:[#allocation2 + $0x140] sm:$0xff]
    %v203 = vld [vmem:[#allocation2 + $0x148] sm:$0xff]
    %v204 = vld [vmem:[#allocation2 + $0x150] sm:$0xff]
    %v205 = vld [vmem:[#allocation2 + $0x158] sm:$0xff]
    %v206 = vld [vmem:[#allocation2 + $0x160] sm:$0xff]
    %v207 = vld [vmem:[#allocation2 + $0x168] sm:$0xff]
    %v208 = vld [vmem:[#allocation2 + $0x170] sm:$0xff]
    %v209 = vld [vmem:[#allocation2 + $0x178] sm:$0xff]
    %v210 = vld [vmem:[#allocation2 + $0x180] sm:$0xff]
    %v211 = vld [vmem:[#allocation2 + $0x188] sm:$0xff]
    %v212 = vld [vmem:[#allocation2 + $0x190] sm:$0xff]
    %v213 = vld [vmem:[#allocation2 + $0x198] sm:$0xff]
    %v214 = vld [vmem:[#allocation2 + $0x1a0] sm:$0xff]
    %v215 = vld [vmem:[#allocation2 + $0x1a8] sm:$0xff]
    %v216 = vld [vmem:[#allocation2 + $0x1b0] sm:$0xff]
    %v217 = vld [vmem:[#allocation2 + $0x1b8] sm:$0xff]
    %v218 = vld [vmem:[#allocation2 + $0x1c0] sm:$0xff]
    %v219 = vld [vmem:[#allocation2 + $0x1c8] sm:$0xff]
    %v220 = vld [vmem:[#allocation2 + $0x1d0] sm:$0xff]
    %v221 = vld [vmem:[#allocation2 + $0x1d8] sm:$0xff]
    %v222 = vld [vmem:[#allocation2 + $0x1e0] sm:$0xff]
    %v223 = vld [vmem:[#allocation2 + $0x1e8] sm:$0xff]
    %v224 = vld [vmem:[#allocation2 + $0x1f0] sm:$0xff]
    %v225 = vld [vmem:[#allocation2 + $0x1f8] sm:$0xff]
    %v226 = vld [vmem:[#allocation2 + $0x200] sm:$0xff]
    %v227 = vld [vmem:[#allocation2 + $0x208] sm:$0xff]
    %v228 = vld [vmem:[#allocation2 + $0x210] sm:$0xff]
    %v229 = vld [vmem:[#allocation2 + $0x218] sm:$0xff]
    %v230 = vld [vmem:[#allocation2 + $0x220] sm:$0xff]
    %v231 = vld [vmem:[#allocation2 + $0x228] sm:$0x11]
    %v232 = vld [vmem:[#allocation2 + $0x230] sm:$0x11]
    %v233 = vld [vmem:[#allocation2 + $0x238] sm:$0x11]
    %v234 = vld [vmem:[#allocation4] sm:$0x3f]
    %v236 = vlaneseq
    %v237 = vshrl.u32 %v236, 7
    %v238 = vsub.s32 0, %v237
    %v239 = vrot.slane %v234, %v238
    %v240 = vlaneseq
    %v241 = vshrl.u32 %v240, 7
    %v242 = vsub.s32 1, %v241
    %v243 = vrot.slane %v234, %v242
    %v244 = vlaneseq
    %v245 = vshrl.u32 %v244, 7
    %v246 = vsub.s32 2, %v245
    %v247 = vrot.slane %v234, %v246
    %v248 = vlaneseq
    %v249 = vshrl.u32 %v248, 7
    %v250 = vsub.s32 3, %v249
    %v251 = vrot.slane %v234, %v250
    %v252 = vlaneseq
    %v253 = vshrl.u32 %v252, 7
    %v254 = vsub.s32 4, %v253
    %v255 = vrot.slane %v234, %v254
    %v256 = vlaneseq
    %v257 = vshrl.u32 %v256, 7
    %v258 = vsub.s32 5, %v257
    %v259 = vrot.slane %v234, %v258
    %v338 = vunpack.c.l.b16 %v162
    %v339 = vunpack.c.h.b16 %v162
    %v340 = vunpack.c.l.b16 %v163
    %v341 = vunpack.c.h.b16 %v163
    %v342 = vunpack.c.l.b16 %v164
    %v343 = vunpack.c.h.b16 %v164
    %v344 = vunpack.c.l.b16 %v165
    %v345 = vunpack.c.h.b16 %v165
    %v346 = vunpack.c.l.b16 %v166
    %v347 = vunpack.c.h.b16 %v166
    %v348 = vunpack.c.l.b16 %v167
    %v349 = vunpack.c.h.b16 %v167
    %v350 = vunpack.c.l.b16 %v168
    %v351 = vunpack.c.h.b16 %v168
    %v352 = vunpack.c.l.b16 %v169
    %v353 = vunpack.c.h.b16 %v169
    %v354 = vunpack.c.l.b16 %v170
    %v355 = vunpack.c.h.b16 %v170
    %v356 = vunpack.c.l.b16 %v171
    %v357 = vunpack.c.h.b16 %v171
    %v358 = vunpack.c.l.b16 %v172
    %v359 = vunpack.c.h.b16 %v172
    %v360 = vunpack.c.l.b16 %v173
    %v361 = vunpack.c.h.b16 %v173
    %v362 = vunpack.c.l.b16 %v174
    %v363 = vunpack.c.h.b16 %v174
    %v364 = vunpack.c.l.b16 %v175
    %v365 = vunpack.c.h.b16 %v175
    %v366 = vunpack.c.l.b16 %v176
    %v367 = vunpack.c.h.b16 %v176
    %v368 = vunpack.c.l.b16 %v177
    %v369 = vunpack.c.h.b16 %v177
    %v370 = vunpack.c.l.b16 %v178
    %v371 = vunpack.c.h.b16 %v178
    %v372 = vunpack.c.l.b16 %v179
    %v373 = vunpack.c.h.b16 %v179
    %v374 = vunpack.c.l.b16 %v180
    %v375 = vunpack.c.h.b16 %v180
    %v376 = vunpack.c.l.b16 %v181
    %v377 = vunpack.c.h.b16 %v181
    %v378 = vunpack.c.l.b16 %v182
    %v379 = vunpack.c.h.b16 %v182
    %v380 = vunpack.c.l.b16 %v183
    %v381 = vunpack.c.h.b16 %v183
    %v382 = vunpack.c.l.b16 %v184
    %v383 = vunpack.c.h.b16 %v184
    %v384 = vunpack.c.l.b16 %v185
    %v385 = vunpack.c.h.b16 %v185
    %v386 = vunpack.c.l.b16 %v186
    %v387 = vunpack.c.h.b16 %v186
    %v388 = vunpack.c.l.b16 %v187
    %v389 = vunpack.c.h.b16 %v187
    %v390 = vunpack.c.l.b16 %v188
    %v391 = vunpack.c.h.b16 %v188
    %v392 = vunpack.c.l.b16 %v189
    %v393 = vunpack.c.h.b16 %v189
    %v394 = vunpack.c.l.b16 %v190
    %v395 = vunpack.c.h.b16 %v190
    %v396 = vunpack.c.l.b16 %v191
    %v397 = vunpack.c.h.b16 %v191
    %v398 = vunpack.c.l.b16 %v192
    %v399 = vunpack.c.h.b16 %v192
    %v400 = vunpack.c.l.b16 %v193
    %v401 = vunpack.c.h.b16 %v193
    %v402 = vunpack.c.l.b16 %v194
    %v403 = vunpack.c.h.b16 %v194
    %v404 = vunpack.c.l.b16 %v195
    %v405 = vunpack.c.h.b16 %v195
    %v406 = vunpack.c.l.b16 %v196
    %v407 = vunpack.c.h.b16 %v196
    %v408 = vunpack.c.l.b16 %v197
    %v409 = vunpack.c.h.b16 %v197
    %v410 = vunpack.c.l.b16 %v198
    %v411 = vunpack.c.h.b16 %v198
    %v412 = vunpack.c.l.b16 %v199
    %v413 = vunpack.c.h.b16 %v199
    %v414 = vunpack.c.l.b16 %v200
    %v415 = vunpack.c.h.b16 %v200
    %v416 = vunpack.c.l.b16 %v201
    %v417 = vunpack.c.h.b16 %v201
    %v418 = vunpack.c.l.b16 %v202
    %v419 = vunpack.c.h.b16 %v202
    %v420 = vunpack.c.l.b16 %v203
    %v421 = vunpack.c.h.b16 %v203
    %v422 = vunpack.c.l.b16 %v204
    %v423 = vunpack.c.h.b16 %v204
    %v424 = vunpack.c.l.b16 %v205
    %v425 = vunpack.c.h.b16 %v205
    %v426 = vunpack.c.l.b16 %v206
    %v427 = vunpack.c.h.b16 %v206
    %v428 = vunpack.c.l.b16 %v207
    %v429 = vunpack.c.h.b16 %v207
    %v430 = vunpack.c.l.b16 %v208
    %v431 = vunpack.c.h.b16 %v208
    %v432 = vunpack.c.l.b16 %v209
    %v433 = vunpack.c.h.b16 %v209
    %v434 = vunpack.c.l.b16 %v210
    %v435 = vunpack.c.h.b16 %v210
    %v436 = vunpack.c.l.b16 %v211
    %v437 = vunpack.c.h.b16 %v211
    %v438 = vunpack.c.l.b16 %v212
    %v439 = vunpack.c.h.b16 %v212
    %v440 = vunpack.c.l.b16 %v213
    %v441 = vunpack.c.h.b16 %v213
    %v442 = vunpack.c.l.b16 %v214
    %v443 = vunpack.c.h.b16 %v214
    %v444 = vunpack.c.l.b16 %v215
    %v445 = vunpack.c.h.b16 %v215
    %v446 = vunpack.c.l.b16 %v216
    %v447 = vunpack.c.h.b16 %v216
    %v448 = vunpack.c.l.b16 %v217
    %v449 = vunpack.c.h.b16 %v217
    %v450 = vunpack.c.l.b16 %v218
    %v451 = vunpack.c.h.b16 %v218
    %v452 = vunpack.c.l.b16 %v219
    %v453 = vunpack.c.h.b16 %v219
    %v454 = vunpack.c.l.b16 %v220
    %v455 = vunpack.c.h.b16 %v220
    %v456 = vunpack.c.l.b16 %v221
    %v457 = vunpack.c.h.b16 %v221
    %v458 = vunpack.c.l.b16 %v222
    %v459 = vunpack.c.h.b16 %v222
    %v460 = vunpack.c.l.b16 %v223
    %v461 = vunpack.c.h.b16 %v223
    %v462 = vunpack.c.l.b16 %v224
    %v463 = vunpack.c.h.b16 %v224
    %v464 = vunpack.c.l.b16 %v225
    %v465 = vunpack.c.h.b16 %v225
    %v466 = vunpack.c.l.b16 %v226
    %v467 = vunpack.c.h.b16 %v226
    %v468 = vunpack.c.l.b16 %v227
    %v469 = vunpack.c.h.b16 %v227
    %v470 = vunpack.c.l.b16 %v228
    %v471 = vunpack.c.h.b16 %v228
    %v472 = vunpack.c.l.b16 %v229
    %v473 = vunpack.c.h.b16 %v229
    %v474 = vunpack.c.l.b16 %v230
    %v475 = vunpack.c.h.b16 %v230
    %v476 = vunpack.c.l.b16 %v231
    %v477 = vunpack.c.h.b16 %v231
    %v478 = vunpack.c.l.b16 %v232
    %v479 = vunpack.c.h.b16 %v232
    %v480 = vunpack.c.l.b16 %v233
    %v481 = vunpack.c.h.b16 %v233
    %v482 = vpack.c.b16 %v344, %v338
    %v483 = vpack.c.b16 %v345, %v339
    %v484 = vpack.c.b16 %v346, %v340
    %v485 = vpack.c.b16 %v347, %v341
    %v486 = vpack.c.b16 %v348, %v342
    %v487 = vpack.c.b16 %v349, %v343
    %v488 = vpack.c.b16 %v356, %v350
    %v489 = vpack.c.b16 %v357, %v351
    %v490 = vpack.c.b16 %v358, %v352
    %v491 = vpack.c.b16 %v359, %v353
    %v492 = vpack.c.b16 %v360, %v354
    %v493 = vpack.c.b16 %v361, %v355
    %v494 = vpack.c.b16 %v368, %v362
    %v495 = vpack.c.b16 %v369, %v363
    %v496 = vpack.c.b16 %v370, %v364
    %v497 = vpack.c.b16 %v371, %v365
    %v498 = vpack.c.b16 %v372, %v366
    %v499 = vpack.c.b16 %v373, %v367
    %v500 = vpack.c.b16 %v380, %v374
    %v501 = vpack.c.b16 %v381, %v375
    %v502 = vpack.c.b16 %v382, %v376
    %v503 = vpack.c.b16 %v383, %v377
    %v504 = vpack.c.b16 %v384, %v378
    %v505 = vpack.c.b16 %v385, %v379
    %v506 = vpack.c.b16 %v392, %v386
    %v507 = vpack.c.b16 %v393, %v387
    %v508 = vpack.c.b16 %v394, %v388
    %v509 = vpack.c.b16 %v395, %v389
    %v510 = vpack.c.b16 %v396, %v390
    %v511 = vpack.c.b16 %v397, %v391
    %v512 = vpack.c.b16 %v404, %v398
    %v513 = vpack.c.b16 %v405, %v399
    %v514 = vpack.c.b16 %v406, %v400
    %v515 = vpack.c.b16 %v407, %v401
    %v516 = vpack.c.b16 %v408, %v402
    %v517 = vpack.c.b16 %v409, %v403
    %v518 = vpack.c.b16 %v416, %v410
    %v519 = vpack.c.b16 %v417, %v411
    %v520 = vpack.c.b16 %v418, %v412
    %v521 = vpack.c.b16 %v419, %v413
    %v522 = vpack.c.b16 %v420, %v414
    %v523 = vpack.c.b16 %v421, %v415
    %v524 = vpack.c.b16 %v428, %v422
    %v525 = vpack.c.b16 %v429, %v423
    %v526 = vpack.c.b16 %v430, %v424
    %v527 = vpack.c.b16 %v431, %v425
    %v528 = vpack.c.b16 %v432, %v426
    %v529 = vpack.c.b16 %v433, %v427
    %v530 = vpack.c.b16 %v440, %v434
    %v531 = vpack.c.b16 %v441, %v435
    %v532 = vpack.c.b16 %v442, %v436
    %v533 = vpack.c.b16 %v443, %v437
    %v534 = vpack.c.b16 %v444, %v438
    %v535 = vpack.c.b16 %v445, %v439
    %v536 = vpack.c.b16 %v452, %v446
    %v537 = vpack.c.b16 %v453, %v447
    %v538 = vpack.c.b16 %v454, %v448
    %v539 = vpack.c.b16 %v455, %v449
    %v540 = vpack.c.b16 %v456, %v450
    %v541 = vpack.c.b16 %v457, %v451
    %v542 = vpack.c.b16 %v464, %v458
    %v543 = vpack.c.b16 %v465, %v459
    %v544 = vpack.c.b16 %v466, %v460
    %v545 = vpack.c.b16 %v467, %v461
    %v546 = vpack.c.b16 %v468, %v462
    %v547 = vpack.c.b16 %v469, %v463
    %v548 = vpack.c.b16 %v476, %v470
    %v549 = vpack.c.b16 %v477, %v471
    %v550 = vpack.c.b16 %v478, %v472
    %v551 = vpack.c.b16 %v479, %v473
    %v552 = vpack.c.b16 %v480, %v474
    %v553 = vpack.c.b16 %v481, %v475
    %vm620 = vcmask 474112
    %v622 = vsel %vm620, %v161, 0
    %vm624 = vcmask 1044480
    %v626 = vsel %vm624, %v548, 0
    %v629 = vsel %vm624, %v549, 0
    %v632 = vsel %vm624, %v550, 0
    %v635 = vsel %vm624, %v551, 0
    %v638 = vsel %vm624, %v552, 0
    %v641 = vsel %vm624, %v553, 0
    %643 = vmatprep.subr.bf16.mxu0 %v483
    %644 = vmatpush1.bf16.msra.mxu0 %v482
    %645 = vmatprep.subr.bf16.mxu0 %v489
    %646 = vmatpush1.bf16.msra.mxu0 %v488
    %647 = vmatprep.subr.bf16.mxu0 %v495
    %648 = vmatpush1.bf16.msra.mxu0 %v494
    %649 = vmatprep.subr.bf16.mxu0 %v501
    %650 = vmatpush1.bf16.msra.mxu0 %v500
    %651 = vmatprep.subr.bf16.mxu0 %v507
    %652 = vmatpush1.bf16.msra.mxu0 %v506
    %653 = vmatprep.subr.bf16.mxu0 %v513
    %654 = vmatpush1.bf16.msra.mxu0 %v512
    %655 = vmatprep.subr.bf16.mxu0 %v519
    %656 = vmatpush1.bf16.msra.mxu0 %v518
    %657 = vmatprep.subr.bf16.mxu0 %v525
    %658 = vmatpush1.bf16.msra.mxu0 %v524
    %659 = vmatprep.subr.bf16.mxu0 %v531
    %660 = vmatpush1.bf16.msra.mxu0 %v530
    %661 = vmatprep.subr.bf16.mxu0 %v537
    %662 = vmatpush1.bf16.msra.mxu0 %v536
    %663 = vmatprep.subr.bf16.mxu0 %v543
    %664 = vmatpush1.bf16.msra.mxu0 %v542
    %665 = vmatprep.subr.bf16.mxu0 %v629
    %666 = vmatpush1.bf16.msra.mxu0 %v626
    %667 = vmatprep.subr.bf16.mxu0 0
    %668 = vmatpush1.bf16.msra.mxu0 0
    %669 = vmatprep.subr.bf16.mxu0 0
    %670 = vmatpush1.bf16.msra.mxu0 0
    %671 = vmatprep.subr.bf16.mxu0 0
    %672 = vmatpush1.bf16.msra.mxu0 0
    %673 = vmatprep.subr.bf16.mxu0 0
    %674 = vmatpush1.bf16.msra.mxu0 0
    %675 = vmatprep.mubr.bf16.mxu0 %v622
    %676 = vmatmul.mubr.bf16.gmra.mrb[0].mxu0 %v160
    %v677 = vpop.f32.mrb[0].mxu0
    %v678 = vadd.f32 %v239, %v677
    %v679 = vpop.f32.mrb[0].mxu0
    %v680 = vadd.f32 %v243, %v679
    %v681 = vpop.f32.mrb[0].mxu0
    %v682 = vpop.f32.mrb[0].mxu0
    %683 = vdwg.mxu0
    %684 = vmatprep.subr.bf16.mxu0 %v485
    %685 = vmatpush1.bf16.msra.mxu0 %v484
    %686 = vmatprep.subr.bf16.mxu0 %v491
    %687 = vmatpush1.bf16.msra.mxu0 %v490
    %688 = vmatprep.subr.bf16.mxu0 %v497
    %689 = vmatpush1.bf16.msra.mxu0 %v496
    %690 = vmatprep.subr.bf16.mxu0 %v503
    %691 = vmatpush1.bf16.msra.mxu0 %v502
    %692 = vmatprep.subr.bf16.mxu0 %v509
    %693 = vmatpush1.bf16.msra.mxu0 %v508
    %694 = vmatprep.subr.bf16.mxu0 %v515
    %695 = vmatpush1.bf16.msra.mxu0 %v514
    %696 = vmatprep.subr.bf16.mxu0 %v521
    %697 = vmatpush1.bf16.msra.mxu0 %v520
    %698 = vmatprep.subr.bf16.mxu0 %v527
    %699 = vmatpush1.bf16.msra.mxu0 %v526
    %700 = vmatprep.subr.bf16.mxu0 %v533
    %701 = vmatpush1.bf16.msra.mxu0 %v532
    %702 = vmatprep.subr.bf16.mxu0 %v539
    %703 = vmatpush1.bf16.msra.mxu0 %v538
    %704 = vmatprep.subr.bf16.mxu0 %v545
    %705 = vmatpush1.bf16.msra.mxu0 %v544
    %706 = vmatprep.subr.bf16.mxu0 %v635
    %707 = vmatpush1.bf16.msra.mxu0 %v632
    %708 = vmatprep.subr.bf16.mxu0 0
    %709 = vmatpush1.bf16.msra.mxu0 0
    %710 = vmatprep.subr.bf16.mxu0 0
    %711 = vmatpush1.bf16.msra.mxu0 0
    %712 = vmatprep.subr.bf16.mxu0 0
    %713 = vmatpush1.bf16.msra.mxu0 0
    %714 = vmatprep.subr.bf16.mxu0 0
    %715 = vmatpush1.bf16.msra.mxu0 0
    %716 = vmatprep.mubr.bf16.mxu0 %v622
    %717 = vmatmul.mubr.bf16.gmra.mrb[0].mxu0 %v160
    %v718 = vpop.f32.mrb[0].mxu0
    %v719 = vadd.f32 %v247, %v718
    %v720 = vpop.f32.mrb[0].mxu0
    %v721 = vadd.f32 %v251, %v720
    %v722 = vpop.f32.mrb[0].mxu0
    %v723 = vpop.f32.mrb[0].mxu0
    %724 = vdwg.mxu0
    %725 = vmatprep.subr.bf16.mxu0 %v487
    %726 = vmatpush1.bf16.msra.mxu0 %v486
    %727 = vmatprep.subr.bf16.mxu0 %v493
    %728 = vmatpush1.bf16.msra.mxu0 %v492
    %729 = vmatprep.subr.bf16.mxu0 %v499
    %730 = vmatpush1.bf16.msra.mxu0 %v498
    %731 = vmatprep.subr.bf16.mxu0 %v505
    %732 = vmatpush1.bf16.msra.mxu0 %v504
    %733 = vmatprep.subr.bf16.mxu0 %v511
    %734 = vmatpush1.bf16.msra.mxu0 %v510
    %735 = vmatprep.subr.bf16.mxu0 %v517
    %736 = vmatpush1.bf16.msra.mxu0 %v516
    %737 = vmatprep.subr.bf16.mxu0 %v523
    %738 = vmatpush1.bf16.msra.mxu0 %v522
    %739 = vmatprep.subr.bf16.mxu0 %v529
    %740 = vmatpush1.bf16.msra.mxu0 %v528
    %741 = vmatprep.subr.bf16.mxu0 %v535
    %742 = vmatpush1.bf16.msra.mxu0 %v534
    %743 = vmatprep.subr.bf16.mxu0 %v541
    %744 = vmatpush1.bf16.msra.mxu0 %v540
    %745 = vmatprep.subr.bf16.mxu0 %v547
    %746 = vmatpush1.bf16.msra.mxu0 %v546
    %747 = vmatprep.subr.bf16.mxu0 %v641
    %748 = vmatpush1.bf16.msra.mxu0 %v638
    %749 = vmatprep.subr.bf16.mxu0 0
    %750 = vmatpush1.bf16.msra.mxu0 0
    %751 = vmatprep.subr.bf16.mxu0 0
    %752 = vmatpush1.bf16.msra.mxu0 0
    %753 = vmatprep.subr.bf16.mxu0 0
    %754 = vmatpush1.bf16.msra.mxu0 0
    %755 = vmatprep.subr.bf16.mxu0 0
    %756 = vmatpush1.bf16.msra.mxu0 0
    %757 = vmatprep.mubr.bf16.mxu0 %v622
    %758 = vmatmul.mubr.bf16.gmra.mrb[0].mxu0 %v160
    %v759 = vpop.f32.mrb[0].mxu0
    %v760 = vadd.f32 %v255, %v759
    %v761 = vpop.f32.mrb[0].mxu0
    %v762 = vadd.f32 %v259, %v761
    %v763 = vpop.f32.mrb[0].mxu0
    %v764 = vpop.f32.mrb[0].mxu0
    %765 = vdwg.mxu0
    %v766 = vmax.f32 %v678, 0.0
    %v767 = vmax.f32 %v680, 0.0
    %v768 = vmax.f32 %v719, 0.0
    %v769 = vmax.f32 %v721, 0.0
    %v770 = vmax.f32 %v760, 0.0
    %v771 = vmax.f32 %v762, 0.0
    %v772 = vpack.c.bf16 %v766, %v766
    %v773 = vpack.c.bf16 %v767, %v767
    %v774 = vpack.c.bf16 %v768, %v768
    %v775 = vpack.c.bf16 %v769, %v769
    %v776 = vpack.c.bf16 %v770, %v770
    %v777 = vpack.c.bf16 %v771, %v771
    %v778 = vld [vmem:[#allocation6] sm:$0xff]
    %v779 = vld [vmem:[#allocation6 + $0x8] sm:$0xff]
    %v780 = vld [vmem:[#allocation6 + $0x10] sm:$0xff]
    %v781 = vld [vmem:[#allocation6 + $0x18] sm:$0xff]
    %v782 = vld [vmem:[#allocation6 + $0x20] sm:$0xff]
    %v783 = vld [vmem:[#allocation6 + $0x28] sm:$0xff]
    %v784 = vld [vmem:[#allocation6 + $0x30] sm:$0xff]
    %v785 = vld [vmem:[#allocation6 + $0x38] sm:$0xff]
    %v786 = vld [vmem:[#allocation6 + $0x40] sm:$0xff]
    %v787 = vld [vmem:[#allocation6 + $0x48] sm:$0xff]
    %v788 = vld [vmem:[#allocation6 + $0x50] sm:$0xff]
    %v789 = vld [vmem:[#allocation6 + $0x58] sm:$0xff]
    %v790 = vld [vmem:[#allocation6 + $0x60] sm:$0xff]
    %v791 = vld [vmem:[#allocation6 + $0x68] sm:$0xff]
    %v792 = vld [vmem:[#allocation6 + $0x70] sm:$0xff]
    %v793 = vld [vmem:[#allocation6 + $0x78] sm:$0xff]
    %v794 = vld [vmem:[#allocation6 + $0x80] sm:$0xff]
    %v795 = vld [vmem:[#allocation6 + $0x88] sm:$0xff]
    %v796 = vld [vmem:[#allocation6 + $0x90] sm:$0xff]
    %v797 = vld [vmem:[#allocation6 + $0x98] sm:$0xff]
    %v798 = vld [vmem:[#allocation6 + $0xa0] sm:$0xff]
    %v799 = vld [vmem:[#allocation6 + $0xa8] sm:$0xff]
    %v800 = vld [vmem:[#allocation6 + $0xb0] sm:$0xff]
    %v801 = vld [vmem:[#allocation6 + $0xb8] sm:$0xff]
    %v802 = vld [vmem:[#allocation6 + $0xc0] sm:$0xff]
    %v803 = vld [vmem:[#allocation6 + $0xc8] sm:$0xff]
    %v804 = vld [vmem:[#allocation6 + $0xd0] sm:$0xff]
    %v805 = vld [vmem:[#allocation6 + $0xd8] sm:$0xff]
    %v806 = vld [vmem:[#allocation6 + $0xe0] sm:$0xff]
    %v807 = vld [vmem:[#allocation6 + $0xe8] sm:$0xff]
    %v808 = vld [vmem:[#allocation6 + $0xf0] sm:$0xff]
    %v809 = vld [vmem:[#allocation6 + $0xf8] sm:$0xff]
    %v810 = vld [vmem:[#allocation6 + $0x100] sm:$0xff]
    %v811 = vld [vmem:[#allocation6 + $0x108] sm:$0xff]
    %v812 = vld [vmem:[#allocation6 + $0x110] sm:$0xff]
    %v813 = vld [vmem:[#allocation6 + $0x118] sm:$0xff]
    %v814 = vld [vmem:[#allocation6 + $0x120] sm:$0xff]
    %v815 = vld [vmem:[#allocation6 + $0x128] sm:$0xff]
    %v816 = vld [vmem:[#allocation6 + $0x130] sm:$0xff]
    %v817 = vld [vmem:[#allocation6 + $0x138] sm:$0xff]
    %v818 = vld [vmem:[#allocation6 + $0x140] sm:$0xff]
    %v819 = vld [vmem:[#allocation6 + $0x148] sm:$0xff]
    %v820 = vld [vmem:[#allocation6 + $0x150] sm:$0xff]
    %v821 = vld [vmem:[#allocation6 + $0x158] sm:$0xff]
    %v822 = vld [vmem:[#allocation6 + $0x160] sm:$0xff]
    %v823 = vld [vmem:[#allocation6 + $0x168] sm:$0xff]
    %v824 = vld [vmem:[#allocation6 + $0x170] sm:$0xff]
    %v825 = vld [vmem:[#allocation6 + $0x178] sm:$0xff]
    %v826 = vld [vmem:[#allocation6 + $0x180] sm:$0xff]
    %v827 = vld [vmem:[#allocation6 + $0x188] sm:$0xff]
    %v828 = vld [vmem:[#allocation6 + $0x190] sm:$0xff]
    %v829 = vld [vmem:[#allocation6 + $0x198] sm:$0xff]
    %v830 = vld [vmem:[#allocation6 + $0x1a0] sm:$0xff]
    %v831 = vld [vmem:[#allocation6 + $0x1a8] sm:$0xff]
    %v832 = vld [vmem:[#allocation6 + $0x1b0] sm:$0xff]
    %v833 = vld [vmem:[#allocation6 + $0x1b8] sm:$0xff]
    %v834 = vld [vmem:[#allocation6 + $0x1c0] sm:$0xff]
    %v835 = vld [vmem:[#allocation6 + $0x1c8] sm:$0xff]
    %v836 = vld [vmem:[#allocation6 + $0x1d0] sm:$0xff]
    %v837 = vld [vmem:[#allocation6 + $0x1d8] sm:$0xff]
    %v838 = vld [vmem:[#allocation6 + $0x1e0] sm:$0xff]
    %v839 = vld [vmem:[#allocation6 + $0x1e8] sm:$0xff]
    %v840 = vld [vmem:[#allocation6 + $0x1f0] sm:$0xff]
    %v841 = vld [vmem:[#allocation6 + $0x1f8] sm:$0xff]
    %v842 = vld [vmem:[#allocation6 + $0x200] sm:$0xff]
    %v843 = vld [vmem:[#allocation6 + $0x208] sm:$0xff]
    %v844 = vld [vmem:[#allocation6 + $0x210] sm:$0xff]
    %v845 = vld [vmem:[#allocation6 + $0x218] sm:$0xff]
    %v846 = vld [vmem:[#allocation6 + $0x220] sm:$0xff]
    %v847 = vld [vmem:[#allocation6 + $0x228] sm:$0xff]
    %v848 = vld [vmem:[#allocation6 + $0x230] sm:$0xff]
    %v849 = vld [vmem:[#allocation6 + $0x238] sm:$0xff]
    %v850 = vld [vmem:[#allocation6 + $0x240] sm:$0xff]
    %v851 = vld [vmem:[#allocation6 + $0x248] sm:$0xff]
    %v852 = vld [vmem:[#allocation6 + $0x250] sm:$0xff]
    %v853 = vld [vmem:[#allocation6 + $0x258] sm:$0xff]
    %v854 = vld [vmem:[#allocation6 + $0x260] sm:$0xff]
    %v855 = vld [vmem:[#allocation6 + $0x268] sm:$0xff]
    %v856 = vld [vmem:[#allocation6 + $0x270] sm:$0xff]
    %v857 = vld [vmem:[#allocation6 + $0x278] sm:$0xff]
    %v858 = vld [vmem:[#allocation6 + $0x280] sm:$0xff]
    %v859 = vld [vmem:[#allocation6 + $0x288] sm:$0xff]
    %v860 = vld [vmem:[#allocation6 + $0x290] sm:$0xff]
    %v861 = vld [vmem:[#allocation6 + $0x298] sm:$0xff]
    %v862 = vld [vmem:[#allocation6 + $0x2a0] sm:$0xff]
    %v863 = vld [vmem:[#allocation6 + $0x2a8] sm:$0xff]
    %v864 = vld [vmem:[#allocation6 + $0x2b0] sm:$0xff]
    %v865 = vld [vmem:[#allocation6 + $0x2b8] sm:$0xff]
    %v866 = vld [vmem:[#allocation6 + $0x2c0] sm:$0xff]
    %v867 = vld [vmem:[#allocation6 + $0x2c8] sm:$0xff]
    %v868 = vld [vmem:[#allocation6 + $0x2d0] sm:$0xff]
    %v869 = vld [vmem:[#allocation6 + $0x2d8] sm:$0xff]
    %v870 = vld [vmem:[#allocation6 + $0x2e0] sm:$0xff]
    %v871 = vld [vmem:[#allocation6 + $0x2e8] sm:$0xff]
    %v872 = vld [vmem:[#allocation6 + $0x2f0] sm:$0xff]
    %v873 = vld [vmem:[#allocation6 + $0x2f8] sm:$0xff]
    %v874 = vld [vmem:[#allocation6 + $0x300] sm:$0xff]
    %v875 = vld [vmem:[#allocation6 + $0x308] sm:$0xff]
    %v876 = vld [vmem:[#allocation6 + $0x310] sm:$0xff]
    %v877 = vld [vmem:[#allocation6 + $0x318] sm:$0xff]
    %v878 = vld [vmem:[#allocation6 + $0x320] sm:$0xff]
    %v879 = vld [vmem:[#allocation6 + $0x328] sm:$0xff]
    %v880 = vld [vmem:[#allocation6 + $0x330] sm:$0xff]
    %v881 = vld [vmem:[#allocation6 + $0x338] sm:$0xff]
    %v882 = vld [vmem:[#allocation6 + $0x340] sm:$0xff]
    %v883 = vld [vmem:[#allocation6 + $0x348] sm:$0xff]
    %v884 = vld [vmem:[#allocation6 + $0x350] sm:$0xff]
    %v885 = vld [vmem:[#allocation6 + $0x358] sm:$0xff]
    %v886 = vld [vmem:[#allocation6 + $0x360] sm:$0xff]
    %v887 = vld [vmem:[#allocation6 + $0x368] sm:$0xff]
    %v888 = vld [vmem:[#allocation6 + $0x370] sm:$0xff]
    %v889 = vld [vmem:[#allocation6 + $0x378] sm:$0xff]
    %v890 = vld [vmem:[#allocation6 + $0x380] sm:$0xff]
    %v891 = vld [vmem:[#allocation6 + $0x388] sm:$0xff]
    %v892 = vld [vmem:[#allocation6 + $0x390] sm:$0xff]
    %v893 = vld [vmem:[#allocation6 + $0x398] sm:$0xff]
    %v894 = vld [vmem:[#allocation6 + $0x3a0] sm:$0xff]
    %v895 = vld [vmem:[#allocation6 + $0x3a8] sm:$0xff]
    %v896 = vld [vmem:[#allocation6 + $0x3b0] sm:$0xff]
    %v897 = vld [vmem:[#allocation6 + $0x3b8] sm:$0xff]
    %v898 = vld [vmem:[#allocation6 + $0x3c0] sm:$0xff]
    %v899 = vld [vmem:[#allocation6 + $0x3c8] sm:$0xff]
    %v900 = vld [vmem:[#allocation6 + $0x3d0] sm:$0xff]
    %v901 = vld [vmem:[#allocation6 + $0x3d8] sm:$0xff]
    %v902 = vld [vmem:[#allocation6 + $0x3e0] sm:$0xff]
    %v903 = vld [vmem:[#allocation6 + $0x3e8] sm:$0xff]
    %v904 = vld [vmem:[#allocation6 + $0x3f0] sm:$0xff]
    %v905 = vld [vmem:[#allocation6 + $0x3f8] sm:$0xff]
    %v906 = vld [vmem:[#allocation6 + $0x400] sm:$0xff]
    %v907 = vld [vmem:[#allocation6 + $0x408] sm:$0xff]
    %v908 = vld [vmem:[#allocation6 + $0x410] sm:$0xff]
    %v909 = vld [vmem:[#allocation6 + $0x418] sm:$0xff]
    %v910 = vld [vmem:[#allocation6 + $0x420] sm:$0xff]
    %v911 = vld [vmem:[#allocation6 + $0x428] sm:$0xff]
    %v912 = vld [vmem:[#allocation6 + $0x430] sm:$0xff]
    %v913 = vld [vmem:[#allocation6 + $0x438] sm:$0xff]
    %v914 = vld [vmem:[#allocation6 + $0x440] sm:$0xff]
    %v915 = vld [vmem:[#allocation6 + $0x448] sm:$0xff]
    %v916 = vld [vmem:[#allocation6 + $0x450] sm:$0xff]
    %v917 = vld [vmem:[#allocation6 + $0x458] sm:$0xff]
    %v918 = vld [vmem:[#allocation6 + $0x460] sm:$0xff]
    %v919 = vld [vmem:[#allocation6 + $0x468] sm:$0xff]
    %v920 = vld [vmem:[#allocation6 + $0x470] sm:$0xff]
    %v921 = vld [vmem:[#allocation6 + $0x478] sm:$0xff]
    %v922 = vld [vmem:[#allocation6 + $0x480] sm:$0xff]
    %v923 = vld [vmem:[#allocation6 + $0x488] sm:$0xff]
    %v924 = vld [vmem:[#allocation6 + $0x490] sm:$0xff]
    %v925 = vld [vmem:[#allocation6 + $0x498] sm:$0xff]
    %v926 = vld [vmem:[#allocation6 + $0x4a0] sm:$0xff]
    %v927 = vld [vmem:[#allocation6 + $0x4a8] sm:$0xff]
    %v928 = vld [vmem:[#allocation6 + $0x4b0] sm:$0xff]
    %v929 = vld [vmem:[#allocation6 + $0x4b8] sm:$0xff]
    %v930 = vld [vmem:[#allocation6 + $0x4c0] sm:$0xff]
    %v931 = vld [vmem:[#allocation6 + $0x4c8] sm:$0xff]
    %v932 = vld [vmem:[#allocation6 + $0x4d0] sm:$0xff]
    %v933 = vld [vmem:[#allocation6 + $0x4d8] sm:$0xff]
    %v934 = vld [vmem:[#allocation6 + $0x4e0] sm:$0xff]
    %v935 = vld [vmem:[#allocation6 + $0x4e8] sm:$0xff]
    %v936 = vld [vmem:[#allocation6 + $0x4f0] sm:$0xff]
    %v937 = vld [vmem:[#allocation6 + $0x4f8] sm:$0xff]
    %v938 = vld [vmem:[#allocation6 + $0x500] sm:$0xff]
    %v939 = vld [vmem:[#allocation6 + $0x508] sm:$0xff]
    %v940 = vld [vmem:[#allocation6 + $0x510] sm:$0xff]
    %v941 = vld [vmem:[#allocation6 + $0x518] sm:$0xff]
    %v942 = vld [vmem:[#allocation6 + $0x520] sm:$0xff]
    %v943 = vld [vmem:[#allocation6 + $0x528] sm:$0xff]
    %v944 = vld [vmem:[#allocation6 + $0x530] sm:$0xff]
    %v945 = vld [vmem:[#allocation6 + $0x538] sm:$0xff]
    %v946 = vld [vmem:[#allocation6 + $0x540] sm:$0xff]
    %v947 = vld [vmem:[#allocation6 + $0x548] sm:$0xff]
    %v948 = vld [vmem:[#allocation6 + $0x550] sm:$0xff]
    %v949 = vld [vmem:[#allocation6 + $0x558] sm:$0xff]
    %v950 = vld [vmem:[#allocation6 + $0x560] sm:$0xff]
    %v951 = vld [vmem:[#allocation6 + $0x568] sm:$0xff]
    %v952 = vld [vmem:[#allocation6 + $0x570] sm:$0xff]
    %v953 = vld [vmem:[#allocation6 + $0x578] sm:$0xff]
    %v954 = vld [vmem:[#allocation6 + $0x580] sm:$0xff]
    %v955 = vld [vmem:[#allocation6 + $0x588] sm:$0xff]
    %v956 = vld [vmem:[#allocation6 + $0x590] sm:$0xff]
    %v957 = vld [vmem:[#allocation6 + $0x598] sm:$0xff]
    %v958 = vld [vmem:[#allocation6 + $0x5a0] sm:$0xff]
    %v959 = vld [vmem:[#allocation6 + $0x5a8] sm:$0xff]
    %v960 = vld [vmem:[#allocation6 + $0x5b0] sm:$0xff]
    %v961 = vld [vmem:[#allocation6 + $0x5b8] sm:$0xff]
    %v962 = vld [vmem:[#allocation6 + $0x5c0] sm:$0xff]
    %v963 = vld [vmem:[#allocation6 + $0x5c8] sm:$0xff]
    %v964 = vld [vmem:[#allocation6 + $0x5d0] sm:$0xff]
    %v965 = vld [vmem:[#allocation6 + $0x5d8] sm:$0xff]
    %v966 = vld [vmem:[#allocation6 + $0x5e0] sm:$0xff]
    %v967 = vld [vmem:[#allocation6 + $0x5e8] sm:$0xff]
    %v968 = vld [vmem:[#allocation6 + $0x5f0] sm:$0xff]
    %v969 = vld [vmem:[#allocation6 + $0x5f8] sm:$0xff]
    %v970 = vld [vmem:[#allocation6 + $0x600] sm:$0xff]
    %v971 = vld [vmem:[#allocation6 + $0x608] sm:$0xff]
    %v972 = vld [vmem:[#allocation6 + $0x610] sm:$0xff]
    %v973 = vld [vmem:[#allocation6 + $0x618] sm:$0xff]
    %v974 = vld [vmem:[#allocation6 + $0x620] sm:$0xff]
    %v975 = vld [vmem:[#allocation6 + $0x628] sm:$0xff]
    %v976 = vld [vmem:[#allocation6 + $0x630] sm:$0xff]
    %v977 = vld [vmem:[#allocation6 + $0x638] sm:$0xff]
    %v978 = vld [vmem:[#allocation6 + $0x640] sm:$0xff]
    %v979 = vld [vmem:[#allocation6 + $0x648] sm:$0xff]
    %v980 = vld [vmem:[#allocation6 + $0x650] sm:$0xff]
    %v981 = vld [vmem:[#allocation6 + $0x658] sm:$0xff]
    %v982 = vld [vmem:[#allocation6 + $0x660] sm:$0xff]
    %v983 = vld [vmem:[#allocation6 + $0x668] sm:$0xff]
    %v984 = vld [vmem:[#allocation6 + $0x670] sm:$0xff]
    %v985 = vld [vmem:[#allocation6 + $0x678] sm:$0xff]
    %v986 = vld [vmem:[#allocation6 + $0x680] sm:$0xff]
    %v987 = vld [vmem:[#allocation6 + $0x688] sm:$0xff]
    %v988 = vld [vmem:[#allocation6 + $0x690] sm:$0xff]
    %v989 = vld [vmem:[#allocation6 + $0x698] sm:$0xff]
    %v990 = vld [vmem:[#allocation6 + $0x6a0] sm:$0xff]
    %v991 = vld [vmem:[#allocation6 + $0x6a8] sm:$0xff]
    %v992 = vld [vmem:[#allocation6 + $0x6b0] sm:$0xff]
    %v993 = vld [vmem:[#allocation6 + $0x6b8] sm:$0xff]
    %v994 = vld [vmem:[#allocation6 + $0x6c0] sm:$0xff]
    %v995 = vld [vmem:[#allocation6 + $0x6c8] sm:$0xff]
    %v996 = vld [vmem:[#allocation6 + $0x6d0] sm:$0xff]
    %v997 = vld [vmem:[#allocation6 + $0x6d8] sm:$0xff]
    %v998 = vld [vmem:[#allocation6 + $0x6e0] sm:$0xff]
    %v999 = vld [vmem:[#allocation6 + $0x6e8] sm:$0xff]
    %v1000 = vld [vmem:[#allocation6 + $0x6f0] sm:$0xff]
    %v1001 = vld [vmem:[#allocation6 + $0x6f8] sm:$0xff]
    %v1002 = vld [vmem:[#allocation6 + $0x700] sm:$0xff]
    %v1003 = vld [vmem:[#allocation6 + $0x708] sm:$0xff]
    %v1004 = vld [vmem:[#allocation6 + $0x710] sm:$0xff]
    %v1005 = vld [vmem:[#allocation6 + $0x718] sm:$0xff]
    %v1006 = vld [vmem:[#allocation6 + $0x720] sm:$0xff]
    %v1007 = vld [vmem:[#allocation6 + $0x728] sm:$0xff]
    %v1008 = vld [vmem:[#allocation6 + $0x730] sm:$0xff]
    %v1009 = vld [vmem:[#allocation6 + $0x738] sm:$0xff]
    %v1010 = vld [vmem:[#allocation6 + $0x740] sm:$0xff]
    %v1011 = vld [vmem:[#allocation6 + $0x748] sm:$0xff]
    %v1012 = vld [vmem:[#allocation6 + $0x750] sm:$0xff]
    %v1013 = vld [vmem:[#allocation6 + $0x758] sm:$0xff]
    %v1014 = vld [vmem:[#allocation6 + $0x760] sm:$0xff]
    %v1015 = vld [vmem:[#allocation6 + $0x768] sm:$0xff]
    %v1016 = vld [vmem:[#allocation6 + $0x770] sm:$0xff]
    %v1017 = vld [vmem:[#allocation6 + $0x778] sm:$0xff]
    %v1018 = vld [vmem:[#allocation6 + $0x780] sm:$0xff]
    %v1019 = vld [vmem:[#allocation6 + $0x788] sm:$0xff]
    %v1020 = vld [vmem:[#allocation6 + $0x790] sm:$0xff]
    %v1021 = vld [vmem:[#allocation6 + $0x798] sm:$0xff]
    %v1022 = vld [vmem:[#allocation6 + $0x7a0] sm:$0xff]
    %v1023 = vld [vmem:[#allocation6 + $0x7a8] sm:$0xff]
    %v1024 = vld [vmem:[#allocation6 + $0x7b0] sm:$0xff]
    %v1025 = vld [vmem:[#allocation6 + $0x7b8] sm:$0xff]
    %v1026 = vld [vmem:[#allocation6 + $0x7c0] sm:$0xff]
    %v1027 = vld [vmem:[#allocation6 + $0x7c8] sm:$0xff]
    %v1028 = vld [vmem:[#allocation6 + $0x7d0] sm:$0xff]
    %v1029 = vld [vmem:[#allocation6 + $0x7d8] sm:$0xff]
    %v1030 = vld [vmem:[#allocation6 + $0x7e0] sm:$0xff]
    %v1031 = vld [vmem:[#allocation6 + $0x7e8] sm:$0xff]
    %v1032 = vld [vmem:[#allocation6 + $0x7f0] sm:$0xff]
    %v1033 = vld [vmem:[#allocation6 + $0x7f8] sm:$0xff]
    %v1034 = vld [vmem:[#allocation6 + $0x800] sm:$0xff]
    %v1035 = vld [vmem:[#allocation6 + $0x808] sm:$0xff]
    %v1036 = vld [vmem:[#allocation6 + $0x810] sm:$0xff]
    %v1037 = vld [vmem:[#allocation6 + $0x818] sm:$0xff]
    %v1038 = vld [vmem:[#allocation6 + $0x820] sm:$0xff]
    %v1039 = vld [vmem:[#allocation6 + $0x828] sm:$0xff]
    %v1040 = vld [vmem:[#allocation6 + $0x830] sm:$0xff]
    %v1041 = vld [vmem:[#allocation6 + $0x838] sm:$0xff]
    %v1042 = vld [vmem:[#allocation6 + $0x840] sm:$0xff]
    %v1043 = vld [vmem:[#allocation6 + $0x848] sm:$0xff]
    %v1044 = vld [vmem:[#allocation6 + $0x850] sm:$0xff]
    %v1045 = vld [vmem:[#allocation6 + $0x858] sm:$0xff]
    %v1046 = vld [vmem:[#allocation6 + $0x860] sm:$0xff]
    %v1047 = vld [vmem:[#allocation6 + $0x868] sm:$0xff]
    %v1048 = vld [vmem:[#allocation6 + $0x870] sm:$0xff]
    %v1049 = vld [vmem:[#allocation6 + $0x878] sm:$0xff]
    %v1050 = vld [vmem:[#allocation6 + $0x880] sm:$0xff]
    %v1051 = vld [vmem:[#allocation6 + $0x888] sm:$0xff]
    %v1052 = vld [vmem:[#allocation6 + $0x890] sm:$0xff]
    %v1053 = vld [vmem:[#allocation6 + $0x898] sm:$0xff]
    %v1054 = vld [vmem:[#allocation6 + $0x8a0] sm:$0xff]
    %v1055 = vld [vmem:[#allocation6 + $0x8a8] sm:$0xff]
    %v1056 = vld [vmem:[#allocation6 + $0x8b0] sm:$0xff]
    %v1057 = vld [vmem:[#allocation6 + $0x8b8] sm:$0xff]
    %v1058 = vld [vmem:[#allocation6 + $0x8c0] sm:$0xff]
    %v1059 = vld [vmem:[#allocation6 + $0x8c8] sm:$0xff]
    %v1060 = vld [vmem:[#allocation6 + $0x8d0] sm:$0xff]
    %v1061 = vld [vmem:[#allocation6 + $0x8d8] sm:$0xff]
    %v1062 = vld [vmem:[#allocation6 + $0x8e0] sm:$0xff]
    %v1063 = vld [vmem:[#allocation6 + $0x8e8] sm:$0xff]
    %v1064 = vld [vmem:[#allocation6 + $0x8f0] sm:$0xff]
    %v1065 = vld [vmem:[#allocation6 + $0x8f8] sm:$0xff]
    %v1066 = vld [vmem:[#allocation7] sm:$0x3f]
    %v1068 = vlaneseq
    %v1069 = vshrl.u32 %v1068, 7
    %v1070 = vsub.s32 0, %v1069
    %v1071 = vrot.slane %v1066, %v1070
    %v1072 = vlaneseq
    %v1073 = vshrl.u32 %v1072, 7
    %v1074 = vsub.s32 1, %v1073
    %v1075 = vrot.slane %v1066, %v1074
    %v1076 = vlaneseq
    %v1077 = vshrl.u32 %v1076, 7
    %v1078 = vsub.s32 2, %v1077
    %v1079 = vrot.slane %v1066, %v1078
    %v1080 = vlaneseq
    %v1081 = vshrl.u32 %v1080, 7
    %v1082 = vsub.s32 3, %v1081
    %v1083 = vrot.slane %v1066, %v1082
    %v1084 = vlaneseq
    %v1085 = vshrl.u32 %v1084, 7
    %v1086 = vsub.s32 4, %v1085
    %v1087 = vrot.slane %v1066, %v1086
    %v1088 = vlaneseq
    %v1089 = vshrl.u32 %v1088, 7
    %v1090 = vsub.s32 5, %v1089
    %v1091 = vrot.slane %v1066, %v1090
    %v1386 = vunpack.c.l.b16 %v778
    %v1387 = vunpack.c.h.b16 %v778
    %v1388 = vunpack.c.l.b16 %v779
    %v1389 = vunpack.c.h.b16 %v779
    %v1390 = vunpack.c.l.b16 %v780
    %v1391 = vunpack.c.h.b16 %v780
    %v1392 = vunpack.c.l.b16 %v781
    %v1393 = vunpack.c.h.b16 %v781
    %v1394 = vunpack.c.l.b16 %v782
    %v1395 = vunpack.c.h.b16 %v782
    %v1396 = vunpack.c.l.b16 %v783
    %v1397 = vunpack.c.h.b16 %v783
    %v1398 = vunpack.c.l.b16 %v784
    %v1399 = vunpack.c.h.b16 %v784
    %v1400 = vunpack.c.l.b16 %v785
    %v1401 = vunpack.c.h.b16 %v785
    %v1402 = vunpack.c.l.b16 %v786
    %v1403 = vunpack.c.h.b16 %v786
    %v1404 = vunpack.c.l.b16 %v787
    %v1405 = vunpack.c.h.b16 %v787
    %v1406 = vunpack.c.l.b16 %v788
    %v1407 = vunpack.c.h.b16 %v788
    %v1408 = vunpack.c.l.b16 %v789
    %v1409 = vunpack.c.h.b16 %v789
    %v1410 = vunpack.c.l.b16 %v790
    %v1411 = vunpack.c.h.b16 %v790
    %v1412 = vunpack.c.l.b16 %v791
    %v1413 = vunpack.c.h.b16 %v791
    %v1414 = vunpack.c.l.b16 %v792
    %v1415 = vunpack.c.h.b16 %v792
    %v1416 = vunpack.c.l.b16 %v793
    %v1417 = vunpack.c.h.b16 %v793
    %v1418 = vunpack.c.l.b16 %v794
    %v1419 = vunpack.c.h.b16 %v794
    %v1420 = vunpack.c.l.b16 %v795
    %v1421 = vunpack.c.h.b16 %v795
    %v1422 = vunpack.c.l.b16 %v796
    %v1423 = vunpack.c.h.b16 %v796
    %v1424 = vunpack.c.l.b16 %v797
    %v1425 = vunpack.c.h.b16 %v797
    %v1426 = vunpack.c.l.b16 %v798
    %v1427 = vunpack.c.h.b16 %v798
    %v1428 = vunpack.c.l.b16 %v799
    %v1429 = vunpack.c.h.b16 %v799
    %v1430 = vunpack.c.l.b16 %v800
    %v1431 = vunpack.c.h.b16 %v800
    %v1432 = vunpack.c.l.b16 %v801
    %v1433 = vunpack.c.h.b16 %v801
    %v1434 = vunpack.c.l.b16 %v802
    %v1435 = vunpack.c.h.b16 %v802
    %v1436 = vunpack.c.l.b16 %v803
    %v1437 = vunpack.c.h.b16 %v803
    %v1438 = vunpack.c.l.b16 %v804
    %v1439 = vunpack.c.h.b16 %v804
    %v1440 = vunpack.c.l.b16 %v805
    %v1441 = vunpack.c.h.b16 %v805
    %v1442 = vunpack.c.l.b16 %v806
    %v1443 = vunpack.c.h.b16 %v806
    %v1444 = vunpack.c.l.b16 %v807
    %v1445 = vunpack.c.h.b16 %v807
    %v1446 = vunpack.c.l.b16 %v808
    %v1447 = vunpack.c.h.b16 %v808
    %v1448 = vunpack.c.l.b16 %v809
    %v1449 = vunpack.c.h.b16 %v809
    %v1450 = vunpack.c.l.b16 %v810
    %v1451 = vunpack.c.h.b16 %v810
    %v1452 = vunpack.c.l.b16 %v811
    %v1453 = vunpack.c.h.b16 %v811
    %v1454 = vunpack.c.l.b16 %v812
    %v1455 = vunpack.c.h.b16 %v812
    %v1456 = vunpack.c.l.b16 %v813
    %v1457 = vunpack.c.h.b16 %v813
    %v1458 = vunpack.c.l.b16 %v814
    %v1459 = vunpack.c.h.b16 %v814
    %v1460 = vunpack.c.l.b16 %v815
    %v1461 = vunpack.c.h.b16 %v815
    %v1462 = vunpack.c.l.b16 %v816
    %v1463 = vunpack.c.h.b16 %v816
    %v1464 = vunpack.c.l.b16 %v817
    %v1465 = vunpack.c.h.b16 %v817
    %v1466 = vunpack.c.l.b16 %v818
    %v1467 = vunpack.c.h.b16 %v818
    %v1468 = vunpack.c.l.b16 %v819
    %v1469 = vunpack.c.h.b16 %v819
    %v1470 = vunpack.c.l.b16 %v820
    %v1471 = vunpack.c.h.b16 %v820
    %v1472 = vunpack.c.l.b16 %v821
    %v1473 = vunpack.c.h.b16 %v821
    %v1474 = vunpack.c.l.b16 %v822
    %v1475 = vunpack.c.h.b16 %v822
    %v1476 = vunpack.c.l.b16 %v823
    %v1477 = vunpack.c.h.b16 %v823
    %v1478 = vunpack.c.l.b16 %v824
    %v1479 = vunpack.c.h.b16 %v824
    %v1480 = vunpack.c.l.b16 %v825
    %v1481 = vunpack.c.h.b16 %v825
    %v1482 = vunpack.c.l.b16 %v826
    %v1483 = vunpack.c.h.b16 %v826
    %v1484 = vunpack.c.l.b16 %v827
    %v1485 = vunpack.c.h.b16 %v827
    %v1486 = vunpack.c.l.b16 %v828
    %v1487 = vunpack.c.h.b16 %v828
    %v1488 = vunpack.c.l.b16 %v829
    %v1489 = vunpack.c.h.b16 %v829
    %v1490 = vunpack.c.l.b16 %v830
    %v1491 = vunpack.c.h.b16 %v830
    %v1492 = vunpack.c.l.b16 %v831
    %v1493 = vunpack.c.h.b16 %v831
    %v1494 = vunpack.c.l.b16 %v832
    %v1495 = vunpack.c.h.b16 %v832
    %v1496 = vunpack.c.l.b16 %v833
    %v1497 = vunpack.c.h.b16 %v833
    %v1498 = vunpack.c.l.b16 %v834
    %v1499 = vunpack.c.h.b16 %v834
    %v1500 = vunpack.c.l.b16 %v835
    %v1501 = vunpack.c.h.b16 %v835
    %v1502 = vunpack.c.l.b16 %v836
    %v1503 = vunpack.c.h.b16 %v836
    %v1504 = vunpack.c.l.b16 %v837
    %v1505 = vunpack.c.h.b16 %v837
    %v1506 = vunpack.c.l.b16 %v838
    %v1507 = vunpack.c.h.b16 %v838
    %v1508 = vunpack.c.l.b16 %v839
    %v1509 = vunpack.c.h.b16 %v839
    %v1510 = vunpack.c.l.b16 %v840
    %v1511 = vunpack.c.h.b16 %v840
    %v1512 = vunpack.c.l.b16 %v841
    %v1513 = vunpack.c.h.b16 %v841
    %v1514 = vunpack.c.l.b16 %v842
    %v1515 = vunpack.c.h.b16 %v842
    %v1516 = vunpack.c.l.b16 %v843
    %v1517 = vunpack.c.h.b16 %v843
    %v1518 = vunpack.c.l.b16 %v844
    %v1519 = vunpack.c.h.b16 %v844
    %v1520 = vunpack.c.l.b16 %v845
    %v1521 = vunpack.c.h.b16 %v845
    %v1522 = vunpack.c.l.b16 %v846
    %v1523 = vunpack.c.h.b16 %v846
    %v1524 = vunpack.c.l.b16 %v847
    %v1525 = vunpack.c.h.b16 %v847
    %v1526 = vunpack.c.l.b16 %v848
    %v1527 = vunpack.c.h.b16 %v848
    %v1528 = vunpack.c.l.b16 %v849
    %v1529 = vunpack.c.h.b16 %v849
    %v1530 = vunpack.c.l.b16 %v850
    %v1531 = vunpack.c.h.b16 %v850
    %v1532 = vunpack.c.l.b16 %v851
    %v1533 = vunpack.c.h.b16 %v851
    %v1534 = vunpack.c.l.b16 %v852
    %v1535 = vunpack.c.h.b16 %v852
    %v1536 = vunpack.c.l.b16 %v853
    %v1537 = vunpack.c.h.b16 %v853
    %v1538 = vunpack.c.l.b16 %v854
    %v1539 = vunpack.c.h.b16 %v854
    %v1540 = vunpack.c.l.b16 %v855
    %v1541 = vunpack.c.h.b16 %v855
    %v1542 = vunpack.c.l.b16 %v856
    %v1543 = vunpack.c.h.b16 %v856
    %v1544 = vunpack.c.l.b16 %v857
    %v1545 = vunpack.c.h.b16 %v857
    %v1546 = vunpack.c.l.b16 %v858
    %v1547 = vunpack.c.h.b16 %v858
    %v1548 = vunpack.c.l.b16 %v859
    %v1549 = vunpack.c.h.b16 %v859
    %v1550 = vunpack.c.l.b16 %v860
    %v1551 = vunpack.c.h.b16 %v860
    %v1552 = vunpack.c.l.b16 %v861
    %v1553 = vunpack.c.h.b16 %v861
    %v1554 = vunpack.c.l.b16 %v862
    %v1555 = vunpack.c.h.b16 %v862
    %v1556 = vunpack.c.l.b16 %v863
    %v1557 = vunpack.c.h.b16 %v863
    %v1558 = vunpack.c.l.b16 %v864
    %v1559 = vunpack.c.h.b16 %v864
    %v1560 = vunpack.c.l.b16 %v865
    %v1561 = vunpack.c.h.b16 %v865
    %v1562 = vunpack.c.l.b16 %v866
    %v1563 = vunpack.c.h.b16 %v866
    %v1564 = vunpack.c.l.b16 %v867
    %v1565 = vunpack.c.h.b16 %v867
    %v1566 = vunpack.c.l.b16 %v868
    %v1567 = vunpack.c.h.b16 %v868
    %v1568 = vunpack.c.l.b16 %v869
    %v1569 = vunpack.c.h.b16 %v869
    %v1570 = vunpack.c.l.b16 %v870
    %v1571 = vunpack.c.h.b16 %v870
    %v1572 = vunpack.c.l.b16 %v871
    %v1573 = vunpack.c.h.b16 %v871
    %v1574 = vunpack.c.l.b16 %v872
    %v1575 = vunpack.c.h.b16 %v872
    %v1576 = vunpack.c.l.b16 %v873
    %v1577 = vunpack.c.h.b16 %v873
    %v1578 = vunpack.c.l.b16 %v874
    %v1579 = vunpack.c.h.b16 %v874
    %v1580 = vunpack.c.l.b16 %v875
    %v1581 = vunpack.c.h.b16 %v875
    %v1582 = vunpack.c.l.b16 %v876
    %v1583 = vunpack.c.h.b16 %v876
    %v1584 = vunpack.c.l.b16 %v877
    %v1585 = vunpack.c.h.b16 %v877
    %v1586 = vunpack.c.l.b16 %v878
    %v1587 = vunpack.c.h.b16 %v878
    %v1588 = vunpack.c.l.b16 %v879
    %v1589 = vunpack.c.h.b16 %v879
    %v1590 = vunpack.c.l.b16 %v880
    %v1591 = vunpack.c.h.b16 %v880
    %v1592 = vunpack.c.l.b16 %v881
    %v1593 = vunpack.c.h.b16 %v881
    %v1594 = vunpack.c.l.b16 %v882
    %v1595 = vunpack.c.h.b16 %v882
    %v1596 = vunpack.c.l.b16 %v883
    %v1597 = vunpack.c.h.b16 %v883
    %v1598 = vunpack.c.l.b16 %v884
    %v1599 = vunpack.c.h.b16 %v884
    %v1600 = vunpack.c.l.b16 %v885
    %v1601 = vunpack.c.h.b16 %v885
    %v1602 = vunpack.c.l.b16 %v886
    %v1603 = vunpack.c.h.b16 %v886
    %v1604 = vunpack.c.l.b16 %v887
    %v1605 = vunpack.c.h.b16 %v887
    %v1606 = vunpack.c.l.b16 %v888
    %v1607 = vunpack.c.h.b16 %v888
    %v1608 = vunpack.c.l.b16 %v889
    %v1609 = vunpack.c.h.b16 %v889
    %v1610 = vunpack.c.l.b16 %v890
    %v1611 = vunpack.c.h.b16 %v890
    %v1612 = vunpack.c.l.b16 %v891
    %v1613 = vunpack.c.h.b16 %v891
    %v1614 = vunpack.c.l.b16 %v892
    %v1615 = vunpack.c.h.b16 %v892
    %v1616 = vunpack.c.l.b16 %v893
    %v1617 = vunpack.c.h.b16 %v893
    %v1618 = vunpack.c.l.b16 %v894
    %v1619 = vunpack.c.h.b16 %v894
    %v1620 = vunpack.c.l.b16 %v895
    %v1621 = vunpack.c.h.b16 %v895
    %v1622 = vunpack.c.l.b16 %v896
    %v1623 = vunpack.c.h.b16 %v896
    %v1624 = vunpack.c.l.b16 %v897
    %v1625 = vunpack.c.h.b16 %v897
    %v1626 = vunpack.c.l.b16 %v898
    %v1627 = vunpack.c.h.b16 %v898
    %v1628 = vunpack.c.l.b16 %v899
    %v1629 = vunpack.c.h.b16 %v899
    %v1630 = vunpack.c.l.b16 %v900
    %v1631 = vunpack.c.h.b16 %v900
    %v1632 = vunpack.c.l.b16 %v901
    %v1633 = vunpack.c.h.b16 %v901
    %v1634 = vunpack.c.l.b16 %v902
    %v1635 = vunpack.c.h.b16 %v902
    %v1636 = vunpack.c.l.b16 %v903
    %v1637 = vunpack.c.h.b16 %v903
    %v1638 = vunpack.c.l.b16 %v904
    %v1639 = vunpack.c.h.b16 %v904
    %v1640 = vunpack.c.l.b16 %v905
    %v1641 = vunpack.c.h.b16 %v905
    %v1642 = vunpack.c.l.b16 %v906
    %v1643 = vunpack.c.h.b16 %v906
    %v1644 = vunpack.c.l.b16 %v907
    %v1645 = vunpack.c.h.b16 %v907
    %v1646 = vunpack.c.l.b16 %v908
    %v1647 = vunpack.c.h.b16 %v908
    %v1648 = vunpack.c.l.b16 %v909
    %v1649 = vunpack.c.h.b16 %v909
    %v1650 = vunpack.c.l.b16 %v910
    %v1651 = vunpack.c.h.b16 %v910
    %v1652 = vunpack.c.l.b16 %v911
    %v1653 = vunpack.c.h.b16 %v911
    %v1654 = vunpack.c.l.b16 %v912
    %v1655 = vunpack.c.h.b16 %v912
    %v1656 = vunpack.c.l.b16 %v913
    %v1657 = vunpack.c.h.b16 %v913
    %v1658 = vunpack.c.l.b16 %v914
    %v1659 = vunpack.c.h.b16 %v914
    %v1660 = vunpack.c.l.b16 %v915
    %v1661 = vunpack.c.h.b16 %v915
    %v1662 = vunpack.c.l.b16 %v916
    %v1663 = vunpack.c.h.b16 %v916
    %v1664 = vunpack.c.l.b16 %v917
    %v1665 = vunpack.c.h.b16 %v917
    %v1666 = vunpack.c.l.b16 %v918
    %v1667 = vunpack.c.h.b16 %v918
    %v1668 = vunpack.c.l.b16 %v919
    %v1669 = vunpack.c.h.b16 %v919
    %v1670 = vunpack.c.l.b16 %v920
    %v1671 = vunpack.c.h.b16 %v920
    %v1672 = vunpack.c.l.b16 %v921
    %v1673 = vunpack.c.h.b16 %v921
    %v1674 = vunpack.c.l.b16 %v922
    %v1675 = vunpack.c.h.b16 %v922
    %v1676 = vunpack.c.l.b16 %v923
    %v1677 = vunpack.c.h.b16 %v923
    %v1678 = vunpack.c.l.b16 %v924
    %v1679 = vunpack.c.h.b16 %v924
    %v1680 = vunpack.c.l.b16 %v925
    %v1681 = vunpack.c.h.b16 %v925
    %v1682 = vunpack.c.l.b16 %v926
    %v1683 = vunpack.c.h.b16 %v926
    %v1684 = vunpack.c.l.b16 %v927
    %v1685 = vunpack.c.h.b16 %v927
    %v1686 = vunpack.c.l.b16 %v928
    %v1687 = vunpack.c.h.b16 %v928
    %v1688 = vunpack.c.l.b16 %v929
    %v1689 = vunpack.c.h.b16 %v929
    %v1690 = vunpack.c.l.b16 %v930
    %v1691 = vunpack.c.h.b16 %v930
    %v1692 = vunpack.c.l.b16 %v931
    %v1693 = vunpack.c.h.b16 %v931
    %v1694 = vunpack.c.l.b16 %v932
    %v1695 = vunpack.c.h.b16 %v932
    %v1696 = vunpack.c.l.b16 %v933
    %v1697 = vunpack.c.h.b16 %v933
    %v1698 = vunpack.c.l.b16 %v934
    %v1699 = vunpack.c.h.b16 %v934
    %v1700 = vunpack.c.l.b16 %v935
    %v1701 = vunpack.c.h.b16 %v935
    %v1702 = vunpack.c.l.b16 %v936
    %v1703 = vunpack.c.h.b16 %v936
    %v1704 = vunpack.c.l.b16 %v937
    %v1705 = vunpack.c.h.b16 %v937
    %v1706 = vunpack.c.l.b16 %v938
    %v1707 = vunpack.c.h.b16 %v938
    %v1708 = vunpack.c.l.b16 %v939
    %v1709 = vunpack.c.h.b16 %v939
    %v1710 = vunpack.c.l.b16 %v940
    %v1711 = vunpack.c.h.b16 %v940
    %v1712 = vunpack.c.l.b16 %v941
    %v1713 = vunpack.c.h.b16 %v941
    %v1714 = vunpack.c.l.b16 %v942
    %v1715 = vunpack.c.h.b16 %v942
    %v1716 = vunpack.c.l.b16 %v943
    %v1717 = vunpack.c.h.b16 %v943
    %v1718 = vunpack.c.l.b16 %v944
    %v1719 = vunpack.c.h.b16 %v944
    %v1720 = vunpack.c.l.b16 %v945
    %v1721 = vunpack.c.h.b16 %v945
    %v1722 = vunpack.c.l.b16 %v946
    %v1723 = vunpack.c.h.b16 %v946
    %v1724 = vunpack.c.l.b16 %v947
    %v1725 = vunpack.c.h.b16 %v947
    %v1726 = vunpack.c.l.b16 %v948
    %v1727 = vunpack.c.h.b16 %v948
    %v1728 = vunpack.c.l.b16 %v949
    %v1729 = vunpack.c.h.b16 %v949
    %v1730 = vunpack.c.l.b16 %v950
    %v1731 = vunpack.c.h.b16 %v950
    %v1732 = vunpack.c.l.b16 %v951
    %v1733 = vunpack.c.h.b16 %v951
    %v1734 = vunpack.c.l.b16 %v952
    %v1735 = vunpack.c.h.b16 %v952
    %v1736 = vunpack.c.l.b16 %v953
    %v1737 = vunpack.c.h.b16 %v953
    %v1738 = vunpack.c.l.b16 %v954
    %v1739 = vunpack.c.h.b16 %v954
    %v1740 = vunpack.c.l.b16 %v955
    %v1741 = vunpack.c.h.b16 %v955
    %v1742 = vunpack.c.l.b16 %v956
    %v1743 = vunpack.c.h.b16 %v956
    %v1744 = vunpack.c.l.b16 %v957
    %v1745 = vunpack.c.h.b16 %v957
    %v1746 = vunpack.c.l.b16 %v958
    %v1747 = vunpack.c.h.b16 %v958
    %v1748 = vunpack.c.l.b16 %v959
    %v1749 = vunpack.c.h.b16 %v959
    %v1750 = vunpack.c.l.b16 %v960
    %v1751 = vunpack.c.h.b16 %v960
    %v1752 = vunpack.c.l.b16 %v961
    %v1753 = vunpack.c.h.b16 %v961
    %v1754 = vunpack.c.l.b16 %v962
    %v1755 = vunpack.c.h.b16 %v962
    %v1756 = vunpack.c.l.b16 %v963
    %v1757 = vunpack.c.h.b16 %v963
    %v1758 = vunpack.c.l.b16 %v964
    %v1759 = vunpack.c.h.b16 %v964
    %v1760 = vunpack.c.l.b16 %v965
    %v1761 = vunpack.c.h.b16 %v965
    %v1762 = vunpack.c.l.b16 %v966
    %v1763 = vunpack.c.h.b16 %v966
    %v1764 = vunpack.c.l.b16 %v967
    %v1765 = vunpack.c.h.b16 %v967
    %v1766 = vunpack.c.l.b16 %v968
    %v1767 = vunpack.c.h.b16 %v968
    %v1768 = vunpack.c.l.b16 %v969
    %v1769 = vunpack.c.h.b16 %v969
    %v1770 = vunpack.c.l.b16 %v970
    %v1771 = vunpack.c.h.b16 %v970
    %v1772 = vunpack.c.l.b16 %v971
    %v1773 = vunpack.c.h.b16 %v971
    %v1774 = vunpack.c.l.b16 %v972
    %v1775 = vunpack.c.h.b16 %v972
    %v1776 = vunpack.c.l.b16 %v973
    %v1777 = vunpack.c.h.b16 %v973
    %v1778 = vunpack.c.l.b16 %v974
    %v1779 = vunpack.c.h.b16 %v974
    %v1780 = vunpack.c.l.b16 %v975
    %v1781 = vunpack.c.h.b16 %v975
    %v1782 = vunpack.c.l.b16 %v976
    %v1783 = vunpack.c.h.b16 %v976
    %v1784 = vunpack.c.l.b16 %v977
    %v1785 = vunpack.c.h.b16 %v977
    %v1786 = vunpack.c.l.b16 %v978
    %v1787 = vunpack.c.h.b16 %v978
    %v1788 = vunpack.c.l.b16 %v979
    %v1789 = vunpack.c.h.b16 %v979
    %v1790 = vunpack.c.l.b16 %v980
    %v1791 = vunpack.c.h.b16 %v980
    %v1792 = vunpack.c.l.b16 %v981
    %v1793 = vunpack.c.h.b16 %v981
    %v1794 = vunpack.c.l.b16 %v982
    %v1795 = vunpack.c.h.b16 %v982
    %v1796 = vunpack.c.l.b16 %v983
    %v1797 = vunpack.c.h.b16 %v983
    %v1798 = vunpack.c.l.b16 %v984
    %v1799 = vunpack.c.h.b16 %v984
    %v1800 = vunpack.c.l.b16 %v985
    %v1801 = vunpack.c.h.b16 %v985
    %v1802 = vunpack.c.l.b16 %v986
    %v1803 = vunpack.c.h.b16 %v986
    %v1804 = vunpack.c.l.b16 %v987
    %v1805 = vunpack.c.h.b16 %v987
    %v1806 = vunpack.c.l.b16 %v988
    %v1807 = vunpack.c.h.b16 %v988
    %v1808 = vunpack.c.l.b16 %v989
    %v1809 = vunpack.c.h.b16 %v989
    %v1810 = vunpack.c.l.b16 %v990
    %v1811 = vunpack.c.h.b16 %v990
    %v1812 = vunpack.c.l.b16 %v991
    %v1813 = vunpack.c.h.b16 %v991
    %v1814 = vunpack.c.l.b16 %v992
    %v1815 = vunpack.c.h.b16 %v992
    %v1816 = vunpack.c.l.b16 %v993
    %v1817 = vunpack.c.h.b16 %v993
    %v1818 = vunpack.c.l.b16 %v994
    %v1819 = vunpack.c.h.b16 %v994
    %v1820 = vunpack.c.l.b16 %v995
    %v1821 = vunpack.c.h.b16 %v995
    %v1822 = vunpack.c.l.b16 %v996
    %v1823 = vunpack.c.h.b16 %v996
    %v1824 = vunpack.c.l.b16 %v997
    %v1825 = vunpack.c.h.b16 %v997
    %v1826 = vunpack.c.l.b16 %v998
    %v1827 = vunpack.c.h.b16 %v998
    %v1828 = vunpack.c.l.b16 %v999
    %v1829 = vunpack.c.h.b16 %v999
    %v1830 = vunpack.c.l.b16 %v1000
    %v1831 = vunpack.c.h.b16 %v1000
    %v1832 = vunpack.c.l.b16 %v1001
    %v1833 = vunpack.c.h.b16 %v1001
    %v1834 = vunpack.c.l.b16 %v1002
    %v1835 = vunpack.c.h.b16 %v1002
    %v1836 = vunpack.c.l.b16 %v1003
    %v1837 = vunpack.c.h.b16 %v1003
    %v1838 = vunpack.c.l.b16 %v1004
    %v1839 = vunpack.c.h.b16 %v1004
    %v1840 = vunpack.c.l.b16 %v1005
    %v1841 = vunpack.c.h.b16 %v1005
    %v1842 = vunpack.c.l.b16 %v1006
    %v1843 = vunpack.c.h.b16 %v1006
    %v1844 = vunpack.c.l.b16 %v1007
    %v1845 = vunpack.c.h.b16 %v1007
    %v1846 = vunpack.c.l.b16 %v1008
    %v1847 = vunpack.c.h.b16 %v1008
    %v1848 = vunpack.c.l.b16 %v1009
    %v1849 = vunpack.c.h.b16 %v1009
    %v1850 = vunpack.c.l.b16 %v1010
    %v1851 = vunpack.c.h.b16 %v1010
    %v1852 = vunpack.c.l.b16 %v1011
    %v1853 = vunpack.c.h.b16 %v1011
    %v1854 = vunpack.c.l.b16 %v1012
    %v1855 = vunpack.c.h.b16 %v1012
    %v1856 = vunpack.c.l.b16 %v1013
    %v1857 = vunpack.c.h.b16 %v1013
    %v1858 = vunpack.c.l.b16 %v1014
    %v1859 = vunpack.c.h.b16 %v1014
    %v1860 = vunpack.c.l.b16 %v1015
    %v1861 = vunpack.c.h.b16 %v1015
    %v1862 = vunpack.c.l.b16 %v1016
    %v1863 = vunpack.c.h.b16 %v1016
    %v1864 = vunpack.c.l.b16 %v1017
    %v1865 = vunpack.c.h.b16 %v1017
    %v1866 = vunpack.c.l.b16 %v1018
    %v1867 = vunpack.c.h.b16 %v1018
    %v1868 = vunpack.c.l.b16 %v1019
    %v1869 = vunpack.c.h.b16 %v1019
    %v1870 = vunpack.c.l.b16 %v1020
    %v1871 = vunpack.c.h.b16 %v1020
    %v1872 = vunpack.c.l.b16 %v1021
    %v1873 = vunpack.c.h.b16 %v1021
    %v1874 = vunpack.c.l.b16 %v1022
    %v1875 = vunpack.c.h.b16 %v1022
    %v1876 = vunpack.c.l.b16 %v1023
    %v1877 = vunpack.c.h.b16 %v1023
    %v1878 = vunpack.c.l.b16 %v1024
    %v1879 = vunpack.c.h.b16 %v1024
    %v1880 = vunpack.c.l.b16 %v1025
    %v1881 = vunpack.c.h.b16 %v1025
    %v1882 = vunpack.c.l.b16 %v1026
    %v1883 = vunpack.c.h.b16 %v1026
    %v1884 = vunpack.c.l.b16 %v1027
    %v1885 = vunpack.c.h.b16 %v1027
    %v1886 = vunpack.c.l.b16 %v1028
    %v1887 = vunpack.c.h.b16 %v1028
    %v1888 = vunpack.c.l.b16 %v1029
    %v1889 = vunpack.c.h.b16 %v1029
    %v1890 = vunpack.c.l.b16 %v1030
    %v1891 = vunpack.c.h.b16 %v1030
    %v1892 = vunpack.c.l.b16 %v1031
    %v1893 = vunpack.c.h.b16 %v1031
    %v1894 = vunpack.c.l.b16 %v1032
    %v1895 = vunpack.c.h.b16 %v1032
    %v1896 = vunpack.c.l.b16 %v1033
    %v1897 = vunpack.c.h.b16 %v1033
    %v1898 = vunpack.c.l.b16 %v1034
    %v1899 = vunpack.c.h.b16 %v1034
    %v1900 = vunpack.c.l.b16 %v1035
    %v1901 = vunpack.c.h.b16 %v1035
    %v1902 = vunpack.c.l.b16 %v1036
    %v1903 = vunpack.c.h.b16 %v1036
    %v1904 = vunpack.c.l.b16 %v1037
    %v1905 = vunpack.c.h.b16 %v1037
    %v1906 = vunpack.c.l.b16 %v1038
    %v1907 = vunpack.c.h.b16 %v1038
    %v1908 = vunpack.c.l.b16 %v1039
    %v1909 = vunpack.c.h.b16 %v1039
    %v1910 = vunpack.c.l.b16 %v1040
    %v1911 = vunpack.c.h.b16 %v1040
    %v1912 = vunpack.c.l.b16 %v1041
    %v1913 = vunpack.c.h.b16 %v1041
    %v1914 = vunpack.c.l.b16 %v1042
    %v1915 = vunpack.c.h.b16 %v1042
    %v1916 = vunpack.c.l.b16 %v1043
    %v1917 = vunpack.c.h.b16 %v1043
    %v1918 = vunpack.c.l.b16 %v1044
    %v1919 = vunpack.c.h.b16 %v1044
    %v1920 = vunpack.c.l.b16 %v1045
    %v1921 = vunpack.c.h.b16 %v1045
    %v1922 = vunpack.c.l.b16 %v1046
    %v1923 = vunpack.c.h.b16 %v1046
    %v1924 = vunpack.c.l.b16 %v1047
    %v1925 = vunpack.c.h.b16 %v1047
    %v1926 = vunpack.c.l.b16 %v1048
    %v1927 = vunpack.c.h.b16 %v1048
    %v1928 = vunpack.c.l.b16 %v1049
    %v1929 = vunpack.c.h.b16 %v1049
    %v1930 = vunpack.c.l.b16 %v1050
    %v1931 = vunpack.c.h.b16 %v1050
    %v1932 = vunpack.c.l.b16 %v1051
    %v1933 = vunpack.c.h.b16 %v1051
    %v1934 = vunpack.c.l.b16 %v1052
    %v1935 = vunpack.c.h.b16 %v1052
    %v1936 = vunpack.c.l.b16 %v1053
    %v1937 = vunpack.c.h.b16 %v1053
    %v1938 = vunpack.c.l.b16 %v1054
    %v1939 = vunpack.c.h.b16 %v1054
    %v1940 = vunpack.c.l.b16 %v1055
    %v1941 = vunpack.c.h.b16 %v1055
    %v1942 = vunpack.c.l.b16 %v1056
    %v1943 = vunpack.c.h.b16 %v1056
    %v1944 = vunpack.c.l.b16 %v1057
    %v1945 = vunpack.c.h.b16 %v1057
    %v1946 = vunpack.c.l.b16 %v1058
    %v1947 = vunpack.c.h.b16 %v1058
    %v1948 = vunpack.c.l.b16 %v1059
    %v1949 = vunpack.c.h.b16 %v1059
    %v1950 = vunpack.c.l.b16 %v1060
    %v1951 = vunpack.c.h.b16 %v1060
    %v1952 = vunpack.c.l.b16 %v1061
    %v1953 = vunpack.c.h.b16 %v1061
    %v1954 = vunpack.c.l.b16 %v1062
    %v1955 = vunpack.c.h.b16 %v1062
    %v1956 = vunpack.c.l.b16 %v1063
    %v1957 = vunpack.c.h.b16 %v1063
    %v1958 = vunpack.c.l.b16 %v1064
    %v1959 = vunpack.c.h.b16 %v1064
    %v1960 = vunpack.c.l.b16 %v1065
    %v1961 = vunpack.c.h.b16 %v1065
    %v1962 = vpack.c.b16 %v1392, %v1386
    %v1963 = vpack.c.b16 %v1393, %v1387
    %v1964 = vpack.c.b16 %v1394, %v1388
    %v1965 = vpack.c.b16 %v1395, %v1389
    %v1966 = vpack.c.b16 %v1396, %v1390
    %v1967 = vpack.c.b16 %v1397, %v1391
    %v1968 = vpack.c.b16 %v1404, %v1398
    %v1969 = vpack.c.b16 %v1405, %v1399
    %v1970 = vpack.c.b16 %v1406, %v1400
    %v1971 = vpack.c.b16 %v1407, %v1401
    %v1972 = vpack.c.b16 %v1408, %v1402
    %v1973 = vpack.c.b16 %v1409, %v1403
    %v1974 = vpack.c.b16 %v1416, %v1410
    %v1975 = vpack.c.b16 %v1417, %v1411
    %v1976 = vpack.c.b16 %v1418, %v1412
    %v1977 = vpack.c.b16 %v1419, %v1413
    %v1978 = vpack.c.b16 %v1420, %v1414
    %v1979 = vpack.c.b16 %v1421, %v1415
    %v1980 = vpack.c.b16 %v1428, %v1422
    %v1981 = vpack.c.b16 %v1429, %v1423
    %v1982 = vpack.c.b16 %v1430, %v1424
    %v1983 = vpack.c.b16 %v1431, %v1425
    %v1984 = vpack.c.b16 %v1432, %v1426
    %v1985 = vpack.c.b16 %v1433, %v1427
    %v1986 = vpack.c.b16 %v1440, %v1434
    %v1987 = vpack.c.b16 %v1441, %v1435
    %v1988 = vpack.c.b16 %v1442, %v1436
    %v1989 = vpack.c.b16 %v1443, %v1437
    %v1990 = vpack.c.b16 %v1444, %v1438
    %v1991 = vpack.c.b16 %v1445, %v1439
    %v1992 = vpack.c.b16 %v1452, %v1446
    %v1993 = vpack.c.b16 %v1453, %v1447
    %v1994 = vpack.c.b16 %v1454, %v1448
    %v1995 = vpack.c.b16 %v1455, %v1449
    %v1996 = vpack.c.b16 %v1456, %v1450
    %v1997 = vpack.c.b16 %v1457, %v1451
    %v1998 = vpack.c.b16 %v1464, %v1458
    %v1999 = vpack.c.b16 %v1465, %v1459
    %v2000 = vpack.c.b16 %v1466, %v1460
    %v2001 = vpack.c.b16 %v1467, %v1461
    %v2002 = vpack.c.b16 %v1468, %v1462
    %v2003 = vpack.c.b16 %v1469, %v1463
    %v2004 = vpack.c.b16 %v1476, %v1470
    %v2005 = vpack.c.b16 %v1477, %v1471
    %v2006 = vpack.c.b16 %v1478, %v1472
    %v2007 = vpack.c.b16 %v1479, %v1473
    %v2008 = vpack.c.b16 %v1480, %v1474
    %v2009 = vpack.c.b16 %v1481, %v1475
    %v2010 = vpack.c.b16 %v1488, %v1482
    %v2011 = vpack.c.b16 %v1489, %v1483
    %v2012 = vpack.c.b16 %v1490, %v1484
    %v2013 = vpack.c.b16 %v1491, %v1485
    %v2014 = vpack.c.b16 %v1492, %v1486
    %v2015 = vpack.c.b16 %v1493, %v1487
    %v2016 = vpack.c.b16 %v1500, %v1494
    %v2017 = vpack.c.b16 %v1501, %v1495
    %v2018 = vpack.c.b16 %v1502, %v1496
    %v2019 = vpack.c.b16 %v1503, %v1497
    %v2020 = vpack.c.b16 %v1504, %v1498
    %v2021 = vpack.c.b16 %v1505, %v1499
    %v2022 = vpack.c.b16 %v1512, %v1506
    %v2023 = vpack.c.b16 %v1513, %v1507
    %v2024 = vpack.c.b16 %v1514, %v1508
    %v2025 = vpack.c.b16 %v1515, %v1509
    %v2026 = vpack.c.b16 %v1516, %v1510
    %v2027 = vpack.c.b16 %v1517, %v1511
    %v2028 = vpack.c.b16 %v1524, %v1518
    %v2029 = vpack.c.b16 %v1525, %v1519
    %v2030 = vpack.c.b16 %v1526, %v1520
    %v2031 = vpack.c.b16 %v1527, %v1521
    %v2032 = vpack.c.b16 %v1528, %v1522
    %v2033 = vpack.c.b16 %v1529, %v1523
    %v2034 = vpack.c.b16 %v1536, %v1530
    %v2035 = vpack.c.b16 %v1537, %v1531
    %v2036 = vpack.c.b16 %v1538, %v1532
    %v2037 = vpack.c.b16 %v1539, %v1533
    %v2038 = vpack.c.b16 %v1540, %v1534
    %v2039 = vpack.c.b16 %v1541, %v1535
    %v2040 = vpack.c.b16 %v1548, %v1542
    %v2041 = vpack.c.b16 %v1549, %v1543
    %v2042 = vpack.c.b16 %v1550, %v1544
    %v2043 = vpack.c.b16 %v1551, %v1545
    %v2044 = vpack.c.b16 %v1552, %v1546
    %v2045 = vpack.c.b16 %v1553, %v1547
    %v2046 = vpack.c.b16 %v1560, %v1554
    %v2047 = vpack.c.b16 %v1561, %v1555
    %v2048 = vpack.c.b16 %v1562, %v1556
    %v2049 = vpack.c.b16 %v1563, %v1557
    %v2050 = vpack.c.b16 %v1564, %v1558
    %v2051 = vpack.c.b16 %v1565, %v1559
    %v2052 = vpack.c.b16 %v1572, %v1566
    %v2053 = vpack.c.b16 %v1573, %v1567
    %v2054 = vpack.c.b16 %v1574, %v1568
    %v2055 = vpack.c.b16 %v1575, %v1569
    %v2056 = vpack.c.b16 %v1576, %v1570
    %v2057 = vpack.c.b16 %v1577, %v1571
    %v2058 = vpack.c.b16 %v1584, %v1578
    %v2059 = vpack.c.b16 %v1585, %v1579
    %v2060 = vpack.c.b16 %v1586, %v1580
    %v2061 = vpack.c.b16 %v1587, %v1581
    %v2062 = vpack.c.b16 %v1588, %v1582
    %v2063 = vpack.c.b16 %v1589, %v1583
    %v2064 = vpack.c.b16 %v1596, %v1590
    %v2065 = vpack.c.b16 %v1597, %v1591
    %v2066 = vpack.c.b16 %v1598, %v1592
    %v2067 = vpack.c.b16 %v1599, %v1593
    %v2068 = vpack.c.b16 %v1600, %v1594
    %v2069 = vpack.c.b16 %v1601, %v1595
    %v2070 = vpack.c.b16 %v1608, %v1602
    %v2071 = vpack.c.b16 %v1609, %v1603
    %v2072 = vpack.c.b16 %v1610, %v1604
    %v2073 = vpack.c.b16 %v1611, %v1605
    %v2074 = vpack.c.b16 %v1612, %v1606
    %v2075 = vpack.c.b16 %v1613, %v1607
    %v2076 = vpack.c.b16 %v1620, %v1614
    %v2077 = vpack.c.b16 %v1621, %v1615
    %v2078 = vpack.c.b16 %v1622, %v1616
    %v2079 = vpack.c.b16 %v1623, %v1617
    %v2080 = vpack.c.b16 %v1624, %v1618
    %v2081 = vpack.c.b16 %v1625, %v1619
    %v2082 = vpack.c.b16 %v1632, %v1626
    %v2083 = vpack.c.b16 %v1633, %v1627
    %v2084 = vpack.c.b16 %v1634, %v1628
    %v2085 = vpack.c.b16 %v1635, %v1629
    %v2086 = vpack.c.b16 %v1636, %v1630
    %v2087 = vpack.c.b16 %v1637, %v1631
    %v2088 = vpack.c.b16 %v1644, %v1638
    %v2089 = vpack.c.b16 %v1645, %v1639
    %v2090 = vpack.c.b16 %v1646, %v1640
    %v2091 = vpack.c.b16 %v1647, %v1641
    %v2092 = vpack.c.b16 %v1648, %v1642
    %v2093 = vpack.c.b16 %v1649, %v1643
    %v2094 = vpack.c.b16 %v1656, %v1650
    %v2095 = vpack.c.b16 %v1657, %v1651
    %v2096 = vpack.c.b16 %v1658, %v1652
    %v2097 = vpack.c.b16 %v1659, %v1653
    %v2098 = vpack.c.b16 %v1660, %v1654
    %v2099 = vpack.c.b16 %v1661, %v1655
    %v2100 = vpack.c.b16 %v1668, %v1662
    %v2101 = vpack.c.b16 %v1669, %v1663
    %v2102 = vpack.c.b16 %v1670, %v1664
    %v2103 = vpack.c.b16 %v1671, %v1665
    %v2104 = vpack.c.b16 %v1672, %v1666
    %v2105 = vpack.c.b16 %v1673, %v1667
    %v2106 = vpack.c.b16 %v1680, %v1674
    %v2107 = vpack.c.b16 %v1681, %v1675
    %v2108 = vpack.c.b16 %v1682, %v1676
    %v2109 = vpack.c.b16 %v1683, %v1677
    %v2110 = vpack.c.b16 %v1684, %v1678
    %v2111 = vpack.c.b16 %v1685, %v1679
    %v2112 = vpack.c.b16 %v1692, %v1686
    %v2113 = vpack.c.b16 %v1693, %v1687
    %v2114 = vpack.c.b16 %v1694, %v1688
    %v2115 = vpack.c.b16 %v1695, %v1689
    %v2116 = vpack.c.b16 %v1696, %v1690
    %v2117 = vpack.c.b16 %v1697, %v1691
    %v2118 = vpack.c.b16 %v1704, %v1698
    %v2119 = vpack.c.b16 %v1705, %v1699
    %v2120 = vpack.c.b16 %v1706, %v1700
    %v2121 = vpack.c.b16 %v1707, %v1701
    %v2122 = vpack.c.b16 %v1708, %v1702
    %v2123 = vpack.c.b16 %v1709, %v1703
    %v2124 = vpack.c.b16 %v1716, %v1710
    %v2125 = vpack.c.b16 %v1717, %v1711
    %v2126 = vpack.c.b16 %v1718, %v1712
    %v2127 = vpack.c.b16 %v1719, %v1713
    %v2128 = vpack.c.b16 %v1720, %v1714
    %v2129 = vpack.c.b16 %v1721, %v1715
    %v2130 = vpack.c.b16 %v1728, %v1722
    %v2131 = vpack.c.b16 %v1729, %v1723
    %v2132 = vpack.c.b16 %v1730, %v1724
    %v2133 = vpack.c.b16 %v1731, %v1725
    %v2134 = vpack.c.b16 %v1732, %v1726
    %v2135 = vpack.c.b16 %v1733, %v1727
    %v2136 = vpack.c.b16 %v1740, %v1734
    %v2137 = vpack.c.b16 %v1741, %v1735
    %v2138 = vpack.c.b16 %v1742, %v1736
    %v2139 = vpack.c.b16 %v1743, %v1737
    %v2140 = vpack.c.b16 %v1744, %v1738
    %v2141 = vpack.c.b16 %v1745, %v1739
    %v2142 = vpack.c.b16 %v1752, %v1746
    %v2143 = vpack.c.b16 %v1753, %v1747
    %v2144 = vpack.c.b16 %v1754, %v1748
    %v2145 = vpack.c.b16 %v1755, %v1749
    %v2146 = vpack.c.b16 %v1756, %v1750
    %v2147 = vpack.c.b16 %v1757, %v1751
    %v2148 = vpack.c.b16 %v1764, %v1758
    %v2149 = vpack.c.b16 %v1765, %v1759
    %v2150 = vpack.c.b16 %v1766, %v1760
    %v2151 = vpack.c.b16 %v1767, %v1761
    %v2152 = vpack.c.b16 %v1768, %v1762
    %v2153 = vpack.c.b16 %v1769, %v1763
    %v2154 = vpack.c.b16 %v1776, %v1770
    %v2155 = vpack.c.b16 %v1777, %v1771
    %v2156 = vpack.c.b16 %v1778, %v1772
    %v2157 = vpack.c.b16 %v1779, %v1773
    %v2158 = vpack.c.b16 %v1780, %v1774
    %v2159 = vpack.c.b16 %v1781, %v1775
    %v2160 = vpack.c.b16 %v1788, %v1782
    %v2161 = vpack.c.b16 %v1789, %v1783
    %v2162 = vpack.c.b16 %v1790, %v1784
    %v2163 = vpack.c.b16 %v1791, %v1785
    %v2164 = vpack.c.b16 %v1792, %v1786
    %v2165 = vpack.c.b16 %v1793, %v1787
    %v2166 = vpack.c.b16 %v1800, %v1794
    %v2167 = vpack.c.b16 %v1801, %v1795
    %v2168 = vpack.c.b16 %v1802, %v1796
    %v2169 = vpack.c.b16 %v1803, %v1797
    %v2170 = vpack.c.b16 %v1804, %v1798
    %v2171 = vpack.c.b16 %v1805, %v1799
    %v2172 = vpack.c.b16 %v1812, %v1806
    %v2173 = vpack.c.b16 %v1813, %v1807
    %v2174 = vpack.c.b16 %v1814, %v1808
    %v2175 = vpack.c.b16 %v1815, %v1809
    %v2176 = vpack.c.b16 %v1816, %v1810
    %v2177 = vpack.c.b16 %v1817, %v1811
    %v2178 = vpack.c.b16 %v1824, %v1818
    %v2179 = vpack.c.b16 %v1825, %v1819
    %v2180 = vpack.c.b16 %v1826, %v1820
    %v2181 = vpack.c.b16 %v1827, %v1821
    %v2182 = vpack.c.b16 %v1828, %v1822
    %v2183 = vpack.c.b16 %v1829, %v1823
    %v2184 = vpack.c.b16 %v1836, %v1830
    %v2185 = vpack.c.b16 %v1837, %v1831
    %v2186 = vpack.c.b16 %v1838, %v1832
    %v2187 = vpack.c.b16 %v1839, %v1833
    %v2188 = vpack.c.b16 %v1840, %v1834
    %v2189 = vpack.c.b16 %v1841, %v1835
    %v2190 = vpack.c.b16 %v1848, %v1842
    %v2191 = vpack.c.b16 %v1849, %v1843
    %v2192 = vpack.c.b16 %v1850, %v1844
    %v2193 = vpack.c.b16 %v1851, %v1845
    %v2194 = vpack.c.b16 %v1852, %v1846
    %v2195 = vpack.c.b16 %v1853, %v1847
    %v2196 = vpack.c.b16 %v1860, %v1854
    %v2197 = vpack.c.b16 %v1861, %v1855
    %v2198 = vpack.c.b16 %v1862, %v1856
    %v2199 = vpack.c.b16 %v1863, %v1857
    %v2200 = vpack.c.b16 %v1864, %v1858
    %v2201 = vpack.c.b16 %v1865, %v1859
    %v2202 = vpack.c.b16 %v1872, %v1866
    %v2203 = vpack.c.b16 %v1873, %v1867
    %v2204 = vpack.c.b16 %v1874, %v1868
    %v2205 = vpack.c.b16 %v1875, %v1869
    %v2206 = vpack.c.b16 %v1876, %v1870
    %v2207 = vpack.c.b16 %v1877, %v1871
    %v2208 = vpack.c.b16 %v1884, %v1878
    %v2209 = vpack.c.b16 %v1885, %v1879
    %v2210 = vpack.c.b16 %v1886, %v1880
    %v2211 = vpack.c.b16 %v1887, %v1881
    %v2212 = vpack.c.b16 %v1888, %v1882
    %v2213 = vpack.c.b16 %v1889, %v1883
    %v2214 = vpack.c.b16 %v1896, %v1890
    %v2215 = vpack.c.b16 %v1897, %v1891
    %v2216 = vpack.c.b16 %v1898, %v1892
    %v2217 = vpack.c.b16 %v1899, %v1893
    %v2218 = vpack.c.b16 %v1900, %v1894
    %v2219 = vpack.c.b16 %v1901, %v1895
    %v2220 = vpack.c.b16 %v1908, %v1902
    %v2221 = vpack.c.b16 %v1909, %v1903
    %v2222 = vpack.c.b16 %v1910, %v1904
    %v2223 = vpack.c.b16 %v1911, %v1905
    %v2224 = vpack.c.b16 %v1912, %v1906
    %v2225 = vpack.c.b16 %v1913, %v1907
    %v2226 = vpack.c.b16 %v1920, %v1914
    %v2227 = vpack.c.b16 %v1921, %v1915
    %v2228 = vpack.c.b16 %v1922, %v1916
    %v2229 = vpack.c.b16 %v1923, %v1917
    %v2230 = vpack.c.b16 %v1924, %v1918
    %v2231 = vpack.c.b16 %v1925, %v1919
    %v2232 = vpack.c.b16 %v1932, %v1926
    %v2233 = vpack.c.b16 %v1933, %v1927
    %v2234 = vpack.c.b16 %v1934, %v1928
    %v2235 = vpack.c.b16 %v1935, %v1929
    %v2236 = vpack.c.b16 %v1936, %v1930
    %v2237 = vpack.c.b16 %v1937, %v1931
    %v2238 = vpack.c.b16 %v1944, %v1938
    %v2239 = vpack.c.b16 %v1945, %v1939
    %v2240 = vpack.c.b16 %v1946, %v1940
    %v2241 = vpack.c.b16 %v1947, %v1941
    %v2242 = vpack.c.b16 %v1948, %v1942
    %v2243 = vpack.c.b16 %v1949, %v1943
    %v2244 = vpack.c.b16 %v1956, %v1950
    %v2245 = vpack.c.b16 %v1957, %v1951
    %v2246 = vpack.c.b16 %v1958, %v1952
    %v2247 = vpack.c.b16 %v1959, %v1953
    %v2248 = vpack.c.b16 %v1960, %v1954
    %v2249 = vpack.c.b16 %v1961, %v1955
    %2538 = vmatprep.subr.bf16.mxu0 %v1963
    %2539 = vmatpush1.bf16.msra.mxu0 %v1962
    %2540 = vmatprep.subr.bf16.mxu0 %v1969
    %2541 = vmatpush1.bf16.msra.mxu0 %v1968
    %2542 = vmatprep.subr.bf16.mxu0 %v1975
    %2543 = vmatpush1.bf16.msra.mxu0 %v1974
    %2544 = vmatprep.subr.bf16.mxu0 %v1981
    %2545 = vmatpush1.bf16.msra.mxu0 %v1980
    %2546 = vmatprep.subr.bf16.mxu0 %v1987
    %2547 = vmatpush1.bf16.msra.mxu0 %v1986
    %2548 = vmatprep.subr.bf16.mxu0 %v1993
    %2549 = vmatpush1.bf16.msra.mxu0 %v1992
    %2550 = vmatprep.subr.bf16.mxu0 %v1999
    %2551 = vmatpush1.bf16.msra.mxu0 %v1998
    %2552 = vmatprep.subr.bf16.mxu0 %v2005
    %2553 = vmatpush1.bf16.msra.mxu0 %v2004
    %2554 = vmatprep.subr.bf16.mxu0 %v2011
    %2555 = vmatpush1.bf16.msra.mxu0 %v2010
    %2556 = vmatprep.subr.bf16.mxu0 %v2017
    %2557 = vmatpush1.bf16.msra.mxu0 %v2016
    %2558 = vmatprep.subr.bf16.mxu0 %v2023
    %2559 = vmatpush1.bf16.msra.mxu0 %v2022
    %2560 = vmatprep.subr.bf16.mxu0 %v2029
    %2561 = vmatpush1.bf16.msra.mxu0 %v2028
    %2562 = vmatprep.subr.bf16.mxu0 %v2035
    %2563 = vmatpush1.bf16.msra.mxu0 %v2034
    %2564 = vmatprep.subr.bf16.mxu0 %v2041
    %2565 = vmatpush1.bf16.msra.mxu0 %v2040
    %2566 = vmatprep.subr.bf16.mxu0 %v2047
    %2567 = vmatpush1.bf16.msra.mxu0 %v2046
    %2568 = vmatprep.subr.bf16.mxu0 %v2053
    %2569 = vmatpush1.bf16.msra.mxu0 %v2052
    %2570 = vmatprep.mubr.bf16.mxu0 %v773
    %2571 = vmatmul.mubr.bf16.gmra.mrb[0].mxu0 %v772
    %v2572 = vpop.f32.mrb[0].mxu0
    %v2573 = vadd.f32 %v1071, %v2572
    %v2574 = vpop.f32.mrb[0].mxu0
    %v2575 = vadd.f32 %v1075, %v2574
    %v2576 = vpop.f32.mrb[0].mxu0
    %v2577 = vpop.f32.mrb[0].mxu0
    %2578 = vdwg.mxu0
    %2579 = vmatprep.subr.bf16.mxu0 %v2059
    %2580 = vmatpush1.bf16.msra.mxu0 %v2058
    %2581 = vmatprep.subr.bf16.mxu0 %v2065
    %2582 = vmatpush1.bf16.msra.mxu0 %v2064
    %2583 = vmatprep.subr.bf16.mxu0 %v2071
    %2584 = vmatpush1.bf16.msra.mxu0 %v2070
    %2585 = vmatprep.subr.bf16.mxu0 %v2077
    %2586 = vmatpush1.bf16.msra.mxu0 %v2076
    %2587 = vmatprep.subr.bf16.mxu0 %v2083
    %2588 = vmatpush1.bf16.msra.mxu0 %v2082
    %2589 = vmatprep.subr.bf16.mxu0 %v2089
    %2590 = vmatpush1.bf16.msra.mxu0 %v2088
    %2591 = vmatprep.subr.bf16.mxu0 %v2095
    %2592 = vmatpush1.bf16.msra.mxu0 %v2094
    %2593 = vmatprep.subr.bf16.mxu0 %v2101
    %2594 = vmatpush1.bf16.msra.mxu0 %v2100
    %2595 = vmatprep.subr.bf16.mxu0 %v2107
    %2596 = vmatpush1.bf16.msra.mxu0 %v2106
    %2597 = vmatprep.subr.bf16.mxu0 %v2113
    %2598 = vmatpush1.bf16.msra.mxu0 %v2112
    %2599 = vmatprep.subr.bf16.mxu0 %v2119
    %2600 = vmatpush1.bf16.msra.mxu0 %v2118
    %2601 = vmatprep.subr.bf16.mxu0 %v2125
    %2602 = vmatpush1.bf16.msra.mxu0 %v2124
    %2603 = vmatprep.subr.bf16.mxu0 %v2131
    %2604 = vmatpush1.bf16.msra.mxu0 %v2130
    %2605 = vmatprep.subr.bf16.mxu0 %v2137
    %2606 = vmatpush1.bf16.msra.mxu0 %v2136
    %2607 = vmatprep.subr.bf16.mxu0 %v2143
    %2608 = vmatpush1.bf16.msra.mxu0 %v2142
    %2609 = vmatprep.subr.bf16.mxu0 %v2149
    %2610 = vmatpush1.bf16.msra.mxu0 %v2148
    %2611 = vmatprep.mubr.bf16.mxu0 %v775
    %2612 = vmatmul.mubr.bf16.gmra.mrb[0].mxu0 %v774
    %v2613 = vpop.f32.mrb[0].mxu0
    %v2614 = vadd.f32 %v2573, %v2613
    %v2615 = vpop.f32.mrb[0].mxu0
    %v2616 = vadd.f32 %v2575, %v2615
    %v2617 = vpop.f32.mrb[0].mxu0
    %v2618 = vpop.f32.mrb[0].mxu0
    %2619 = vdwg.mxu0
    %2620 = vmatprep.subr.bf16.mxu0 %v2155
    %2621 = vmatpush1.bf16.msra.mxu0 %v2154
    %2622 = vmatprep.subr.bf16.mxu0 %v2161
    %2623 = vmatpush1.bf16.msra.mxu0 %v2160
    %2624 = vmatprep.subr.bf16.mxu0 %v2167
    %2625 = vmatpush1.bf16.msra.mxu0 %v2166
    %2626 = vmatprep.subr.bf16.mxu0 %v2173
    %2627 = vmatpush1.bf16.msra.mxu0 %v2172
    %2628 = vmatprep.subr.bf16.mxu0 %v2179
    %2629 = vmatpush1.bf16.msra.mxu0 %v2178
    %2630 = vmatprep.subr.bf16.mxu0 %v2185
    %2631 = vmatpush1.bf16.msra.mxu0 %v2184
    %2632 = vmatprep.subr.bf16.mxu0 %v2191
    %2633 = vmatpush1.bf16.msra.mxu0 %v2190
    %2634 = vmatprep.subr.bf16.mxu0 %v2197
    %2635 = vmatpush1.bf16.msra.mxu0 %v2196
    %2636 = vmatprep.subr.bf16.mxu0 %v2203
    %2637 = vmatpush1.bf16.msra.mxu0 %v2202
    %2638 = vmatprep.subr.bf16.mxu0 %v2209
    %2639 = vmatpush1.bf16.msra.mxu0 %v2208
    %2640 = vmatprep.subr.bf16.mxu0 %v2215
    %2641 = vmatpush1.bf16.msra.mxu0 %v2214
    %2642 = vmatprep.subr.bf16.mxu0 %v2221
    %2643 = vmatpush1.bf16.msra.mxu0 %v2220
    %2644 = vmatprep.subr.bf16.mxu0 %v2227
    %2645 = vmatpush1.bf16.msra.mxu0 %v2226
    %2646 = vmatprep.subr.bf16.mxu0 %v2233
    %2647 = vmatpush1.bf16.msra.mxu0 %v2232
    %2648 = vmatprep.subr.bf16.mxu0 %v2239
    %2649 = vmatpush1.bf16.msra.mxu0 %v2238
    %2650 = vmatprep.subr.bf16.mxu0 %v2245
    %2651 = vmatpush1.bf16.msra.mxu0 %v2244
    %2652 = vmatprep.mubr.bf16.mxu0 %v777
    %2653 = vmatmul.mubr.bf16.gmra.mrb[0].mxu0 %v776
    %v2654 = vpop.f32.mrb[0].mxu0
    %v2655 = vadd.f32 %v2614, %v2654
    %v2656 = vpop.f32.mrb[0].mxu0
    %v2657 = vadd.f32 %v2616, %v2656
    %v2658 = vpop.f32.mrb[0].mxu0
    %v2659 = vpop.f32.mrb[0].mxu0
    %2660 = vdwg.mxu0
    %2661 = vmatprep.subr.bf16.mxu0 %v1965
    %2662 = vmatpush1.bf16.msra.mxu0 %v1964
    %2663 = vmatprep.subr.bf16.mxu0 %v1971
    %2664 = vmatpush1.bf16.msra.mxu0 %v1970
    %2665 = vmatprep.subr.bf16.mxu0 %v1977
    %2666 = vmatpush1.bf16.msra.mxu0 %v1976
    %2667 = vmatprep.subr.bf16.mxu0 %v1983
    %2668 = vmatpush1.bf16.msra.mxu0 %v1982
    %2669 = vmatprep.subr.bf16.mxu0 %v1989
    %2670 = vmatpush1.bf16.msra.mxu0 %v1988
    %2671 = vmatprep.subr.bf16.mxu0 %v1995
    %2672 = vmatpush1.bf16.msra.mxu0 %v1994
    %2673 = vmatprep.subr.bf16.mxu0 %v2001
    %2674 = vmatpush1.bf16.msra.mxu0 %v2000
    %2675 = vmatprep.subr.bf16.mxu0 %v2007
    %2676 = vmatpush1.bf16.msra.mxu0 %v2006
    %2677 = vmatprep.subr.bf16.mxu0 %v2013
    %2678 = vmatpush1.bf16.msra.mxu0 %v2012
    %2679 = vmatprep.subr.bf16.mxu0 %v2019
    %2680 = vmatpush1.bf16.msra.mxu0 %v2018
    %2681 = vmatprep.subr.bf16.mxu0 %v2025
    %2682 = vmatpush1.bf16.msra.mxu0 %v2024
    %2683 = vmatprep.subr.bf16.mxu0 %v2031
    %2684 = vmatpush1.bf16.msra.mxu0 %v2030
    %2685 = vmatprep.subr.bf16.mxu0 %v2037
    %2686 = vmatpush1.bf16.msra.mxu0 %v2036
    %2687 = vmatprep.subr.bf16.mxu0 %v2043
    %2688 = vmatpush1.bf16.msra.mxu0 %v2042
    %2689 = vmatprep.subr.bf16.mxu0 %v2049
    %2690 = vmatpush1.bf16.msra.mxu0 %v2048
    %2691 = vmatprep.subr.bf16.mxu0 %v2055
    %2692 = vmatpush1.bf16.msra.mxu0 %v2054
    %2693 = vmatprep.mubr.bf16.mxu0 %v773
    %2694 = vmatmul.mubr.bf16.gmra.mrb[0].mxu0 %v772
    %v2695 = vpop.f32.mrb[0].mxu0
    %v2696 = vadd.f32 %v1079, %v2695
    %v2697 = vpop.f32.mrb[0].mxu0
    %v2698 = vadd.f32 %v1083, %v2697
    %v2699 = vpop.f32.mrb[0].mxu0
    %v2700 = vpop.f32.mrb[0].mxu0
    %2701 = vdwg.mxu0
    %2702 = vmatprep.subr.bf16.mxu0 %v2061
    %2703 = vmatpush1.bf16.msra.mxu0 %v2060
    %2704 = vmatprep.subr.bf16.mxu0 %v2067
    %2705 = vmatpush1.bf16.msra.mxu0 %v2066
    %2706 = vmatprep.subr.bf16.mxu0 %v2073
    %2707 = vmatpush1.bf16.msra.mxu0 %v2072
    %2708 = vmatprep.subr.bf16.mxu0 %v2079
    %2709 = vmatpush1.bf16.msra.mxu0 %v2078
    %2710 = vmatprep.subr.bf16.mxu0 %v2085
    %2711 = vmatpush1.bf16.msra.mxu0 %v2084
    %2712 = vmatprep.subr.bf16.mxu0 %v2091
    %2713 = vmatpush1.bf16.msra.mxu0 %v2090
    %2714 = vmatprep.subr.bf16.mxu0 %v2097
    %2715 = vmatpush1.bf16.msra.mxu0 %v2096
    %2716 = vmatprep.subr.bf16.mxu0 %v2103
    %2717 = vmatpush1.bf16.msra.mxu0 %v2102
    %2718 = vmatprep.subr.bf16.mxu0 %v2109
    %2719 = vmatpush1.bf16.msra.mxu0 %v2108
    %2720 = vmatprep.subr.bf16.mxu0 %v2115
    %2721 = vmatpush1.bf16.msra.mxu0 %v2114
    %2722 = vmatprep.subr.bf16.mxu0 %v2121
    %2723 = vmatpush1.bf16.msra.mxu0 %v2120
    %2724 = vmatprep.subr.bf16.mxu0 %v2127
    %2725 = vmatpush1.bf16.msra.mxu0 %v2126
    %2726 = vmatprep.subr.bf16.mxu0 %v2133
    %2727 = vmatpush1.bf16.msra.mxu0 %v2132
    %2728 = vmatprep.subr.bf16.mxu0 %v2139
    %2729 = vmatpush1.bf16.msra.mxu0 %v2138
    %2730 = vmatprep.subr.bf16.mxu0 %v2145
    %2731 = vmatpush1.bf16.msra.mxu0 %v2144
    %2732 = vmatprep.subr.bf16.mxu0 %v2151
    %2733 = vmatpush1.bf16.msra.mxu0 %v2150
    %2734 = vmatprep.mubr.bf16.mxu0 %v775
    %2735 = vmatmul.mubr.bf16.gmra.mrb[0].mxu0 %v774
    %v2736 = vpop.f32.mrb[0].mxu0
    %v2737 = vadd.f32 %v2696, %v2736
    %v2738 = vpop.f32.mrb[0].mxu0
    %v2739 = vadd.f32 %v2698, %v2738
    %v2740 = vpop.f32.mrb[0].mxu0
    %v2741 = vpop.f32.mrb[0].mxu0
    %2742 = vdwg.mxu0
    %2743 = vmatprep.subr.bf16.mxu0 %v2157
    %2744 = vmatpush1.bf16.msra.mxu0 %v2156
    %2745 = vmatprep.subr.bf16.mxu0 %v2163
    %2746 = vmatpush1.bf16.msra.mxu0 %v2162
    %2747 = vmatprep.subr.bf16.mxu0 %v2169
    %2748 = vmatpush1.bf16.msra.mxu0 %v2168
    %2749 = vmatprep.subr.bf16.mxu0 %v2175
    %2750 = vmatpush1.bf16.msra.mxu0 %v2174
    %2751 = vmatprep.subr.bf16.mxu0 %v2181
    %2752 = vmatpush1.bf16.msra.mxu0 %v2180
    %2753 = vmatprep.subr.bf16.mxu0 %v2187
    %2754 = vmatpush1.bf16.msra.mxu0 %v2186
    %2755 = vmatprep.subr.bf16.mxu0 %v2193
    %2756 = vmatpush1.bf16.msra.mxu0 %v2192
    %2757 = vmatprep.subr.bf16.mxu0 %v2199
    %2758 = vmatpush1.bf16.msra.mxu0 %v2198
    %2759 = vmatprep.subr.bf16.mxu0 %v2205
    %2760 = vmatpush1.bf16.msra.mxu0 %v2204
    %2761 = vmatprep.subr.bf16.mxu0 %v2211
    %2762 = vmatpush1.bf16.msra.mxu0 %v2210
    %2763 = vmatprep.subr.bf16.mxu0 %v2217
    %2764 = vmatpush1.bf16.msra.mxu0 %v2216
    %2765 = vmatprep.subr.bf16.mxu0 %v2223
    %2766 = vmatpush1.bf16.msra.mxu0 %v2222
    %2767 = vmatprep.subr.bf16.mxu0 %v2229
    %2768 = vmatpush1.bf16.msra.mxu0 %v2228
    %2769 = vmatprep.subr.bf16.mxu0 %v2235
    %2770 = vmatpush1.bf16.msra.mxu0 %v2234
    %2771 = vmatprep.subr.bf16.mxu0 %v2241
    %2772 = vmatpush1.bf16.msra.mxu0 %v2240
    %2773 = vmatprep.subr.bf16.mxu0 %v2247
    %2774 = vmatpush1.bf16.msra.mxu0 %v2246
    %2775 = vmatprep.mubr.bf16.mxu0 %v777
    %2776 = vmatmul.mubr.bf16.gmra.mrb[0].mxu0 %v776
    %v2777 = vpop.f32.mrb[0].mxu0
    %v2778 = vadd.f32 %v2737, %v2777
    %v2779 = vpop.f32.mrb[0].mxu0
    %v2780 = vadd.f32 %v2739, %v2779
    %v2781 = vpop.f32.mrb[0].mxu0
    %v2782 = vpop.f32.mrb[0].mxu0
    %2783 = vdwg.mxu0
    %2784 = vmatprep.subr.bf16.mxu0 %v1967
    %2785 = vmatpush1.bf16.msra.mxu0 %v1966
    %2786 = vmatprep.subr.bf16.mxu0 %v1973
    %2787 = vmatpush1.bf16.msra.mxu0 %v1972
    %2788 = vmatprep.subr.bf16.mxu0 %v1979
    %2789 = vmatpush1.bf16.msra.mxu0 %v1978
    %2790 = vmatprep.subr.bf16.mxu0 %v1985
    %2791 = vmatpush1.bf16.msra.mxu0 %v1984
    %2792 = vmatprep.subr.bf16.mxu0 %v1991
    %2793 = vmatpush1.bf16.msra.mxu0 %v1990
    %2794 = vmatprep.subr.bf16.mxu0 %v1997
    %2795 = vmatpush1.bf16.msra.mxu0 %v1996
    %2796 = vmatprep.subr.bf16.mxu0 %v2003
    %2797 = vmatpush1.bf16.msra.mxu0 %v2002
    %2798 = vmatprep.subr.bf16.mxu0 %v2009
    %2799 = vmatpush1.bf16.msra.mxu0 %v2008
    %2800 = vmatprep.subr.bf16.mxu0 %v2015
    %2801 = vmatpush1.bf16.msra.mxu0 %v2014
    %2802 = vmatprep.subr.bf16.mxu0 %v2021
    %2803 = vmatpush1.bf16.msra.mxu0 %v2020
    %2804 = vmatprep.subr.bf16.mxu0 %v2027
    %2805 = vmatpush1.bf16.msra.mxu0 %v2026
    %2806 = vmatprep.subr.bf16.mxu0 %v2033
    %2807 = vmatpush1.bf16.msra.mxu0 %v2032
    %2808 = vmatprep.subr.bf16.mxu0 %v2039
    %2809 = vmatpush1.bf16.msra.mxu0 %v2038
    %2810 = vmatprep.subr.bf16.mxu0 %v2045
    %2811 = vmatpush1.bf16.msra.mxu0 %v2044
    %2812 = vmatprep.subr.bf16.mxu0 %v2051
    %2813 = vmatpush1.bf16.msra.mxu0 %v2050
    %2814 = vmatprep.subr.bf16.mxu0 %v2057
    %2815 = vmatpush1.bf16.msra.mxu0 %v2056
    %2816 = vmatprep.mubr.bf16.mxu0 %v773
    %2817 = vmatmul.mubr.bf16.gmra.mrb[0].mxu0 %v772
    %v2818 = vpop.f32.mrb[0].mxu0
    %v2819 = vadd.f32 %v1087, %v2818
    %v2820 = vpop.f32.mrb[0].mxu0
    %v2821 = vadd.f32 %v1091, %v2820
    %v2822 = vpop.f32.mrb[0].mxu0
    %v2823 = vpop.f32.mrb[0].mxu0
    %2824 = vdwg.mxu0
    %2825 = vmatprep.subr.bf16.mxu0 %v2063
    %2826 = vmatpush1.bf16.msra.mxu0 %v2062
    %2827 = vmatprep.subr.bf16.mxu0 %v2069
    %2828 = vmatpush1.bf16.msra.mxu0 %v2068
    %2829 = vmatprep.subr.bf16.mxu0 %v2075
    %2830 = vmatpush1.bf16.msra.mxu0 %v2074
    %2831 = vmatprep.subr.bf16.mxu0 %v2081
    %2832 = vmatpush1.bf16.msra.mxu0 %v2080
    %2833 = vmatprep.subr.bf16.mxu0 %v2087
    %2834 = vmatpush1.bf16.msra.mxu0 %v2086
    %2835 = vmatprep.subr.bf16.mxu0 %v2093
    %2836 = vmatpush1.bf16.msra.mxu0 %v2092
    %2837 = vmatprep.subr.bf16.mxu0 %v2099
    %2838 = vmatpush1.bf16.msra.mxu0 %v2098
    %2839 = vmatprep.subr.bf16.mxu0 %v2105
    %2840 = vmatpush1.bf16.msra.mxu0 %v2104
    %2841 = vmatprep.subr.bf16.mxu0 %v2111
    %2842 = vmatpush1.bf16.msra.mxu0 %v2110
    %2843 = vmatprep.subr.bf16.mxu0 %v2117
    %2844 = vmatpush1.bf16.msra.mxu0 %v2116
    %2845 = vmatprep.subr.bf16.mxu0 %v2123
    %2846 = vmatpush1.bf16.msra.mxu0 %v2122
    %2847 = vmatprep.subr.bf16.mxu0 %v2129
    %2848 = vmatpush1.bf16.msra.mxu0 %v2128
    %2849 = vmatprep.subr.bf16.mxu0 %v2135
    %2850 = vmatpush1.bf16.msra.mxu0 %v2134
    %2851 = vmatprep.subr.bf16.mxu0 %v2141
    %2852 = vmatpush1.bf16.msra.mxu0 %v2140
    %2853 = vmatprep.subr.bf16.mxu0 %v2147
    %2854 = vmatpush1.bf16.msra.mxu0 %v2146
    %2855 = vmatprep.subr.bf16.mxu0 %v2153
    %2856 = vmatpush1.bf16.msra.mxu0 %v2152
    %2857 = vmatprep.mubr.bf16.mxu0 %v775
    %2858 = vmatmul.mubr.bf16.gmra.mrb[0].mxu0 %v774
    %v2859 = vpop.f32.mrb[0].mxu0
    %v2860 = vadd.f32 %v2819, %v2859
    %v2861 = vpop.f32.mrb[0].mxu0
    %v2862 = vadd.f32 %v2821, %v2861
    %v2863 = vpop.f32.mrb[0].mxu0
    %v2864 = vpop.f32.mrb[0].mxu0
    %2865 = vdwg.mxu0
    %2866 = vmatprep.subr.bf16.mxu0 %v2159
    %2867 = vmatpush1.bf16.msra.mxu0 %v2158
    %2868 = vmatprep.subr.bf16.mxu0 %v2165
    %2869 = vmatpush1.bf16.msra.mxu0 %v2164
    %2870 = vmatprep.subr.bf16.mxu0 %v2171
    %2871 = vmatpush1.bf16.msra.mxu0 %v2170
    %2872 = vmatprep.subr.bf16.mxu0 %v2177
    %2873 = vmatpush1.bf16.msra.mxu0 %v2176
    %2874 = vmatprep.subr.bf16.mxu0 %v2183
    %2875 = vmatpush1.bf16.msra.mxu0 %v2182
    %2876 = vmatprep.subr.bf16.mxu0 %v2189
    %2877 = vmatpush1.bf16.msra.mxu0 %v2188
    %2878 = vmatprep.subr.bf16.mxu0 %v2195
    %2879 = vmatpush1.bf16.msra.mxu0 %v2194
    %2880 = vmatprep.subr.bf16.mxu0 %v2201
    %2881 = vmatpush1.bf16.msra.mxu0 %v2200
    %2882 = vmatprep.subr.bf16.mxu0 %v2207
    %2883 = vmatpush1.bf16.msra.mxu0 %v2206
    %2884 = vmatprep.subr.bf16.mxu0 %v2213
    %2885 = vmatpush1.bf16.msra.mxu0 %v2212
    %2886 = vmatprep.subr.bf16.mxu0 %v2219
    %2887 = vmatpush1.bf16.msra.mxu0 %v2218
    %2888 = vmatprep.subr.bf16.mxu0 %v2225
    %2889 = vmatpush1.bf16.msra.mxu0 %v2224
    %2890 = vmatprep.subr.bf16.mxu0 %v2231
    %2891 = vmatpush1.bf16.msra.mxu0 %v2230
    %2892 = vmatprep.subr.bf16.mxu0 %v2237
    %2893 = vmatpush1.bf16.msra.mxu0 %v2236
    %2894 = vmatprep.subr.bf16.mxu0 %v2243
    %2895 = vmatpush1.bf16.msra.mxu0 %v2242
    %2896 = vmatprep.subr.bf16.mxu0 %v2249
    %2897 = vmatpush1.bf16.msra.mxu0 %v2248
    %2898 = vmatprep.mubr.bf16.mxu0 %v777
    %2899 = vmatmul.mubr.bf16.gmra.mrb[0].mxu0 %v776
    %v2900 = vpop.f32.mrb[0].mxu0
    %v2901 = vadd.f32 %v2860, %v2900
    %v2902 = vpop.f32.mrb[0].mxu0
    %v2903 = vadd.f32 %v2862, %v2902
    %v2904 = vpop.f32.mrb[0].mxu0
    %v2905 = vpop.f32.mrb[0].mxu0
    %2906 = vdwg.mxu0
    %v2907 = vmax.f32 %v2655, 0.0
    %v2908 = vmax.f32 %v2657, 0.0
    %v2909 = vmax.f32 %v2778, 0.0
    %v2910 = vmax.f32 %v2780, 0.0
    %v2911 = vmax.f32 %v2901, 0.0
    %v2912 = vmax.f32 %v2903, 0.0
    %v2913 = vpack.c.bf16 %v2907, %v2907
    %v2914 = vpack.c.bf16 %v2908, %v2908
    %v2915 = vpack.c.bf16 %v2909, %v2909
    %v2916 = vpack.c.bf16 %v2910, %v2910
    %v2917 = vpack.c.bf16 %v2911, %v2911
    %v2918 = vpack.c.bf16 %v2912, %v2912
    %v2919 = vld [vmem:[%s5] sm:$0xf]
    %v2920 = vld [vmem:[%s5 + $0x4] sm:$0xf]
    %v2921 = vld [vmem:[%s5 + $0x8] sm:$0xf]
    %v2922 = vld [vmem:[%s5 + $0xc] sm:$0xf]
    %v2923 = vld [vmem:[%s5 + $0x10] sm:$0xf]
    %v2924 = vld [vmem:[%s5 + $0x14] sm:$0xf]
    %v2925 = vld [vmem:[%s5 + $0x18] sm:$0xf]
    %v2926 = vld [vmem:[%s5 + $0x1c] sm:$0xf]
    %v2927 = vld [vmem:[%s5 + $0x20] sm:$0xf]
    %v2928 = vld [vmem:[%s5 + $0x24] sm:$0xf]
    %v2929 = vld [vmem:[%s5 + $0x28] sm:$0xf]
    %v2930 = vld [vmem:[%s5 + $0x2c] sm:$0xf]
    %v2931 = vld [vmem:[%s5 + $0x30] sm:$0xf]
    %v2932 = vld [vmem:[%s5 + $0x34] sm:$0xf]
    %v2933 = vld [vmem:[%s5 + $0x38] sm:$0xf]
    %v2934 = vld [vmem:[%s5 + $0x3c] sm:$0xf]
    %v2935 = vld [vmem:[%s5 + $0x40] sm:$0xf]
    %v2936 = vld [vmem:[%s5 + $0x44] sm:$0xf]
    %v2937 = vld [vmem:[%s5 + $0x48] sm:$0xf]
    %v2938 = vld [vmem:[%s5 + $0x4c] sm:$0xf]
    %v2939 = vld [vmem:[%s5 + $0x50] sm:$0xf]
    %v2940 = vld [vmem:[%s5 + $0x54] sm:$0xf]
    %v2941 = vld [vmem:[%s5 + $0x58] sm:$0xf]
    %v2942 = vld [vmem:[%s5 + $0x5c] sm:$0xf]
    %v2943 = vld [vmem:[%s5 + $0x60] sm:$0xf]
    %v2944 = vld [vmem:[%s5 + $0x64] sm:$0xf]
    %v2945 = vld [vmem:[%s5 + $0x68] sm:$0xf]
    %v2946 = vld [vmem:[%s5 + $0x6c] sm:$0xf]
    %v2947 = vld [vmem:[%s5 + $0x70] sm:$0xf]
    %v2948 = vld [vmem:[%s5 + $0x74] sm:$0xf]
    %v2949 = vld [vmem:[%s5 + $0x78] sm:$0xf]
    %v2950 = vld [vmem:[%s5 + $0x7c] sm:$0xf]
    %v2951 = vld [vmem:[%s5 + $0x80] sm:$0xf]
    %v2952 = vld [vmem:[%s5 + $0x84] sm:$0xf]
    %v2953 = vld [vmem:[%s5 + $0x88] sm:$0xf]
    %v2954 = vld [vmem:[%s5 + $0x8c] sm:$0xf]
    %v2955 = vld [vmem:[%s5 + $0x90] sm:$0xf]
    %v2956 = vld [vmem:[%s5 + $0x94] sm:$0xf]
    %v2957 = vld [vmem:[%s5 + $0x98] sm:$0xf]
    %v2958 = vld [vmem:[%s5 + $0x9c] sm:$0xf]
    %v2959 = vld [vmem:[%s5 + $0xa0] sm:$0xf]
    %v2960 = vld [vmem:[%s5 + $0xa4] sm:$0xf]
    %v2961 = vld [vmem:[%s5 + $0xa8] sm:$0xf]
    %v2962 = vld [vmem:[%s5 + $0xac] sm:$0xf]
    %v2963 = vld [vmem:[%s5 + $0xb0] sm:$0xf]
    %v2964 = vld [vmem:[%s5 + $0xb4] sm:$0xf]
    %v2965 = vld [vmem:[%s5 + $0xb8] sm:$0xf]
    %v2966 = vld [vmem:[%s5 + $0xbc] sm:$0xf]
    %v2967 = vld [vmem:[%s5 + $0xc0] sm:$0xf]
    %v2968 = vld [vmem:[%s5 + $0xc4] sm:$0xf]
    %v2969 = vld [vmem:[%s5 + $0xc8] sm:$0xf]
    %v2970 = vld [vmem:[%s5 + $0xcc] sm:$0xf]
    %v2971 = vld [vmem:[%s5 + $0xd0] sm:$0xf]
    %v2972 = vld [vmem:[%s5 + $0xd4] sm:$0xf]
    %v2973 = vld [vmem:[%s5 + $0xd8] sm:$0xf]
    %v2974 = vld [vmem:[%s5 + $0xdc] sm:$0xf]
    %v2975 = vld [vmem:[%s5 + $0xe0] sm:$0xf]
    %v2976 = vld [vmem:[%s5 + $0xe4] sm:$0xf]
    %v2977 = vld [vmem:[%s5 + $0xe8] sm:$0xf]
    %v2978 = vld [vmem:[%s5 + $0xec] sm:$0xf]
    %v2979 = vld [vmem:[%s5 + $0xf0] sm:$0xf]
    %v2980 = vld [vmem:[%s5 + $0xf4] sm:$0xf]
    %v2981 = vld [vmem:[%s5 + $0xf8] sm:$0xf]
    %v2982 = vld [vmem:[%s5 + $0xfc] sm:$0xf]
    %v2983 = vld [vmem:[%s5 + $0x100] sm:$0xf]
    %v2984 = vld [vmem:[%s5 + $0x104] sm:$0xf]
    %v2985 = vld [vmem:[%s5 + $0x108] sm:$0xf]
    %v2986 = vld [vmem:[%s5 + $0x10c] sm:$0xf]
    %v2987 = vld [vmem:[%s5 + $0x110] sm:$0xf]
    %v2988 = vld [vmem:[%s5 + $0x114] sm:$0xf]
    %v2989 = vld [vmem:[%s5 + $0x118] sm:$0xf]
    %v2990 = vld [vmem:[%s5 + $0x11c] sm:$0xf]
    %v2991 = vld [vmem:[%s5 + $0x120] sm:$0xf]
    %v2992 = vld [vmem:[%s5 + $0x124] sm:$0xf]
    %v2993 = vld [vmem:[%s5 + $0x128] sm:$0xf]
    %v2994 = vld [vmem:[%s5 + $0x12c] sm:$0xf]
    %v2995 = vld [vmem:[%s5 + $0x130] sm:$0xf]
    %v2996 = vld [vmem:[%s5 + $0x134] sm:$0xf]
    %v2997 = vld [vmem:[%s5 + $0x138] sm:$0xf]
    %v2998 = vld [vmem:[%s5 + $0x13c] sm:$0xf]
    %v2999 = vld [vmem:[%s5 + $0x140] sm:$0xf]
    %v3000 = vld [vmem:[%s5 + $0x144] sm:$0xf]
    %v3001 = vld [vmem:[%s5 + $0x148] sm:$0xf]
    %v3002 = vld [vmem:[%s5 + $0x14c] sm:$0xf]
    %v3003 = vld [vmem:[%s5 + $0x150] sm:$0xf]
    %v3004 = vld [vmem:[%s5 + $0x154] sm:$0xf]
    %v3005 = vld [vmem:[%s5 + $0x158] sm:$0xf]
    %v3006 = vld [vmem:[%s5 + $0x15c] sm:$0xf]
    %v3007 = vld [vmem:[%s5 + $0x160] sm:$0xf]
    %v3008 = vld [vmem:[%s5 + $0x164] sm:$0xf]
    %v3009 = vld [vmem:[%s5 + $0x168] sm:$0xf]
    %v3010 = vld [vmem:[%s5 + $0x16c] sm:$0xf]
    %v3011 = vld [vmem:[%s5 + $0x170] sm:$0xf]
    %v3012 = vld [vmem:[%s5 + $0x174] sm:$0xf]
    %v3013 = vld [vmem:[%s5 + $0x178] sm:$0xf]
    %v3014 = vld [vmem:[%s5 + $0x17c] sm:$0xf]
    %v3015 = vld [vmem:[%s6] sm:$0xf]
    %v3016 = vld [vmem:[%s6 + $0x4] sm:$0xf]
    %v3017 = vld [vmem:[%s6 + $0x8] sm:$0xf]
    %v3018 = vld [vmem:[%s6 + $0xc] sm:$0xf]
    %v3019 = vld [vmem:[%s6 + $0x10] sm:$0xf]
    %v3020 = vld [vmem:[%s6 + $0x14] sm:$0xf]
    %v3021 = vld [vmem:[%s6 + $0x18] sm:$0xf]
    %v3022 = vld [vmem:[%s6 + $0x1c] sm:$0xf]
    %v3023 = vld [vmem:[%s6 + $0x20] sm:$0xf]
    %v3024 = vld [vmem:[%s6 + $0x24] sm:$0xf]
    %v3025 = vld [vmem:[%s6 + $0x28] sm:$0xf]
    %v3026 = vld [vmem:[%s6 + $0x2c] sm:$0xf]
    %v3027 = vld [vmem:[%s6 + $0x30] sm:$0xf]
    %v3028 = vld [vmem:[%s6 + $0x34] sm:$0xf]
    %v3029 = vld [vmem:[%s6 + $0x38] sm:$0xf]
    %v3030 = vld [vmem:[%s6 + $0x3c] sm:$0xf]
    %v3031 = vld [vmem:[%s6 + $0x40] sm:$0xf]
    %v3032 = vld [vmem:[%s6 + $0x44] sm:$0xf]
    %v3033 = vld [vmem:[%s6 + $0x48] sm:$0xf]
    %v3034 = vld [vmem:[%s6 + $0x4c] sm:$0xf]
    %v3035 = vld [vmem:[%s6 + $0x50] sm:$0xf]
    %v3036 = vld [vmem:[%s6 + $0x54] sm:$0xf]
    %v3037 = vld [vmem:[%s6 + $0x58] sm:$0xf]
    %v3038 = vld [vmem:[%s6 + $0x5c] sm:$0x1]
    %v3063 = vunpack.c.l.b16 %v3015
    %v3064 = vunpack.c.l.b16 %v3016
    %v3065 = vunpack.c.l.b16 %v3017
    %v3066 = vunpack.c.l.b16 %v3018
    %v3067 = vunpack.c.l.b16 %v3019
    %v3068 = vunpack.c.l.b16 %v3020
    %v3069 = vunpack.c.l.b16 %v3021
    %v3070 = vunpack.c.l.b16 %v3022
    %v3071 = vunpack.c.l.b16 %v3023
    %v3072 = vunpack.c.l.b16 %v3024
    %v3073 = vunpack.c.l.b16 %v3025
    %v3074 = vunpack.c.l.b16 %v3026
    %v3075 = vunpack.c.l.b16 %v3027
    %v3076 = vunpack.c.l.b16 %v3028
    %v3077 = vunpack.c.l.b16 %v3029
    %v3078 = vunpack.c.l.b16 %v3030
    %v3079 = vunpack.c.l.b16 %v3031
    %v3080 = vunpack.c.l.b16 %v3032
    %v3081 = vunpack.c.l.b16 %v3033
    %v3082 = vunpack.c.l.b16 %v3034
    %v3083 = vunpack.c.l.b16 %v3035
    %v3084 = vunpack.c.l.b16 %v3036
    %v3085 = vunpack.c.l.b16 %v3037
    %v3086 = vunpack.c.l.b16 %v3038
    %v3087 = vpack.c.b16 %v3064, %v3063
    %v3088 = vpack.c.b16 %v3066, %v3065
    %v3089 = vpack.c.b16 %v3068, %v3067
    %v3090 = vpack.c.b16 %v3070, %v3069
    %v3091 = vpack.c.b16 %v3072, %v3071
    %v3092 = vpack.c.b16 %v3074, %v3073
    %v3093 = vpack.c.b16 %v3076, %v3075
    %v3094 = vpack.c.b16 %v3078, %v3077
    %v3095 = vpack.c.b16 %v3080, %v3079
    %v3096 = vpack.c.b16 %v3082, %v3081
    %v3097 = vpack.c.b16 %v3084, %v3083
    %v3098 = vpack.c.b16 %v3086, %v3085
    %v3111 = vsel %vm624, %v3098, 0
    %3113 = vmatprep.subr.bf16.mxu0 0
    %3114 = vmatpush1.bf16.msra.mxu0 %v3087
    %3115 = vmatprep.subr.bf16.mxu0 0
    %3116 = vmatpush1.bf16.msra.mxu0 %v3088
    %3117 = vmatprep.subr.bf16.mxu0 0
    %3118 = vmatpush1.bf16.msra.mxu0 %v3089
    %3119 = vmatprep.subr.bf16.mxu0 0
    %3120 = vmatpush1.bf16.msra.mxu0 %v3090
    %3121 = vmatprep.subr.bf16.mxu0 0
    %3122 = vmatpush1.bf16.msra.mxu0 %v3091
    %3123 = vmatprep.subr.bf16.mxu0 0
    %3124 = vmatpush1.bf16.msra.mxu0 %v3092
    %3125 = vmatprep.subr.bf16.mxu0 0
    %3126 = vmatpush1.bf16.msra.mxu0 %v3093
    %3127 = vmatprep.subr.bf16.mxu0 0
    %3128 = vmatpush1.bf16.msra.mxu0 %v3094
    %3129 = vmatprep.subr.bf16.mxu0 0
    %3130 = vmatpush1.bf16.msra.mxu0 %v3095
    %3131 = vmatprep.subr.bf16.mxu0 0
    %3132 = vmatpush1.bf16.msra.mxu0 %v3096
    %3133 = vmatprep.subr.bf16.mxu0 0
    %3134 = vmatpush1.bf16.msra.mxu0 %v3097
    %3135 = vmatprep.subr.bf16.mxu0 0
    %3136 = vmatpush1.bf16.msra.mxu0 %v3111
    %3137 = vmatprep.subr.bf16.mxu0 0
    %3138 = vmatpush1.bf16.msra.mxu0 0
    %3139 = vmatprep.subr.bf16.mxu0 0
    %3140 = vmatpush1.bf16.msra.mxu0 0
    %3141 = vmatprep.subr.bf16.mxu0 0
    %3142 = vmatpush1.bf16.msra.mxu0 0
    %3143 = vmatprep.subr.bf16.mxu0 0
    %3144 = vmatpush1.bf16.msra.mxu0 0
    %3145 = vmatprep.mubr.bf16.mxu0 %v622
    %3146 = vmatmul.mubr.bf16.gmra.mrb[0].mxu0 %v160
    %v3147 = vpop.f32.mrb[0].mxu0
    %v3148 = vadd.f32 0.0, %v3147
    %v3149 = vpop.f32.mrb[0].mxu0
    %v3150 = vpop.f32.mrb[0].mxu0
    %v3151 = vpop.f32.mrb[0].mxu0
    %3152 = vdwg.mxu0
    %v3249 = vunpack.c.l.b16 %v2919
    %v3250 = vunpack.c.l.b16 %v2920
    %v3251 = vunpack.c.l.b16 %v2921
    %v3252 = vunpack.c.l.b16 %v2922
    %v3253 = vunpack.c.l.b16 %v2923
    %v3254 = vunpack.c.l.b16 %v2924
    %v3255 = vunpack.c.l.b16 %v2925
    %v3256 = vunpack.c.l.b16 %v2926
    %v3257 = vunpack.c.l.b16 %v2927
    %v3258 = vunpack.c.l.b16 %v2928
    %v3259 = vunpack.c.l.b16 %v2929
    %v3260 = vunpack.c.l.b16 %v2930
    %v3261 = vunpack.c.l.b16 %v2931
    %v3262 = vunpack.c.l.b16 %v2932
    %v3263 = vunpack.c.l.b16 %v2933
    %v3264 = vunpack.c.l.b16 %v2934
    %v3265 = vunpack.c.l.b16 %v2935
    %v3266 = vunpack.c.l.b16 %v2936
    %v3267 = vunpack.c.l.b16 %v2937
    %v3268 = vunpack.c.l.b16 %v2938
    %v3269 = vunpack.c.l.b16 %v2939
    %v3270 = vunpack.c.l.b16 %v2940
    %v3271 = vunpack.c.l.b16 %v2941
    %v3272 = vunpack.c.l.b16 %v2942
    %v3273 = vunpack.c.l.b16 %v2943
    %v3274 = vunpack.c.l.b16 %v2944
    %v3275 = vunpack.c.l.b16 %v2945
    %v3276 = vunpack.c.l.b16 %v2946
    %v3277 = vunpack.c.l.b16 %v2947
    %v3278 = vunpack.c.l.b16 %v2948
    %v3279 = vunpack.c.l.b16 %v2949
    %v3280 = vunpack.c.l.b16 %v2950
    %v3281 = vunpack.c.l.b16 %v2951
    %v3282 = vunpack.c.l.b16 %v2952
    %v3283 = vunpack.c.l.b16 %v2953
    %v3284 = vunpack.c.l.b16 %v2954
    %v3285 = vunpack.c.l.b16 %v2955
    %v3286 = vunpack.c.l.b16 %v2956
    %v3287 = vunpack.c.l.b16 %v2957
    %v3288 = vunpack.c.l.b16 %v2958
    %v3289 = vunpack.c.l.b16 %v2959
    %v3290 = vunpack.c.l.b16 %v2960
    %v3291 = vunpack.c.l.b16 %v2961
    %v3292 = vunpack.c.l.b16 %v2962
    %v3293 = vunpack.c.l.b16 %v2963
    %v3294 = vunpack.c.l.b16 %v2964
    %v3295 = vunpack.c.l.b16 %v2965
    %v3296 = vunpack.c.l.b16 %v2966
    %v3297 = vunpack.c.l.b16 %v2967
    %v3298 = vunpack.c.l.b16 %v2968
    %v3299 = vunpack.c.l.b16 %v2969
    %v3300 = vunpack.c.l.b16 %v2970
    %v3301 = vunpack.c.l.b16 %v2971
    %v3302 = vunpack.c.l.b16 %v2972
    %v3303 = vunpack.c.l.b16 %v2973
    %v3304 = vunpack.c.l.b16 %v2974
    %v3305 = vunpack.c.l.b16 %v2975
    %v3306 = vunpack.c.l.b16 %v2976
    %v3307 = vunpack.c.l.b16 %v2977
    %v3308 = vunpack.c.l.b16 %v2978
    %v3309 = vunpack.c.l.b16 %v2979
    %v3310 = vunpack.c.l.b16 %v2980
    %v3311 = vunpack.c.l.b16 %v2981
    %v3312 = vunpack.c.l.b16 %v2982
    %v3313 = vunpack.c.l.b16 %v2983
    %v3314 = vunpack.c.l.b16 %v2984
    %v3315 = vunpack.c.l.b16 %v2985
    %v3316 = vunpack.c.l.b16 %v2986
    %v3317 = vunpack.c.l.b16 %v2987
    %v3318 = vunpack.c.l.b16 %v2988
    %v3319 = vunpack.c.l.b16 %v2989
    %v3320 = vunpack.c.l.b16 %v2990
    %v3321 = vunpack.c.l.b16 %v2991
    %v3322 = vunpack.c.l.b16 %v2992
    %v3323 = vunpack.c.l.b16 %v2993
    %v3324 = vunpack.c.l.b16 %v2994
    %v3325 = vunpack.c.l.b16 %v2995
    %v3326 = vunpack.c.l.b16 %v2996
    %v3327 = vunpack.c.l.b16 %v2997
    %v3328 = vunpack.c.l.b16 %v2998
    %v3329 = vunpack.c.l.b16 %v2999
    %v3330 = vunpack.c.l.b16 %v3000
    %v3331 = vunpack.c.l.b16 %v3001
    %v3332 = vunpack.c.l.b16 %v3002
    %v3333 = vunpack.c.l.b16 %v3003
    %v3334 = vunpack.c.l.b16 %v3004
    %v3335 = vunpack.c.l.b16 %v3005
    %v3336 = vunpack.c.l.b16 %v3006
    %v3337 = vunpack.c.l.b16 %v3007
    %v3338 = vunpack.c.l.b16 %v3008
    %v3339 = vunpack.c.l.b16 %v3009
    %v3340 = vunpack.c.l.b16 %v3010
    %v3341 = vunpack.c.l.b16 %v3011
    %v3342 = vunpack.c.l.b16 %v3012
    %v3343 = vunpack.c.l.b16 %v3013
    %v3344 = vunpack.c.l.b16 %v3014
    %v3345 = vpack.c.b16 %v3250, %v3249
    %v3346 = vpack.c.b16 %v3252, %v3251
    %v3347 = vpack.c.b16 %v3254, %v3253
    %v3348 = vpack.c.b16 %v3256, %v3255
    %v3349 = vpack.c.b16 %v3258, %v3257
    %v3350 = vpack.c.b16 %v3260, %v3259
    %v3351 = vpack.c.b16 %v3262, %v3261
    %v3352 = vpack.c.b16 %v3264, %v3263
    %v3353 = vpack.c.b16 %v3266, %v3265
    %v3354 = vpack.c.b16 %v3268, %v3267
    %v3355 = vpack.c.b16 %v3270, %v3269
    %v3356 = vpack.c.b16 %v3272, %v3271
    %v3357 = vpack.c.b16 %v3274, %v3273
    %v3358 = vpack.c.b16 %v3276, %v3275
    %v3359 = vpack.c.b16 %v3278, %v3277
    %v3360 = vpack.c.b16 %v3280, %v3279
    %v3361 = vpack.c.b16 %v3282, %v3281
    %v3362 = vpack.c.b16 %v3284, %v3283
    %v3363 = vpack.c.b16 %v3286, %v3285
    %v3364 = vpack.c.b16 %v3288, %v3287
    %v3365 = vpack.c.b16 %v3290, %v3289
    %v3366 = vpack.c.b16 %v3292, %v3291
    %v3367 = vpack.c.b16 %v3294, %v3293
    %v3368 = vpack.c.b16 %v3296, %v3295
    %v3369 = vpack.c.b16 %v3298, %v3297
    %v3370 = vpack.c.b16 %v3300, %v3299
    %v3371 = vpack.c.b16 %v3302, %v3301
    %v3372 = vpack.c.b16 %v3304, %v3303
    %v3373 = vpack.c.b16 %v3306, %v3305
    %v3374 = vpack.c.b16 %v3308, %v3307
    %v3375 = vpack.c.b16 %v3310, %v3309
    %v3376 = vpack.c.b16 %v3312, %v3311
    %v3377 = vpack.c.b16 %v3314, %v3313
    %v3378 = vpack.c.b16 %v3316, %v3315
    %v3379 = vpack.c.b16 %v3318, %v3317
    %v3380 = vpack.c.b16 %v3320, %v3319
    %v3381 = vpack.c.b16 %v3322, %v3321
    %v3382 = vpack.c.b16 %v3324, %v3323
    %v3383 = vpack.c.b16 %v3326, %v3325
    %v3384 = vpack.c.b16 %v3328, %v3327
    %v3385 = vpack.c.b16 %v3330, %v3329
    %v3386 = vpack.c.b16 %v3332, %v3331
    %v3387 = vpack.c.b16 %v3334, %v3333
    %v3388 = vpack.c.b16 %v3336, %v3335
    %v3389 = vpack.c.b16 %v3338, %v3337
    %v3390 = vpack.c.b16 %v3340, %v3339
    %v3391 = vpack.c.b16 %v3342, %v3341
    %v3392 = vpack.c.b16 %v3344, %v3343
    %3441 = vmatprep.subr.bf16.mxu0 0
    %3442 = vmatpush1.bf16.msra.mxu0 %v3345
    %3443 = vmatprep.subr.bf16.mxu0 0
    %3444 = vmatpush1.bf16.msra.mxu0 %v3346
    %3445 = vmatprep.subr.bf16.mxu0 0
    %3446 = vmatpush1.bf16.msra.mxu0 %v3347
    %3447 = vmatprep.subr.bf16.mxu0 0
    %3448 = vmatpush1.bf16.msra.mxu0 %v3348
    %3449 = vmatprep.subr.bf16.mxu0 0
    %3450 = vmatpush1.bf16.msra.mxu0 %v3349
    %3451 = vmatprep.subr.bf16.mxu0 0
    %3452 = vmatpush1.bf16.msra.mxu0 %v3350
    %3453 = vmatprep.subr.bf16.mxu0 0
    %3454 = vmatpush1.bf16.msra.mxu0 %v3351
    %3455 = vmatprep.subr.bf16.mxu0 0
    %3456 = vmatpush1.bf16.msra.mxu0 %v3352
    %3457 = vmatprep.subr.bf16.mxu0 0
    %3458 = vmatpush1.bf16.msra.mxu0 %v3353
    %3459 = vmatprep.subr.bf16.mxu0 0
    %3460 = vmatpush1.bf16.msra.mxu0 %v3354
    %3461 = vmatprep.subr.bf16.mxu0 0
    %3462 = vmatpush1.bf16.msra.mxu0 %v3355
    %3463 = vmatprep.subr.bf16.mxu0 0
    %3464 = vmatpush1.bf16.msra.mxu0 %v3356
    %3465 = vmatprep.subr.bf16.mxu0 0
    %3466 = vmatpush1.bf16.msra.mxu0 %v3357
    %3467 = vmatprep.subr.bf16.mxu0 0
    %3468 = vmatpush1.bf16.msra.mxu0 %v3358
    %3469 = vmatprep.subr.bf16.mxu0 0
    %3470 = vmatpush1.bf16.msra.mxu0 %v3359
    %3471 = vmatprep.subr.bf16.mxu0 0
    %3472 = vmatpush1.bf16.msra.mxu0 %v3360
    %3473 = vmatprep.mubr.bf16.mxu0 %v2914
    %3474 = vmatmul.mubr.bf16.gmra.mrb[0].mxu0 %v2913
    %v3475 = vpop.f32.mrb[0].mxu0
    %v3476 = vadd.f32 %v3148, %v3475
    %v3477 = vpop.f32.mrb[0].mxu0
    %v3478 = vpop.f32.mrb[0].mxu0
    %v3479 = vpop.f32.mrb[0].mxu0
    %3480 = vdwg.mxu0
    %3481 = vmatprep.subr.bf16.mxu0 0
    %3482 = vmatpush1.bf16.msra.mxu0 %v3361
    %3483 = vmatprep.subr.bf16.mxu0 0
    %3484 = vmatpush1.bf16.msra.mxu0 %v3362
    %3485 = vmatprep.subr.bf16.mxu0 0
    %3486 = vmatpush1.bf16.msra.mxu0 %v3363
    %3487 = vmatprep.subr.bf16.mxu0 0
    %3488 = vmatpush1.bf16.msra.mxu0 %v3364
    %3489 = vmatprep.subr.bf16.mxu0 0
    %3490 = vmatpush1.bf16.msra.mxu0 %v3365
    %3491 = vmatprep.subr.bf16.mxu0 0
    %3492 = vmatpush1.bf16.msra.mxu0 %v3366
    %3493 = vmatprep.subr.bf16.mxu0 0
    %3494 = vmatpush1.bf16.msra.mxu0 %v3367
    %3495 = vmatprep.subr.bf16.mxu0 0
    %3496 = vmatpush1.bf16.msra.mxu0 %v3368
    %3497 = vmatprep.subr.bf16.mxu0 0
    %3498 = vmatpush1.bf16.msra.mxu0 %v3369
    %3499 = vmatprep.subr.bf16.mxu0 0
    %3500 = vmatpush1.bf16.msra.mxu0 %v3370
    %3501 = vmatprep.subr.bf16.mxu0 0
    %3502 = vmatpush1.bf16.msra.mxu0 %v3371
    %3503 = vmatprep.subr.bf16.mxu0 0
    %3504 = vmatpush1.bf16.msra.mxu0 %v3372
    %3505 = vmatprep.subr.bf16.mxu0 0
    %3506 = vmatpush1.bf16.msra.mxu0 %v3373
    %3507 = vmatprep.subr.bf16.mxu0 0
    %3508 = vmatpush1.bf16.msra.mxu0 %v3374
    %3509 = vmatprep.subr.bf16.mxu0 0
    %3510 = vmatpush1.bf16.msra.mxu0 %v3375
    %3511 = vmatprep.subr.bf16.mxu0 0
    %3512 = vmatpush1.bf16.msra.mxu0 %v3376
    %3513 = vmatprep.mubr.bf16.mxu0 %v2916
    %3514 = vmatmul.mubr.bf16.gmra.mrb[0].mxu0 %v2915
    %v3515 = vpop.f32.mrb[0].mxu0
    %v3516 = vadd.f32 %v3476, %v3515
    %v3517 = vpop.f32.mrb[0].mxu0
    %v3518 = vpop.f32.mrb[0].mxu0
    %v3519 = vpop.f32.mrb[0].mxu0
    %3520 = vdwg.mxu0
    %3521 = vmatprep.subr.bf16.mxu0 0
    %3522 = vmatpush1.bf16.msra.mxu0 %v3377
    %3523 = vmatprep.subr.bf16.mxu0 0
    %3524 = vmatpush1.bf16.msra.mxu0 %v3378
    %3525 = vmatprep.subr.bf16.mxu0 0
    %3526 = vmatpush1.bf16.msra.mxu0 %v3379
    %3527 = vmatprep.subr.bf16.mxu0 0
    %3528 = vmatpush1.bf16.msra.mxu0 %v3380
    %3529 = vmatprep.subr.bf16.mxu0 0
    %3530 = vmatpush1.bf16.msra.mxu0 %v3381
    %3531 = vmatprep.subr.bf16.mxu0 0
    %3532 = vmatpush1.bf16.msra.mxu0 %v3382
    %3533 = vmatprep.subr.bf16.mxu0 0
    %3534 = vmatpush1.bf16.msra.mxu0 %v3383
    %3535 = vmatprep.subr.bf16.mxu0 0
    %3536 = vmatpush1.bf16.msra.mxu0 %v3384
    %3537 = vmatprep.subr.bf16.mxu0 0
    %3538 = vmatpush1.bf16.msra.mxu0 %v3385
    %3539 = vmatprep.subr.bf16.mxu0 0
    %3540 = vmatpush1.bf16.msra.mxu0 %v3386
    %3541 = vmatprep.subr.bf16.mxu0 0
    %3542 = vmatpush1.bf16.msra.mxu0 %v3387
    %3543 = vmatprep.subr.bf16.mxu0 0
    %3544 = vmatpush1.bf16.msra.mxu0 %v3388
    %3545 = vmatprep.subr.bf16.mxu0 0
    %3546 = vmatpush1.bf16.msra.mxu0 %v3389
    %3547 = vmatprep.subr.bf16.mxu0 0
    %3548 = vmatpush1.bf16.msra.mxu0 %v3390
    %3549 = vmatprep.subr.bf16.mxu0 0
    %3550 = vmatpush1.bf16.msra.mxu0 %v3391
    %3551 = vmatprep.subr.bf16.mxu0 0
    %3552 = vmatpush1.bf16.msra.mxu0 %v3392
    %3553 = vmatprep.mubr.bf16.mxu0 %v2918
    %3554 = vmatmul.mubr.bf16.gmra.mrb[0].mxu0 %v2917
    %v3555 = vpop.f32.mrb[0].mxu0
    %v3556 = vadd.f32 %v3516, %v3555
    %v3557 = vpop.f32.mrb[0].mxu0
    %v3558 = vpop.f32.mrb[0].mxu0
    %v3559 = vpop.f32.mrb[0].mxu0
    %3560 = vdwg.mxu0
    %v3561 = vld [vmem:[#allocation9] sm:$0x1]
    %v3563 = vlaneseq
    %v3564 = vshrl.u32 %v3563, 7
    %v3565 = vsub.s32 0, %v3564
    %v3566 = vrot.slane %v3561, %v3565
    %v3568 = vadd.f32 %v3556, %v3566
    %v3569 = vmax.f32 %v3568, 0.0
    %v3570 = vpack.c.bf16 %v3569, %v3569
    %v3571 = vld [vmem:[%s8] sm:$0xf]
    %v3572 = vld [vmem:[%s8 + $0x4] sm:$0xf]
    %v3573 = vld [vmem:[%s8 + $0x8] sm:$0xf]
    %v3574 = vld [vmem:[%s8 + $0xc] sm:$0xf]
    %v3575 = vld [vmem:[%s8 + $0x10] sm:$0xf]
    %v3576 = vld [vmem:[%s8 + $0x14] sm:$0xf]
    %v3577 = vld [vmem:[%s8 + $0x18] sm:$0xf]
    %v3578 = vld [vmem:[%s8 + $0x1c] sm:$0xf]
    %v3579 = vld [vmem:[#allocation10] sm:$0x1]
    %v3581 = vlaneseq
    %v3582 = vshrl.u32 %v3581, 7
    %v3583 = vsub.s32 0, %v3582
    %v3584 = vrot.slane %v3579, %v3583
    %v3594 = vunpack.c.l.b16 %v3571
    %v3595 = vunpack.c.l.b16 %v3572
    %v3596 = vunpack.c.l.b16 %v3573
    %v3597 = vunpack.c.l.b16 %v3574
    %v3598 = vunpack.c.l.b16 %v3575
    %v3599 = vunpack.c.l.b16 %v3576
    %v3600 = vunpack.c.l.b16 %v3577
    %v3601 = vunpack.c.l.b16 %v3578
    %v3602 = vpack.c.b16 %v3595, %v3594
    %v3603 = vpack.c.b16 %v3597, %v3596
    %v3604 = vpack.c.b16 %v3599, %v3598
    %v3605 = vpack.c.b16 %v3601, %v3600
    %vm3610 = vcmask 523264
    %v3612 = vsel %vm3610, %v3570, 0
    %3614 = vmatprep.subr.bf16.mxu0 0
    %3615 = vmatpush1.bf16.msra.mxu0 %v3602
    %3616 = vmatprep.subr.bf16.mxu0 0
    %3617 = vmatpush1.bf16.msra.mxu0 %v3603
    %3618 = vmatprep.subr.bf16.mxu0 0
    %3619 = vmatpush1.bf16.msra.mxu0 %v3604
    %3620 = vmatprep.subr.bf16.mxu0 0
    %3621 = vmatpush1.bf16.msra.mxu0 %v3605
    %3622 = vmatprep.subr.bf16.mxu0 0
    %3623 = vmatpush1.bf16.msra.mxu0 0
    %3624 = vmatprep.subr.bf16.mxu0 0
    %3625 = vmatpush1.bf16.msra.mxu0 0
    %3626 = vmatprep.subr.bf16.mxu0 0
    %3627 = vmatpush1.bf16.msra.mxu0 0
    %3628 = vmatprep.subr.bf16.mxu0 0
    %3629 = vmatpush1.bf16.msra.mxu0 0
    %3630 = vmatprep.subr.bf16.mxu0 0
    %3631 = vmatpush1.bf16.msra.mxu0 0
    %3632 = vmatprep.subr.bf16.mxu0 0
    %3633 = vmatpush1.bf16.msra.mxu0 0
    %3634 = vmatprep.subr.bf16.mxu0 0
    %3635 = vmatpush1.bf16.msra.mxu0 0
    %3636 = vmatprep.subr.bf16.mxu0 0
    %3637 = vmatpush1.bf16.msra.mxu0 0
    %3638 = vmatprep.subr.bf16.mxu0 0
    %3639 = vmatpush1.bf16.msra.mxu0 0
    %3640 = vmatprep.subr.bf16.mxu0 0
    %3641 = vmatpush1.bf16.msra.mxu0 0
    %3642 = vmatprep.subr.bf16.mxu0 0
    %3643 = vmatpush1.bf16.msra.mxu0 0
    %3644 = vmatprep.subr.bf16.mxu0 0
    %3645 = vmatpush1.bf16.msra.mxu0 0
    %3646 = vmatprep.mubr.bf16.mxu0 0
    %3647 = vmatmul.mubr.bf16.gmra.mrb[0].mxu0 %v3612
    %v3648 = vpop.f32.mrb[0].mxu0
    %v3649 = vadd.f32 %v3584, %v3648
    %v3650 = vpop.f32.mrb[0].mxu0
    %v3651 = vpop.f32.mrb[0].mxu0
    %v3652 = vpop.f32.mrb[0].mxu0
    %3653 = vdwg.mxu0
    %v3654 = vtanh.pop %v3649
    %v3655 = vpack.c.bf16 %v3654, %v3654
    %v3656 = vld [vmem:[#allocation12] sm:$0xf]
    %v3657 = vld [vmem:[#allocation12 + $0x4] sm:$0xf]
    %v3658 = vld [vmem:[#allocation12 + $0x8] sm:$0xf]
    %v3659 = vld [vmem:[#allocation12 + $0xc] sm:$0xf]
    %v3660 = vld [vmem:[#allocation13] sm:$0x1]
    %v3662 = vlaneseq
    %v3663 = vshrl.u32 %v3662, 7
    %v3664 = vsub.s32 0, %v3663
    %v3665 = vrot.slane %v3660, %v3664
    %v3671 = vunpack.c.l.b16 %v3656
    %v3672 = vunpack.c.l.b16 %v3657
    %v3673 = vunpack.c.l.b16 %v3658
    %v3674 = vunpack.c.l.b16 %v3659
    %v3675 = vpack.c.b16 %v3672, %v3671
    %v3676 = vpack.c.b16 %v3674, %v3673
    %vm3679 = vcmask 261120
    %v3681 = vsel %vm3679, %v3655, 0
    %3683 = vmatprep.subr.bf16.mxu0 0
    %3684 = vmatpush1.bf16.msra.mxu0 %v3675
    %3685 = vmatprep.subr.bf16.mxu0 0
    %3686 = vmatpush1.bf16.msra.mxu0 %v3676
    %3687 = vmatprep.subr.bf16.mxu0 0
    %3688 = vmatpush1.bf16.msra.mxu0 0
    %3689 = vmatprep.subr.bf16.mxu0 0
    %3690 = vmatpush1.bf16.msra.mxu0 0
    %3691 = vmatprep.subr.bf16.mxu0 0
    %3692 = vmatpush1.bf16.msra.mxu0 0
    %3693 = vmatprep.subr.bf16.mxu0 0
    %3694 = vmatpush1.bf16.msra.mxu0 0
    %3695 = vmatprep.subr.bf16.mxu0 0
    %3696 = vmatpush1.bf16.msra.mxu0 0
    %3697 = vmatprep.subr.bf16.mxu0 0
    %3698 = vmatpush1.bf16.msra.mxu0 0
    %3699 = vmatprep.subr.bf16.mxu0 0
    %3700 = vmatpush1.bf16.msra.mxu0 0
    %3701 = vmatprep.subr.bf16.mxu0 0
    %3702 = vmatpush1.bf16.msra.mxu0 0
    %3703 = vmatprep.subr.bf16.mxu0 0
    %3704 = vmatpush1.bf16.msra.mxu0 0
    %3705 = vmatprep.subr.bf16.mxu0 0
    %3706 = vmatpush1.bf16.msra.mxu0 0
    %3707 = vmatprep.subr.bf16.mxu0 0
    %3708 = vmatpush1.bf16.msra.mxu0 0
    %3709 = vmatprep.subr.bf16.mxu0 0
    %3710 = vmatpush1.bf16.msra.mxu0 0
    %3711 = vmatprep.subr.bf16.mxu0 0
    %3712 = vmatpush1.bf16.msra.mxu0 0
    %3713 = vmatprep.subr.bf16.mxu0 0
    %3714 = vmatpush1.bf16.msra.mxu0 0
    %3715 = vmatprep.mubr.bf16.mxu0 0
    %3716 = vmatmul.mubr.bf16.gmra.mrb[0].mxu0 %v3681
    %v3717 = vpop.f32.mrb[0].mxu0
    %v3718 = vadd.f32 %v3665, %v3717
    %v3719 = vpop.f32.mrb[0].mxu0
    %v3720 = vpop.f32.mrb[0].mxu0
    %v3721 = vpop.f32.mrb[0].mxu0
    %3722 = vdwg.mxu0
    %v3723 = vtanh.pop %v3718
    %v3724 = vpack.c.bf16 %v3723, %v3723
    %v3725 = vld [vmem:[%s12] sm:$0xf]
    %v3726 = vld [vmem:[%s12 + $0x4] sm:$0xf]
    %v3727 = vld [vmem:[%s12 + $0x8] sm:$0xf]
    %v3728 = vld [vmem:[%s12 + $0xc] sm:$0xf]
    %v3729 = vld [vmem:[#allocation15] sm:$0x1]
    %v3731 = vlaneseq
    %v3732 = vshrl.u32 %v3731, 7
    %v3733 = vsub.s32 0, %v3732
    %v3734 = vrot.slane %v3729, %v3733
    %v3740 = vunpack.c.l.b16 %v3725
    %v3741 = vunpack.c.l.b16 %v3726
    %v3742 = vunpack.c.l.b16 %v3727
    %v3743 = vunpack.c.l.b16 %v3728
    %v3744 = vpack.c.b16 %v3741, %v3740
    %v3745 = vpack.c.b16 %v3743, %v3742
    %v3749 = vsel %vm3679, %v3724, 0
    %3751 = vmatprep.subr.bf16.mxu0 0
    %3752 = vmatpush1.bf16.msra.mxu0 %v3744
    %3753 = vmatprep.subr.bf16.mxu0 0
    %3754 = vmatpush1.bf16.msra.mxu0 %v3745
    %3755 = vmatprep.subr.bf16.mxu0 0
    %3756 = vmatpush1.bf16.msra.mxu0 0
    %3757 = vmatprep.subr.bf16.mxu0 0
    %3758 = vmatpush1.bf16.msra.mxu0 0
    %3759 = vmatprep.subr.bf16.mxu0 0
    %3760 = vmatpush1.bf16.msra.mxu0 0
    %3761 = vmatprep.subr.bf16.mxu0 0
    %3762 = vmatpush1.bf16.msra.mxu0 0
    %3763 = vmatprep.subr.bf16.mxu0 0
    %3764 = vmatpush1.bf16.msra.mxu0 0
    %3765 = vmatprep.subr.bf16.mxu0 0
    %3766 = vmatpush1.bf16.msra.mxu0 0
    %3767 = vmatprep.subr.bf16.mxu0 0
    %3768 = vmatpush1.bf16.msra.mxu0 0
    %3769 = vmatprep.subr.bf16.mxu0 0
    %3770 = vmatpush1.bf16.msra.mxu0 0
    %3771 = vmatprep.subr.bf16.mxu0 0
    %3772 = vmatpush1.bf16.msra.mxu0 0
    %3773 = vmatprep.subr.bf16.mxu0 0
    %3774 = vmatpush1.bf16.msra.mxu0 0
    %3775 = vmatprep.subr.bf16.mxu0 0
    %3776 = vmatpush1.bf16.msra.mxu0 0
    %3777 = vmatprep.subr.bf16.mxu0 0
    %3778 = vmatpush1.bf16.msra.mxu0 0
    %3779 = vmatprep.subr.bf16.mxu0 0
    %3780 = vmatpush1.bf16.msra.mxu0 0
    %3781 = vmatprep.subr.bf16.mxu0 0
    %3782 = vmatpush1.bf16.msra.mxu0 0
    %3783 = vmatprep.mubr.bf16.mxu0 0
    %3784 = vmatmul.mubr.bf16.gmra.mrb[0].mxu0 %v3749
    %v3785 = vpop.f32.mrb[0].mxu0
    %v3786 = vadd.f32 %v3734, %v3785
    %v3787 = vpop.f32.mrb[0].mxu0
    %v3788 = vpop.f32.mrb[0].mxu0
    %v3789 = vpop.f32.mrb[0].mxu0
    %3790 = vdwg.mxu0
    %v3791 = vtanh.pop %v3786
    %vm3792 = vcmask 15360
    %3793 = vst.msk [vmem:[%s14] sm:$0xff] %vm3792, %v3791
    // Predicated region
    $region94: #{combined_actor_forward.1} parent=1 // pred_check
      _
    $region95: #{combined_actor_forward.1} parent=1 // pred_check_branch
      %3795 = sbr.rel (0) target = $region97
    $region96: #{combined_actor_forward.1} parent=1 // pred_region
      _
    $region97: #{combined_actor_forward.1} parent=1 // pred_fallthru
      _
    // Predicated region
    $region98: #{combined_actor_forward.1} parent=1 // pred_check
      _
    $region99: #{combined_actor_forward.1} parent=1 // pred_check_branch
      %3797 = sbr.rel (0) target = $region101
    $region100: #{combined_actor_forward.1} parent=1 // pred_region
      _
    $region101: #{combined_actor_forward.1} parent=1 // pred_fallthru
      _
    %3798 = vsyncpa [#allocation3], 1
    %3799 = vsyncpa [#allocation5], 1
    %3800 = vsyncpa [#allocation8], 1
    %3801 = vsyncpa [#allocation11], 1
    %3802 = vsyncpa [#allocation14], 1

</llo_original>
